<compile_context>
chip_gen: v7x
topology: tpu7x:2x2x1
jax: 0.10.0
libtpu: 0.0.40
codegen_flags: <defaults>
</compile_context>

<pallas_src>
import jax
import jax.numpy as jnp
from jax.experimental import pallas as pl
from jax.experimental.pallas import tpu as pltpu


# -----------------------------------------------------------------------------
# Fixed problem geometry (batch=2, 16x16 input, channels 3 -> 128 -> 64 -> 3)
# -----------------------------------------------------------------------------
N_BATCH = 2
H_IN = W_IN = 16

# conv1 (5x5, pad 1): 16 -> 14
K1, C_IN, C1 = 5, 3, 128
H1 = H_IN + 2 - K1 + 1                     # 14
W1 = W_IN + 2 - K1 + 1                     # 14
M1 = N_BATCH * H1 * W1                     # 392
M1_PAD = 400                               # 2 blocks of 200 (multiple of 8)
TM1 = M1_PAD // 2                          # 200
KC1 = K1 * K1 * C_IN                       # 75
KC1_PAD = 128                              # lane-aligned contraction dim

# conv2 (3x3, pad 1, fused with conv3 1x1)
K2, C2, C3 = 3, 64, 3
FRAME_W = W1 + 2                           # 16  (padded frame width == out frame width)
FRAME_H = H1 + 2 + 3                       # 19  (1 top + 1 bottom pad + 3 halo rows)
ROWS_PER_BATCH_IN = FRAME_H * FRAME_W      # 304 rows of padded activation per image
ROWS_PER_BATCH_OUT = FRAME_W * FRAME_W     # 256 output rows per image (edges discarded)
M2_OUT = N_BATCH * ROWS_PER_BATCH_OUT      # 512
TAP_OFFSETS = tuple(kh * FRAME_W + kw for kh in range(K2) for kw in range(K2))


# -----------------------------------------------------------------------------
# Kernel 1: conv1 as a single fused matmul + bias + ReLU (full K, no k loop)
# -----------------------------------------------------------------------------
def _conv1_kernel(a_ref, w_ref, b_ref, o_ref):
    y = jnp.dot(a_ref[...], w_ref[...], preferred_element_type=jnp.float32)
    o_ref[...] = jnp.maximum(y + b_ref[...], 0.0)


def _conv1_matmul(a_pad, w_pad, b_row):
    cost = pl.CostEstimate(
        flops=2 * M1_PAD * KC1_PAD * C1,
        transcendentals=0,
        bytes_accessed=4 * (M1_PAD * KC1_PAD + KC1_PAD * C1 + C1 + M1_PAD * C1),
    )
    return pl.pallas_call(
        _conv1_kernel,
        out_shape=jax.ShapeDtypeStruct((M1_PAD, C1), jnp.float32),
        grid=(M1_PAD // TM1,),
        in_specs=[
            pl.BlockSpec((TM1, KC1_PAD), lambda i: (i, 0)),
            pl.BlockSpec((KC1_PAD, C1), lambda i: (0, 0)),
            pl.BlockSpec((1, C1), lambda i: (0, 0)),
        ],
        out_specs=pl.BlockSpec((TM1, C1), lambda i: (i, 0)),
        compiler_params=pltpu.CompilerParams(dimension_semantics=("parallel",)),
        cost_estimate=cost,
    )(a_pad, w_pad, b_row)


# -----------------------------------------------------------------------------
# Kernel 2: conv2 (3x3) with in-kernel im2col (9 shifted matmuls) + bias + ReLU,
#           then conv3 (1x1) + bias + ReLU fused as the epilogue.
#           One batch image per grid step (2 parallel blocks).
# -----------------------------------------------------------------------------
def _conv23_kernel(x_ref, w2_ref, b2_ref, w3_ref, b3_ref, o_ref):
    acc = jnp.zeros((ROWS_PER_BATCH_OUT, C2), jnp.float32)
    for t, off in enumerate(TAP_OFFSETS):
        a = x_ref[pl.ds(off, ROWS_PER_BATCH_OUT), :]       # static shifted window
        acc = acc + jnp.dot(a, w2_ref[t], preferred_element_type=jnp.float32)
    h2 = jnp.maximum(acc + b2_ref[...], 0.0)               # conv2 + ReLU
    y3 = jnp.dot(h2, w3_ref[...], preferred_element_type=jnp.float32) + b3_ref[...]
    o_ref[...] = jnp.maximum(y3, 0.0)                      # conv3 + ReLU (interior)


def _conv23_fused(x_flat, w2_taps, b2_row, w3_mat, b3_row):
    cost = pl.CostEstimate(
        flops=2 * M2_OUT * (K2 * K2 * C1) * C2 + 2 * M2_OUT * C2 * C3,
        transcendentals=0,
        bytes_accessed=4 * (x_flat.size + w2_taps.size + b2_row.size
                            + w3_mat.size + b3_row.size + M2_OUT * C3),
    )
    return pl.pallas_call(
        _conv23_kernel,
        out_shape=jax.ShapeDtypeStruct((M2_OUT, C3), jnp.float32),
        grid=(N_BATCH,),
        in_specs=[
            pl.BlockSpec((ROWS_PER_BATCH_IN, C1), lambda i: (i, 0)),
            pl.BlockSpec((K2 * K2, C1, C2), lambda i: (0, 0, 0)),
            pl.BlockSpec((1, C2), lambda i: (0, 0)),
            pl.BlockSpec((C2, C3), lambda i: (0, 0)),
            pl.BlockSpec((1, C3), lambda i: (0, 0)),
        ],
        out_specs=pl.BlockSpec((ROWS_PER_BATCH_OUT, C3), lambda i: (i, 0)),
        compiler_params=pltpu.CompilerParams(dimension_semantics=("parallel",)),
        cost_estimate=cost,
    )(x_flat, w2_taps, b2_row, w3_mat, b3_row)


# -----------------------------------------------------------------------------
# Forward pass (NCHW in / NCHW out, matching the PyTorch module)
# -----------------------------------------------------------------------------
@jax.jit
def cnn_forward(x_nchw, params):
    x = jnp.transpose(x_nchw, (0, 2, 3, 1))                          # NCHW -> NHWC

    # ---- conv1: tiny im2col (K=75, padded to 128 lanes) + fused matmul kernel ----
    xp = jnp.pad(x, ((0, 0), (1, 1), (1, 1), (0, 0)))
    patches = jnp.concatenate(
        [xp[:, kh:kh + H1, kw:kw + W1, :] for kh in range(K1) for kw in range(K1)],
        axis=-1)                                                     # (N, 14, 14, 75)
    a1 = patches.reshape(M1, KC1)
    a1 = jnp.pad(a1, ((0, M1_PAD - M1), (0, KC1_PAD - KC1)))
    w1 = jnp.pad(params["w1"].reshape(KC1, C1), ((0, KC1_PAD - KC1), (0, 0)))
    h1 = _conv1_matmul(a1, w1, params["b1"].reshape(1, C1))[:M1]
    h1 = h1.reshape(N_BATCH, H1, W1, C1)

    # ---- conv2 + conv3 fused kernel ----
    # Zero-pad conv1 output: 1 top, 1 left/right, 1 bottom (+3 halo rows so the
    # shifted in-kernel reads for discarded edge rows stay in bounds).
    x2 = jnp.pad(h1, ((0, 0), (1, FRAME_H - H1 - 1), (1, FRAME_W - W1 - 1), (0, 0)))
    x2 = x2.reshape(N_BATCH * ROWS_PER_BATCH_IN, C1)
    w2 = params["w2"].reshape(K2 * K2, C1, C2)                       # tap-major (kh, kw)
    w3 = params["w3"].reshape(C2, C3)
    y23 = _conv23_fused(x2, w2, params["b2"].reshape(1, C2),
                        w3, params["b3"].reshape(1, C3))
    y23 = y23.reshape(N_BATCH, FRAME_W, FRAME_W, C3)[:, :H1, :W1, :]  # valid interior

    # ---- conv3 padding border: 1x1 conv on zero padding = relu(b3) ----
    out = jnp.broadcast_to(jnp.maximum(params["b3"], 0.0),
                           (N_BATCH, H1 + 2, W1 + 2, C3))
    out = out.at[:, 1:1 + H1, 1:1 + W1, :].set(y23)
    return jnp.transpose(out, (0, 3, 1, 2))                          # NHWC -> NCHW


# -----------------------------------------------------------------------------
# Deterministic synthetic parameters + pure-JAX reference
# -----------------------------------------------------------------------------
def init_params(key):
    ks = jax.random.split(key, 6)
    return {
        "w1": jax.random.normal(ks[0], (5, 5, 3, 128), jnp.float32) * 0.05,
        "b1": jax.random.normal(ks[1], (128,), jnp.float32) * 0.05,
        "w2": jax.random.normal(ks[2], (3, 3, 128, 64), jnp.float32) * 0.05,
        "b2": jax.random.normal(ks[3], (64,), jnp.float32) * 0.05,
        "w3": jax.random.normal(ks[4], (1, 1, 64, 3), jnp.float32) * 0.05,
        "b3": jax.random.normal(ks[5], (3,), jnp.float32) * 0.05,
    }


def _ref_conv_relu(x_nhwc, w_hwio, b, padding):
    y = jax.lax.conv_general_dilated(
        x_nhwc, w_hwio, window_strides=(1, 1),
        padding=((padding, padding), (padding, padding)),
        dimension_numbers=("NHWC", "HWIO", "NHWC"),
    )
    return jnp.maximum(y + b, 0.0)


@jax.jit
def cnn_forward_ref(x_nchw, params):
    x = jnp.transpose(x_nchw, (0, 2, 3, 1))
    x = _ref_conv_relu(x, params["w1"], params["b1"], 1)
    x = _ref_conv_relu(x, params["w2"], params["b2"], 1)
    x = _ref_conv_relu(x, params["w3"], params["b3"], 1)
    return jnp.transpose(x, (0, 3, 1, 2))


if __name__ == "__main__":
    key = jax.random.PRNGKey(0)
    k_x, k_p = jax.random.split(key)

    # PyTorch-style NCHW input: batch=2, channels=3 (conv1 expects 3), 16x16.
    x = jax.random.normal(k_x, (2, 3, 16, 16), jnp.float32)
    params = init_params(k_p)

    out = jax.block_until_ready(cnn_forward(x, params))

    # Shape check: 16 -> 14 (k5,p1) -> 14 (k3,p1) -> 16 (k1,p1)
    assert out.shape == (2, 3, 16, 16), out.shape

    ref = jax.block_until_ready(cnn_forward_ref(x, params))
    assert jnp.allclose(out, ref, atol=1e-3, rtol=1e-3), (
        float(jnp.max(jnp.abs(out - ref)))
    )

    print("KERNEL_OK")
</pallas_src>

<mosaic_0001>
module attributes {stable_mosaic.version = 11 : i64} {
  func.func @_conv1_kernel(%arg0: i32, %arg1: memref<200x128xf32, #tpu.memory_space<vmem>>, %arg2: memref<128x128xf32, #tpu.memory_space<vmem>>, %arg3: memref<1x128xf32, #tpu.memory_space<vmem>>, %arg4: memref<200x128xf32, #tpu.memory_space<vmem>>) attributes {dimension_semantics = [#tpu.dimension_semantics<parallel>], iteration_bounds = array<i64: 2>, scalar_prefetch = 0 : i64, scratch_operands = 0 : i64, tpu.core_type = #tpu.core_type<tc>, window_params = [{transform_indices = @transform_0, window_bounds = array<i64: 200, 128>}, {pipeline_mode = #tpu.pipeline_mode<synchronous>, transform_indices = @transform_1, window_bounds = array<i64: 128, 128>}, {pipeline_mode = #tpu.pipeline_mode<synchronous>, transform_indices = @transform_2, window_bounds = array<i64: 1, 128>}, {transform_indices = @transform_3, window_bounds = array<i64: 200, 128>}]} {
    %c0 = arith.constant 0 : index
    %c0_0 = arith.constant 0 : index
    %0 = vector.load %arg1[%c0, %c0_0] : memref<200x128xf32, #tpu.memory_space<vmem>>, vector<200x128xf32>
    %c0_1 = arith.constant 0 : index
    %c0_2 = arith.constant 0 : index
    %1 = vector.load %arg2[%c0_1, %c0_2] : memref<128x128xf32, #tpu.memory_space<vmem>>, vector<128x128xf32>
    %cst = arith.constant dense<0.000000e+00> : vector<200x128xf32>
    %2 = tpu.matmul %0, %1, %cst {dimension_numbers = #tpu.dot_dimension_numbers<[1], [0], [0], [1], [0, 0, 1, 1], [], []>} : vector<200x128xf32>, vector<128x128xf32>, vector<200x128xf32> -> vector<200x128xf32>
    %c0_3 = arith.constant 0 : index
    %c0_4 = arith.constant 0 : index
    %3 = vector.load %arg3[%c0_3, %c0_4] : memref<1x128xf32, #tpu.memory_space<vmem>>, vector<1x128xf32>
    %4 = vector.broadcast %3 : vector<1x128xf32> to vector<200x128xf32>
    %5 = arith.addf %2, %4 : vector<200x128xf32>
    %cst_5 = arith.constant 0.000000e+00 : f32
    %6 = vector.broadcast %cst_5 : f32 to vector<200x128xf32>
    %7 = arith.maximumf %5, %6 : vector<200x128xf32>
    %c0_6 = arith.constant 0 : index
    %c0_7 = arith.constant 0 : index
    %8 = vector.load %arg4[%c0_6, %c0_7] : memref<200x128xf32, #tpu.memory_space<vmem>>, vector<200x128xf32>
    tpu.vector_store %arg4[%c0_6, %c0_7], %7 {strides = array<i32>} : memref<200x128xf32, #tpu.memory_space<vmem>>, vector<200x128xf32>,
    return
  }
  func.func @transform_0(%arg0: i32) -> (i32, i32) {
    %c0_i32 = arith.constant 0 : i32
    %c0_i32_0 = arith.constant 0 : i32
    return %arg0, %c0_i32 : i32, i32
  }
  func.func @transform_1(%arg0: i32) -> (i32, i32) {
    %c0_i32 = arith.constant 0 : i32
    %c0_i32_0 = arith.constant 0 : i32
    %c0_i32_1 = arith.constant 0 : i32
    return %c0_i32, %c0_i32_0 : i32, i32
  }
  func.func @transform_2(%arg0: i32) -> (i32, i32) {
    %c0_i32 = arith.constant 0 : i32
    %c0_i32_0 = arith.constant 0 : i32
    %c0_i32_1 = arith.constant 0 : i32
    return %c0_i32, %c0_i32_0 : i32, i32
  }
  func.func @transform_3(%arg0: i32) -> (i32, i32) {
    %c0_i32 = arith.constant 0 : i32
    %c0_i32_0 = arith.constant 0 : i32
    return %arg0, %c0_i32 : i32, i32
  }
}

module attributes {stable_mosaic.version = 11 : i64} {
  func.func @_conv23_kernel(%arg0: i32, %arg1: memref<304x128xf32, #tpu.memory_space<vmem>>, %arg2: memref<9x128x64xf32, #tpu.memory_space<vmem>>, %arg3: memref<1x64xf32, #tpu.memory_space<vmem>>, %arg4: memref<64x3xf32, #tpu.memory_space<vmem>>, %arg5: memref<1x3xf32, #tpu.memory_space<vmem>>, %arg6: memref<256x3xf32, #tpu.memory_space<vmem>>) attributes {dimension_semantics = [#tpu.dimension_semantics<parallel>], iteration_bounds = array<i64: 2>, scalar_prefetch = 0 : i64, scratch_operands = 0 : i64, tpu.core_type = #tpu.core_type<tc>, window_params = [{transform_indices = @transform_0, window_bounds = array<i64: 304, 128>}, {pipeline_mode = #tpu.pipeline_mode<synchronous>, transform_indices = @transform_1, window_bounds = array<i64: 9, 128, 64>}, {pipeline_mode = #tpu.pipeline_mode<synchronous>, transform_indices = @transform_2, window_bounds = array<i64: 1, 64>}, {pipeline_mode = #tpu.pipeline_mode<synchronous>, transform_indices = @transform_3, window_bounds = array<i64: 64, 3>}, {pipeline_mode = #tpu.pipeline_mode<synchronous>, transform_indices = @transform_4, window_bounds = array<i64: 1, 3>}, {transform_indices = @transform_5, window_bounds = array<i64: 256, 3>}]} {
    %cst = arith.constant 0.000000e+00 : f32
    %0 = vector.broadcast %cst : f32 to vector<256x64xf32>
    %c0 = arith.constant 0 : index
    %c0_0 = arith.constant 0 : index
    %1 = vector.load %arg1[%c0, %c0_0] : memref<304x128xf32, #tpu.memory_space<vmem>>, vector<256x128xf32>
    %c0_1 = arith.constant 0 : index
    %c0_2 = arith.constant 0 : index
    %c0_3 = arith.constant 0 : index
    %2 = vector.load %arg2[%c0_1, %c0_2, %c0_3] : memref<9x128x64xf32, #tpu.memory_space<vmem>>, vector<1x128x64xf32>
    %3 = vector.shape_cast %2 : vector<1x128x64xf32> to vector<128x64xf32>
    %cst_4 = arith.constant dense<0.000000e+00> : vector<256x64xf32>
    %4 = tpu.matmul %1, %3, %cst_4 {dimension_numbers = #tpu.dot_dimension_numbers<[1], [0], [0], [1], [0, 0, 1, 1], [], []>} : vector<256x128xf32>, vector<128x64xf32>, vector<256x64xf32> -> vector<256x64xf32>
    %5 = arith.addf %0, %4 : vector<256x64xf32>
    %c1 = arith.constant 1 : index
    %c0_5 = arith.constant 0 : index
    %6 = vector.load %arg1[%c1, %c0_5] : memref<304x128xf32, #tpu.memory_space<vmem>>, vector<256x128xf32>
    %c1_6 = arith.constant 1 : index
    %c0_7 = arith.constant 0 : index
    %c0_8 = arith.constant 0 : index
    %7 = vector.load %arg2[%c1_6, %c0_7, %c0_8] : memref<9x128x64xf32, #tpu.memory_space<vmem>>, vector<1x128x64xf32>
    %8 = vector.shape_cast %7 : vector<1x128x64xf32> to vector<128x64xf32>
    %cst_9 = arith.constant dense<0.000000e+00> : vector<256x64xf32>
    %9 = tpu.matmul %6, %8, %cst_9 {dimension_numbers = #tpu.dot_dimension_numbers<[1], [0], [0], [1], [0, 0, 1, 1], [], []>} : vector<256x128xf32>, vector<128x64xf32>, vector<256x64xf32> -> vector<256x64xf32>
    %10 = arith.addf %5, %9 : vector<256x64xf32>
    %c2 = arith.constant 2 : index
    %c0_10 = arith.constant 0 : index
    %11 = vector.load %arg1[%c2, %c0_10] : memref<304x128xf32, #tpu.memory_space<vmem>>, vector<256x128xf32>
    %c2_11 = arith.constant 2 : index
    %c0_12 = arith.constant 0 : index
    %c0_13 = arith.constant 0 : index
    %12 = vector.load %arg2[%c2_11, %c0_12, %c0_13] : memref<9x128x64xf32, #tpu.memory_space<vmem>>, vector<1x128x64xf32>
    %13 = vector.shape_cast %12 : vector<1x128x64xf32> to vector<128x64xf32>
    %cst_14 = arith.constant dense<0.000000e+00> : vector<256x64xf32>
    %14 = tpu.matmul %11, %13, %cst_14 {dimension_numbers = #tpu.dot_dimension_numbers<[1], [0], [0], [1], [0, 0, 1, 1], [], []>} : vector<256x128xf32>, vector<128x64xf32>, vector<256x64xf32> -> vector<256x64xf32>
    %15 = arith.addf %10, %14 : vector<256x64xf32>
    %c16 = arith.constant 16 : index
    %c0_15 = arith.constant 0 : index
    %16 = vector.load %arg1[%c16, %c0_15] : memref<304x128xf32, #tpu.memory_space<vmem>>, vector<256x128xf32>
    %c3 = arith.constant 3 : index
    %c0_16 = arith.constant 0 : index
    %c0_17 = arith.constant 0 : index
    %17 = vector.load %arg2[%c3, %c0_16, %c0_17] : memref<9x128x64xf32, #tpu.memory_space<vmem>>, vector<1x128x64xf32>
    %18 = vector.shape_cast %17 : vector<1x128x64xf32> to vector<128x64xf32>
    %cst_18 = arith.constant dense<0.000000e+00> : vector<256x64xf32>
    %19 = tpu.matmul %16, %18, %cst_18 {dimension_numbers = #tpu.dot_dimension_numbers<[1], [0], [0], [1], [0, 0, 1, 1], [], []>} : vector<256x128xf32>, vector<128x64xf32>, vector<256x64xf32> -> vector<256x64xf32>
    %20 = arith.addf %15, %19 : vector<256x64xf32>
    %c17 = arith.constant 17 : index
    %c0_19 = arith.constant 0 : index
    %21 = vector.load %arg1[%c17, %c0_19] : memref<304x128xf32, #tpu.memory_space<vmem>>, vector<256x128xf32>
    %c4 = arith.constant 4 : index
    %c0_20 = arith.constant 0 : index
    %c0_21 = arith.constant 0 : index
    %22 = vector.load %arg2[%c4, %c0_20, %c0_21] : memref<9x128x64xf32, #tpu.memory_space<vmem>>, vector<1x128x64xf32>
    %23 = vector.shape_cast %22 : vector<1x128x64xf32> to vector<128x64xf32>
    %cst_22 = arith.constant dense<0.000000e+00> : vector<256x64xf32>
    %24 = tpu.matmul %21, %23, %cst_22 {dimension_numbers = #tpu.dot_dimension_numbers<[1], [0], [0], [1], [0, 0, 1, 1], [], []>} : vector<256x128xf32>, vector<128x64xf32>, vector<256x64xf32> -> vector<256x64xf32>
    %25 = arith.addf %20, %24 : vector<256x64xf32>
    %c18 = arith.constant 18 : index
    %c0_23 = arith.constant 0 : index
    %26 = vector.load %arg1[%c18, %c0_23] : memref<304x128xf32, #tpu.memory_space<vmem>>, vector<256x128xf32>
    %c5 = arith.constant 5 : index
    %c0_24 = arith.constant 0 : index
    %c0_25 = arith.constant 0 : index
    %27 = vector.load %arg2[%c5, %c0_24, %c0_25] : memref<9x128x64xf32, #tpu.memory_space<vmem>>, vector<1x128x64xf32>
    %28 = vector.shape_cast %27 : vector<1x128x64xf32> to vector<128x64xf32>
    %cst_26 = arith.constant dense<0.000000e+00> : vector<256x64xf32>
    %29 = tpu.matmul %26, %28, %cst_26 {dimension_numbers = #tpu.dot_dimension_numbers<[1], [0], [0], [1], [0, 0, 1, 1], [], []>} : vector<256x128xf32>, vector<128x64xf32>, vector<256x64xf32> -> vector<256x64xf32>
    %30 = arith.addf %25, %29 : vector<256x64xf32>
    %c32 = arith.constant 32 : index
    %c0_27 = arith.constant 0 : index
    %31 = vector.load %arg1[%c32, %c0_27] : memref<304x128xf32, #tpu.memory_space<vmem>>, vector<256x128xf32>
    %c6 = arith.constant 6 : index
    %c0_28 = arith.constant 0 : index
    %c0_29 = arith.constant 0 : index
    %32 = vector.load %arg2[%c6, %c0_28, %c0_29] : memref<9x128x64xf32, #tpu.memory_space<vmem>>, vector<1x128x64xf32>
    %33 = vector.shape_cast %32 : vector<1x128x64xf32> to vector<128x64xf32>
    %cst_30 = arith.constant dense<0.000000e+00> : vector<256x64xf32>
    %34 = tpu.matmul %31, %33, %cst_30 {dimension_numbers = #tpu.dot_dimension_numbers<[1], [0], [0], [1], [0, 0, 1, 1], [], []>} : vector<256x128xf32>, vector<128x64xf32>, vector<256x64xf32> -> vector<256x64xf32>
    %35 = arith.addf %30, %34 : vector<256x64xf32>
    %c33 = arith.constant 33 : index
    %c0_31 = arith.constant 0 : index
    %36 = vector.load %arg1[%c33, %c0_31] : memref<304x128xf32, #tpu.memory_space<vmem>>, vector<256x128xf32>
    %c7 = arith.constant 7 : index
    %c0_32 = arith.constant 0 : index
    %c0_33 = arith.constant 0 : index
    %37 = vector.load %arg2[%c7, %c0_32, %c0_33] : memref<9x128x64xf32, #tpu.memory_space<vmem>>, vector<1x128x64xf32>
    %38 = vector.shape_cast %37 : vector<1x128x64xf32> to vector<128x64xf32>
    %cst_34 = arith.constant dense<0.000000e+00> : vector<256x64xf32>
    %39 = tpu.matmul %36, %38, %cst_34 {dimension_numbers = #tpu.dot_dimension_numbers<[1], [0], [0], [1], [0, 0, 1, 1], [], []>} : vector<256x128xf32>, vector<128x64xf32>, vector<256x64xf32> -> vector<256x64xf32>
    %40 = arith.addf %35, %39 : vector<256x64xf32>
    %c34 = arith.constant 34 : index
    %c0_35 = arith.constant 0 : index
    %41 = vector.load %arg1[%c34, %c0_35] : memref<304x128xf32, #tpu.memory_space<vmem>>, vector<256x128xf32>
    %c8 = arith.constant 8 : index
    %c0_36 = arith.constant 0 : index
    %c0_37 = arith.constant 0 : index
    %42 = vector.load %arg2[%c8, %c0_36, %c0_37] : memref<9x128x64xf32, #tpu.memory_space<vmem>>, vector<1x128x64xf32>
    %43 = vector.shape_cast %42 : vector<1x128x64xf32> to vector<128x64xf32>
    %cst_38 = arith.constant dense<0.000000e+00> : vector<256x64xf32>
    %44 = tpu.matmul %41, %43, %cst_38 {dimension_numbers = #tpu.dot_dimension_numbers<[1], [0], [0], [1], [0, 0, 1, 1], [], []>} : vector<256x128xf32>, vector<128x64xf32>, vector<256x64xf32> -> vector<256x64xf32>
    %45 = arith.addf %40, %44 : vector<256x64xf32>
    %c0_39 = arith.constant 0 : index
    %c0_40 = arith.constant 0 : index
    %46 = vector.load %arg3[%c0_39, %c0_40] : memref<1x64xf32, #tpu.memory_space<vmem>>, vector<1x64xf32>
    %47 = vector.broadcast %46 : vector<1x64xf32> to vector<256x64xf32>
    %48 = arith.addf %45, %47 : vector<256x64xf32>
    %cst_41 = arith.constant 0.000000e+00 : f32
    %49 = vector.broadcast %cst_41 : f32 to vector<256x64xf32>
    %50 = arith.maximumf %48, %49 : vector<256x64xf32>
    %c0_42 = arith.constant 0 : index
    %c0_43 = arith.constant 0 : index
    %51 = vector.load %arg4[%c0_42, %c0_43] : memref<64x3xf32, #tpu.memory_space<vmem>>, vector<64x3xf32>
    %cst_44 = arith.constant dense<0.000000e+00> : vector<256x3xf32>
    %52 = tpu.matmul %50, %51, %cst_44 {dimension_numbers = #tpu.dot_dimension_numbers<[1], [0], [0], [1], [0, 0, 1, 1], [], []>} : vector<256x64xf32>, vector<64x3xf32>, vector<256x3xf32> -> vector<256x3xf32>
    %c0_45 = arith.constant 0 : index
    %c0_46 = arith.constant 0 : index
    %53 = vector.load %arg5[%c0_45, %c0_46] : memref<1x3xf32, #tpu.memory_space<vmem>>, vector<1x3xf32>
    %54 = vector.broadcast %53 : vector<1x3xf32> to vector<256x3xf32>
    %55 = arith.addf %52, %54 : vector<256x3xf32>
    %cst_47 = arith.constant 0.000000e+00 : f32
    %56 = vector.broadcast %cst_47 : f32 to vector<256x3xf32>
    %57 = arith.maximumf %55, %56 : vector<256x3xf32>
    %c0_48 = arith.constant 0 : index
    %c0_49 = arith.constant 0 : index
    %58 = vector.load %arg6[%c0_48, %c0_49] : memref<256x3xf32, #tpu.memory_space<vmem>>, vector<256x3xf32>
    tpu.vector_store %arg6[%c0_48, %c0_49], %57 {strides = array<i32>} : memref<256x3xf32, #tpu.memory_space<vmem>>, vector<256x3xf32>,
    return
  }
  func.func @transform_0(%arg0: i32) -> (i32, i32) {
    %c0_i32 = arith.constant 0 : i32
    %c0_i32_0 = arith.constant 0 : i32
    return %arg0, %c0_i32 : i32, i32
  }
  func.func @transform_1(%arg0: i32) -> (i32, i32, i32) {
    %c0_i32 = arith.constant 0 : i32
    %c0_i32_0 = arith.constant 0 : i32
    %c0_i32_1 = arith.constant 0 : i32
    %c0_i32_2 = arith.constant 0 : i32
    return %c0_i32, %c0_i32_0, %c0_i32_1 : i32, i32, i32
  }
  func.func @transform_2(%arg0: i32) -> (i32, i32) {
    %c0_i32 = arith.constant 0 : i32
    %c0_i32_0 = arith.constant 0 : i32
    %c0_i32_1 = arith.constant 0 : i32
    return %c0_i32, %c0_i32_0 : i32, i32
  }
  func.func @transform_3(%arg0: i32) -> (i32, i32) {
    %c0_i32 = arith.constant 0 : i32
    %c0_i32_0 = arith.constant 0 : i32
    %c0_i32_1 = arith.constant 0 : i32
    return %c0_i32, %c0_i32_0 : i32, i32
  }
  func.func @transform_4(%arg0: i32) -> (i32, i32) {
    %c0_i32 = arith.constant 0 : i32
    %c0_i32_0 = arith.constant 0 : i32
    %c0_i32_1 = arith.constant 0 : i32
    return %c0_i32, %c0_i32_0 : i32, i32
  }
  func.func @transform_5(%arg0: i32) -> (i32, i32) {
    %c0_i32 = arith.constant 0 : i32
    %c0_i32_0 = arith.constant 0 : i32
    return %arg0, %c0_i32 : i32, i32
  }
}

</mosaic_0001>

<llo_original>
// kernel: cnn_forward.2
$region0: #{cnn_forward.2}
  #allocation0 [shape = 'u32[]', space=smem, size = 0x4, offset = 0x4, fixed_abs, tag = 'smem constant byte address 0x4 - core index']
  #allocation1 [shape = 'u32[144,128]{1,0:T(1,128)}', space=vmem, size = 0x12000, scoped, tag = 'internal scratch']
  %s0 = inlined_call_operand.vmem [shape: f32[400,128], index: 0, kind: input, shape index: {}]
  %s1 = inlined_call_operand.vmem [shape: f32[128,128], index: 1, kind: input, shape index: {}]
  %s2 = inlined_call_operand.vmem [shape: f32[1,128], index: 2, kind: input, shape index: {}]
  %s3 = inlined_call_operand.vmem [shape: f32[400,128], index: 3, kind: output, shape index: {}]
  %s4 = sld [smem:[#allocation0]]
  $region45: #{cnn_forward.2} parent=0
    _
  %s6 = ssub.s32 1, %s4
  %s7 = scalar_select 0, %s6, %s4
  loop: start=0, step=1, limit=4
  $region2: #{cnn_forward.2} parent=0 // loop_pre_header
    _
  $region3: #{cnn_forward.2} parent=0 // loop_header
    %s9 = sphi 0, %s13
    %p10 = scmp.ge.s32.totalorder %s9, 4
    %s19 = sphi 0, %s21
    %s22 = sphi 0, %s19
    %s23 = sphi 0, %s22
    %s39 = sphi 0, %s23
    %s43 = sphi 0, %s43
    %s45 = sphi 0, %s43
    %s46 = sphi 0, %s45
    %s60 = sphi 0, %s46
    %s64 = sphi 0, %s64
    %s66 = sphi 0, %s64
    %s67 = sphi 0, %s66
    %s81 = sphi 0, %s67
    %s87 = sphi 0, %s89
    %s90 = sphi 0, %s87
    %s91 = sphi 0, %s90
    %s107 = sphi 0, %s91
  $region4: #{cnn_forward.2} parent=0 // loop_header_branch
    %12 = sbr.rel (%p10) target = $region8
  $region5: #{cnn_forward.2} parent=0 // loop_body
    %s14 = ssub.s32 %s9, 1
    %s15 = ssub.s32 %s9, 2
    %s16 = sadd.s32 %s9, 1
    %s17 = ssub.s32 %s9, %s16
    %p18 = scmp.eq.s32.totalorder %s17, 0
    %s20 = sadd.s32 %s19, 1
    %s21 = scalar_select %p18, %s19, %s20
    %p24 = pneg %p18
    %p25 = scmp.eq.s32.totalorder %s9, 1
    %p26 = por %p24, %p25
    %p27 = scmp.ne.s32.totalorder %s19, %s22
    %p28 = scmp.eq.s32.totalorder %s9, 0
    %p29 = por %p27, %p28
    %p30 = scmp.ne.s32.totalorder %s19, %s22
    %p31 = scmp.eq.s32.totalorder %s14, 1
    %p32 = por %p30, %p31
    %p33 = scmp.ne.s32.totalorder %s22, %s23
    %p34 = scmp.eq.s32.totalorder %s14, 0
    %p35 = por %p33, %p34
    %p36 = scmp.ne.s32.totalorder %s22, %s23
    %p37 = scmp.eq.s32.totalorder %s15, 1
    %p38 = por %p36, %p37
    %p40 = scmp.ne.s32.totalorder %s23, %s39
    %p41 = scmp.eq.s32.totalorder %s15, 0
    %p42 = por %p40, %p41
    %s44 = sadd.s32 %s43, 1
    %p47 = scmp.eq.s32.totalorder %s9, 1
    %p48 = scmp.ne.s32.totalorder %s43, %s45
    %p49 = scmp.eq.s32.totalorder %s9, 0
    %p50 = por %p48, %p49
    %p51 = scmp.ne.s32.totalorder %s43, %s45
    %p52 = scmp.eq.s32.totalorder %s14, 1
    %p53 = por %p51, %p52
    %p54 = scmp.ne.s32.totalorder %s45, %s46
    %p55 = scmp.eq.s32.totalorder %s14, 0
    %p56 = por %p54, %p55
    %p57 = scmp.ne.s32.totalorder %s45, %s46
    %p58 = scmp.eq.s32.totalorder %s15, 1
    %p59 = por %p57, %p58
    %p61 = scmp.ne.s32.totalorder %s46, %s60
    %p62 = scmp.eq.s32.totalorder %s15, 0
    %p63 = por %p61, %p62
    %s65 = sadd.s32 %s64, 1
    %p68 = scmp.eq.s32.totalorder %s9, 1
    %p69 = scmp.ne.s32.totalorder %s64, %s66
    %p70 = scmp.eq.s32.totalorder %s9, 0
    %p71 = por %p69, %p70
    %p72 = scmp.ne.s32.totalorder %s64, %s66
    %p73 = scmp.eq.s32.totalorder %s14, 1
    %p74 = por %p72, %p73
    %p75 = scmp.ne.s32.totalorder %s66, %s67
    %p76 = scmp.eq.s32.totalorder %s14, 0
    %p77 = por %p75, %p76
    %p78 = scmp.ne.s32.totalorder %s66, %s67
    %p79 = scmp.eq.s32.totalorder %s15, 1
    %p80 = por %p78, %p79
    %p82 = scmp.ne.s32.totalorder %s67, %s81
    %p83 = scmp.eq.s32.totalorder %s15, 0
    %p84 = por %p82, %p83
    %s85 = ssub.s32 %s9, %s16
    %p86 = scmp.eq.s32.totalorder %s85, 0
    %s88 = sadd.s32 %s87, 1
    %s89 = scalar_select %p86, %s87, %s88
    %p92 = pneg %p86
    %p93 = scmp.eq.s32.totalorder %s9, 1
    %p94 = por %p92, %p93
    %p95 = scmp.ne.s32.totalorder %s87, %s90
    %p96 = scmp.eq.s32.totalorder %s9, 0
    %p97 = por %p95, %p96
    %p98 = scmp.ne.s32.totalorder %s87, %s90
    %p99 = scmp.eq.s32.totalorder %s14, 1
    %p100 = por %p98, %p99
    %p101 = scmp.ne.s32.totalorder %s90, %s91
    %p102 = scmp.eq.s32.totalorder %s14, 0
    %p103 = por %p101, %p102
    %p104 = scmp.ne.s32.totalorder %s90, %s91
    %p105 = scmp.eq.s32.totalorder %s15, 1
    %p106 = por %p104, %p105
    %p108 = scmp.ne.s32.totalorder %s91, %s107
    %p109 = scmp.eq.s32.totalorder %s15, 0
    %p110 = por %p108, %p109
    %p111 = scmp.le.s32.totalorder 1, %s9
    %p112 = scmp.lt.s32.totalorder %s9, 3
    %p113 = pnand %p111, %p112
    %p114 = pneg %p113
    // Predicated region
    $region9: #{cnn_forward.2} parent=5 // pred_check
      _
    $region10: #{cnn_forward.2} parent=5 // pred_check_branch
      %116 = sbr.rel (%p113) target = $region12
    $region11: #{cnn_forward.2} parent=5 // pred_region
      %s117 = ssub.s32 %s9, 1
      // Predicated region
      $region13: #{cnn_forward.2} parent=11 // pred_check
        %p118 = pneg %p56
      $region14: #{cnn_forward.2} parent=11 // pred_check_branch
        %120 = sbr.rel (%p118) target = $region16
      $region15: #{cnn_forward.2} parent=11 // pred_region
        _
      $region16: #{cnn_forward.2} parent=11 // pred_fallthru
        _
      // Predicated region
      $region17: #{cnn_forward.2} parent=11 // pred_check
        %p121 = pneg %p77
      $region18: #{cnn_forward.2} parent=11 // pred_check_branch
        %123 = sbr.rel (%p121) target = $region20
      $region19: #{cnn_forward.2} parent=11 // pred_region
        _
      $region20: #{cnn_forward.2} parent=11 // pred_fallthru
        _
    $region12: #{cnn_forward.2} parent=5 // pred_fallthru
      _
    %p124 = scmp.lt.s32.totalorder %s9, 2
    // Predicated region
    $region21: #{cnn_forward.2} parent=5 // pred_check
      %p125 = pneg %p124
    $region22: #{cnn_forward.2} parent=5 // pred_check_branch
      %127 = sbr.rel (%p125) target = $region24
    $region23: #{cnn_forward.2} parent=5 // pred_region
      // Predicated region
      $region25: #{cnn_forward.2} parent=23 // pred_check
        %p128 = pneg %p29
      $region26: #{cnn_forward.2} parent=23 // pred_check_branch
        %130 = sbr.rel (%p128) target = $region28
      $region27: #{cnn_forward.2} parent=23 // pred_region
        %s131 = smul.u32 25, %s9
        %p132 = scmp.lt.s32.totalorder %s131, 49
        %s133 = scalar_select %p132, %s131, 49
        %s134 = smul.addr %s133, 8
        %s135 = scalar_lea.vmem %s0, %s134
        %s136 = smul.u32 25, %s9
      $region28: #{cnn_forward.2} parent=23 // pred_fallthru
        _
    $region24: #{cnn_forward.2} parent=5 // pred_fallthru
      _
    %p137 = scmp.le.s32.totalorder 1, %s9
    %p138 = scmp.lt.s32.totalorder %s9, 3
    %p139 = pnand %p137, %p138
    %p140 = pneg %p139
    // Predicated region
    $region29: #{cnn_forward.2} parent=5 // pred_check
      _
    $region30: #{cnn_forward.2} parent=5 // pred_check_branch
      %142 = sbr.rel (%p139) target = $region32
    $region31: #{cnn_forward.2} parent=5 // pred_region
      %s143 = ssub.s32 %s9, 1
      %s144 = smul.u32 25, %s14
      %p145 = scmp.lt.s32.totalorder %s144, 49
      %s146 = scalar_select %p145, %s144, 49
      %s147 = smul.addr %s146, 8
      %s148 = scalar_lea.vmem %s0, %s147
      %p149 = pneg %p35
      %p150 = pneg %p32
      %p151 = pneg %p56
      %p152 = pneg %p53
      %p153 = pneg %p77
      %p154 = pneg %p74
      %p155 = pneg %p103
      %p156 = pneg %p100
      %s157 = smul.u32 25, %s14
      %p158 = scmp.lt.s32.totalorder %s157, 49
      %s159 = scalar_select %p158, %s157, 49
      %s160 = smul.addr %s159, 8
      %s161 = scalar_lea.vmem %s3, %s160
      %s162 = smul.u32 25, %s14
      %p163 = scmp.lt.s32.totalorder %s162, 49
      %s164 = scalar_select %p163, %s162, 49
      %s165 = smul.addr %s164, 8
      %s166 = scalar_lea.vmem %s0, %s165
      %s167 = smul.u32 25, %s14
      %s168 = smul.u32 25, %s14
      %p169 = scmp.lt.s32.totalorder %s168, 49
      %s170 = scalar_select %p169, %s168, 49
      %s171 = smul.addr %s170, 8
      %s172 = scalar_lea.vmem %s3, %s171
      %s173 = smul.u32 25, %s14
      %v174 = vld [vmem:[%s166] sm:$0xff]
      %v175 = vld [vmem:[%s166 + $0x8] sm:$0xff]
      %v176 = vld [vmem:[%s166 + $0x10] sm:$0xff]
      %v177 = vld [vmem:[%s166 + $0x18] sm:$0xff]
      %v178 = vld [vmem:[%s166 + $0x20] sm:$0xff]
      %v179 = vld [vmem:[%s166 + $0x28] sm:$0xff]
      %v180 = vld [vmem:[%s166 + $0x30] sm:$0xff]
      %v181 = vld [vmem:[%s166 + $0x38] sm:$0xff]
      %v182 = vld [vmem:[%s166 + $0x40] sm:$0xff]
      %v183 = vld [vmem:[%s166 + $0x48] sm:$0xff]
      %v184 = vld [vmem:[%s166 + $0x50] sm:$0xff]
      %v185 = vld [vmem:[%s166 + $0x58] sm:$0xff]
      %v186 = vld [vmem:[%s166 + $0x60] sm:$0xff]
      %v187 = vld [vmem:[%s166 + $0x68] sm:$0xff]
      %v188 = vld [vmem:[%s166 + $0x70] sm:$0xff]
      %v189 = vld [vmem:[%s166 + $0x78] sm:$0xff]
      %v190 = vld [vmem:[%s166 + $0x80] sm:$0xff]
      %v191 = vld [vmem:[%s166 + $0x88] sm:$0xff]
      %v192 = vld [vmem:[%s166 + $0x90] sm:$0xff]
      %v193 = vld [vmem:[%s166 + $0x98] sm:$0xff]
      %v194 = vld [vmem:[%s166 + $0xa0] sm:$0xff]
      %v195 = vld [vmem:[%s166 + $0xa8] sm:$0xff]
      %v196 = vld [vmem:[%s166 + $0xb0] sm:$0xff]
      %v197 = vld [vmem:[%s166 + $0xb8] sm:$0xff]
      %v198 = vld [vmem:[%s166 + $0xc0] sm:$0xff]
      %v199 = vld [vmem:[%s1] sm:$0xff]
      %v200 = vld [vmem:[%s1 + $0x8] sm:$0xff]
      %v201 = vld [vmem:[%s1 + $0x10] sm:$0xff]
      %v202 = vld [vmem:[%s1 + $0x18] sm:$0xff]
      %v203 = vld [vmem:[%s1 + $0x20] sm:$0xff]
      %v204 = vld [vmem:[%s1 + $0x28] sm:$0xff]
      %v205 = vld [vmem:[%s1 + $0x30] sm:$0xff]
      %v206 = vld [vmem:[%s1 + $0x38] sm:$0xff]
      %v207 = vld [vmem:[%s1 + $0x40] sm:$0xff]
      %v208 = vld [vmem:[%s1 + $0x48] sm:$0xff]
      %v209 = vld [vmem:[%s1 + $0x50] sm:$0xff]
      %v210 = vld [vmem:[%s1 + $0x58] sm:$0xff]
      %v211 = vld [vmem:[%s1 + $0x60] sm:$0xff]
      %v212 = vld [vmem:[%s1 + $0x68] sm:$0xff]
      %v213 = vld [vmem:[%s1 + $0x70] sm:$0xff]
      %v214 = vld [vmem:[%s1 + $0x78] sm:$0xff]
      %v215 = vld [vmem:[%s2] sm:$0x1]
      %v217 = vlaneseq
      %v218 = vshrl.u32 %v217, 7
      %v219 = vsub.s32 0, %v218
      %v220 = vrot.slane %v215, %v219
      %222 = vmatprep.subr.mxu0 0.0
      %223 = vmatpush1.msra.mxu0 %v199
      %224 = vmatprep.subr.mxu0 0.0
      %225 = vmatpush1.msra.mxu0 %v200
      %226 = vmatprep.subr.mxu0 0.0
      %227 = vmatpush1.msra.mxu0 %v201
      %228 = vmatprep.subr.mxu0 0.0
      %229 = vmatpush1.msra.mxu0 %v202
      %230 = vmatprep.subr.mxu0 0.0
      %231 = vmatpush1.msra.mxu0 %v203
      %232 = vmatprep.subr.mxu0 0.0
      %233 = vmatpush1.msra.mxu0 %v204
      %234 = vmatprep.subr.mxu0 0.0
      %235 = vmatpush1.msra.mxu0 %v205
      %236 = vmatprep.subr.mxu0 0.0
      %237 = vmatpush1.msra.mxu0 %v206
      %238 = vmatprep.subr.mxu0 0.0
      %239 = vmatpush1.msra.mxu0 %v207
      %240 = vmatprep.subr.mxu0 0.0
      %241 = vmatpush1.msra.mxu0 %v208
      %242 = vmatprep.subr.mxu0 0.0
      %243 = vmatpush1.msra.mxu0 %v209
      %244 = vmatprep.subr.mxu0 0.0
      %245 = vmatpush1.msra.mxu0 %v210
      %246 = vmatprep.subr.mxu0 0.0
      %247 = vmatpush1.msra.mxu0 %v211
      %248 = vmatprep.subr.mxu0 0.0
      %249 = vmatpush1.msra.mxu0 %v212
      %250 = vmatprep.subr.mxu0 0.0
      %251 = vmatpush1.msra.mxu0 %v213
      %252 = vmatprep.subr.mxu0 0.0
      %253 = vmatpush1.msra.mxu0 %v214
      %254 = vmatprep.subr.mxu0 0.0
      %255 = vmatpush1.msra.mxu0 0.0
      %256 = vmatprep.subr.mxu0 0.0
      %257 = vmatpush1.msra.mxu0 0.0
      %258 = vmatprep.subr.mxu0 0.0
      %259 = vmatpush1.msra.mxu0 0.0
      %260 = vmatprep.subr.mxu0 0.0
      %261 = vmatpush1.msra.mxu0 0.0
      %262 = vmatprep.subr.mxu0 0.0
      %263 = vmatpush1.msra.mxu0 0.0
      %264 = vmatprep.subr.mxu0 0.0
      %265 = vmatpush1.msra.mxu0 0.0
      %266 = vmatprep.subr.mxu0 0.0
      %267 = vmatpush1.msra.mxu0 0.0
      %268 = vmatprep.subr.mxu0 0.0
      %269 = vmatpush1.msra.mxu0 0.0
      %270 = vmatprep.subr.mxu0 0.0
      %271 = vmatpush1.msra.mxu0 0.0
      %272 = vmatprep.subr.mxu0 0.0
      %273 = vmatpush1.msra.mxu0 0.0
      %274 = vmatprep.subr.mxu0 0.0
      %275 = vmatpush1.msra.mxu0 0.0
      %276 = vmatprep.subr.mxu0 0.0
      %277 = vmatpush1.msra.mxu0 0.0
      %278 = vmatprep.subr.mxu0 0.0
      %279 = vmatpush1.msra.mxu0 0.0
      %280 = vmatprep.subr.mxu0 0.0
      %281 = vmatpush1.msra.mxu0 0.0
      %282 = vmatprep.subr.mxu0 0.0
      %283 = vmatpush1.msra.mxu0 0.0
      %284 = vmatprep.subr.mxu0 0.0
      %285 = vmatpush1.msra.mxu0 0.0
      %286 = vmatprep.mubr.f32.mxu0 0.0
      %287 = vmatmul.mubr.f32.gmra.mrb[0].mxu0 %v174
      %v288 = vpop.f32.mrb[0].mxu0
      %v289 = vadd.f32 %v220, %v288
      %v290 = vpop.f32.mrb[0].mxu0
      %291 = vmatprep.mubr.f32.mxu0 0.0
      %292 = vmatmul.mubr.f32.gmra.mrb[0].mxu0 %v175
      %v293 = vpop.f32.mrb[0].mxu0
      %v294 = vadd.f32 %v220, %v293
      %v295 = vpop.f32.mrb[0].mxu0
      %296 = vmatprep.mubr.f32.mxu0 0.0
      %297 = vmatmul.mubr.f32.gmra.mrb[0].mxu0 %v176
      %v298 = vpop.f32.mrb[0].mxu0
      %v299 = vadd.f32 %v220, %v298
      %v300 = vpop.f32.mrb[0].mxu0
      %301 = vmatprep.mubr.f32.mxu0 0.0
      %302 = vmatmul.mubr.f32.gmra.mrb[0].mxu0 %v177
      %v303 = vpop.f32.mrb[0].mxu0
      %v304 = vadd.f32 %v220, %v303
      %v305 = vpop.f32.mrb[0].mxu0
      %306 = vmatprep.mubr.f32.mxu0 0.0
      %307 = vmatmul.mubr.f32.gmra.mrb[0].mxu0 %v178
      %v308 = vpop.f32.mrb[0].mxu0
      %v309 = vadd.f32 %v220, %v308
      %v310 = vpop.f32.mrb[0].mxu0
      %311 = vmatprep.mubr.f32.mxu0 0.0
      %312 = vmatmul.mubr.f32.gmra.mrb[0].mxu0 %v179
      %v313 = vpop.f32.mrb[0].mxu0
      %v314 = vadd.f32 %v220, %v313
      %v315 = vpop.f32.mrb[0].mxu0
      %316 = vmatprep.mubr.f32.mxu0 0.0
      %317 = vmatmul.mubr.f32.gmra.mrb[0].mxu0 %v180
      %v318 = vpop.f32.mrb[0].mxu0
      %v319 = vadd.f32 %v220, %v318
      %v320 = vpop.f32.mrb[0].mxu0
      %321 = vmatprep.mubr.f32.mxu0 0.0
      %322 = vmatmul.mubr.f32.gmra.mrb[0].mxu0 %v181
      %v323 = vpop.f32.mrb[0].mxu0
      %v324 = vadd.f32 %v220, %v323
      %v325 = vpop.f32.mrb[0].mxu0
      %326 = vmatprep.mubr.f32.mxu0 0.0
      %327 = vmatmul.mubr.f32.gmra.mrb[0].mxu0 %v182
      %v328 = vpop.f32.mrb[0].mxu0
      %v329 = vadd.f32 %v220, %v328
      %v330 = vpop.f32.mrb[0].mxu0
      %331 = vmatprep.mubr.f32.mxu0 0.0
      %332 = vmatmul.mubr.f32.gmra.mrb[0].mxu0 %v183
      %v333 = vpop.f32.mrb[0].mxu0
      %v334 = vadd.f32 %v220, %v333
      %v335 = vpop.f32.mrb[0].mxu0
      %336 = vmatprep.mubr.f32.mxu0 0.0
      %337 = vmatmul.mubr.f32.gmra.mrb[0].mxu0 %v184
      %v338 = vpop.f32.mrb[0].mxu0
      %v339 = vadd.f32 %v220, %v338
      %v340 = vpop.f32.mrb[0].mxu0
      %341 = vmatprep.mubr.f32.mxu0 0.0
      %342 = vmatmul.mubr.f32.gmra.mrb[0].mxu0 %v185
      %v343 = vpop.f32.mrb[0].mxu0
      %v344 = vadd.f32 %v220, %v343
      %v345 = vpop.f32.mrb[0].mxu0
      %346 = vmatprep.mubr.f32.mxu0 0.0
      %347 = vmatmul.mubr.f32.gmra.mrb[0].mxu0 %v186
      %v348 = vpop.f32.mrb[0].mxu0
      %v349 = vadd.f32 %v220, %v348
      %v350 = vpop.f32.mrb[0].mxu0
      %351 = vmatprep.mubr.f32.mxu0 0.0
      %352 = vmatmul.mubr.f32.gmra.mrb[0].mxu0 %v187
      %v353 = vpop.f32.mrb[0].mxu0
      %v354 = vadd.f32 %v220, %v353
      %v355 = vpop.f32.mrb[0].mxu0
      %356 = vmatprep.mubr.f32.mxu0 0.0
      %357 = vmatmul.mubr.f32.gmra.mrb[0].mxu0 %v188
      %v358 = vpop.f32.mrb[0].mxu0
      %v359 = vadd.f32 %v220, %v358
      %v360 = vpop.f32.mrb[0].mxu0
      %361 = vmatprep.mubr.f32.mxu0 0.0
      %362 = vmatmul.mubr.f32.gmra.mrb[0].mxu0 %v189
      %v363 = vpop.f32.mrb[0].mxu0
      %v364 = vadd.f32 %v220, %v363
      %v365 = vpop.f32.mrb[0].mxu0
      %366 = vmatprep.mubr.f32.mxu0 0.0
      %367 = vmatmul.mubr.f32.gmra.mrb[0].mxu0 %v190
      %v368 = vpop.f32.mrb[0].mxu0
      %v369 = vadd.f32 %v220, %v368
      %v370 = vpop.f32.mrb[0].mxu0
      %371 = vmatprep.mubr.f32.mxu0 0.0
      %372 = vmatmul.mubr.f32.gmra.mrb[0].mxu0 %v191
      %v373 = vpop.f32.mrb[0].mxu0
      %v374 = vadd.f32 %v220, %v373
      %v375 = vpop.f32.mrb[0].mxu0
      %376 = vmatprep.mubr.f32.mxu0 0.0
      %377 = vmatmul.mubr.f32.gmra.mrb[0].mxu0 %v192
      %v378 = vpop.f32.mrb[0].mxu0
      %v379 = vadd.f32 %v220, %v378
      %v380 = vpop.f32.mrb[0].mxu0
      %381 = vmatprep.mubr.f32.mxu0 0.0
      %382 = vmatmul.mubr.f32.gmra.mrb[0].mxu0 %v193
      %v383 = vpop.f32.mrb[0].mxu0
      %v384 = vadd.f32 %v220, %v383
      %v385 = vpop.f32.mrb[0].mxu0
      %386 = vmatprep.mubr.f32.mxu0 0.0
      %387 = vmatmul.mubr.f32.gmra.mrb[0].mxu0 %v194
      %v388 = vpop.f32.mrb[0].mxu0
      %v389 = vadd.f32 %v220, %v388
      %v390 = vpop.f32.mrb[0].mxu0
      %391 = vmatprep.mubr.f32.mxu0 0.0
      %392 = vmatmul.mubr.f32.gmra.mrb[0].mxu0 %v195
      %v393 = vpop.f32.mrb[0].mxu0
      %v394 = vadd.f32 %v220, %v393
      %v395 = vpop.f32.mrb[0].mxu0
      %396 = vmatprep.mubr.f32.mxu0 0.0
      %397 = vmatmul.mubr.f32.gmra.mrb[0].mxu0 %v196
      %v398 = vpop.f32.mrb[0].mxu0
      %v399 = vadd.f32 %v220, %v398
      %v400 = vpop.f32.mrb[0].mxu0
      %401 = vmatprep.mubr.f32.mxu0 0.0
      %402 = vmatmul.mubr.f32.gmra.mrb[0].mxu0 %v197
      %v403 = vpop.f32.mrb[0].mxu0
      %v404 = vadd.f32 %v220, %v403
      %v405 = vpop.f32.mrb[0].mxu0
      %406 = vmatprep.mubr.f32.mxu0 0.0
      %407 = vmatmul.mubr.f32.gmra.mrb[0].mxu0 %v198
      %v408 = vpop.f32.mrb[0].mxu0
      %v409 = vadd.f32 %v220, %v408
      %v410 = vpop.f32.mrb[0].mxu0
      %411 = vdwg.mxu0
      %v412 = vmax.f32 %v289, 0.0
      %v413 = vmax.f32 %v294, 0.0
      %v414 = vmax.f32 %v299, 0.0
      %v415 = vmax.f32 %v304, 0.0
      %v416 = vmax.f32 %v309, 0.0
      %v417 = vmax.f32 %v314, 0.0
      %v418 = vmax.f32 %v319, 0.0
      %v419 = vmax.f32 %v324, 0.0
      %v420 = vmax.f32 %v329, 0.0
      %v421 = vmax.f32 %v334, 0.0
      %v422 = vmax.f32 %v339, 0.0
      %v423 = vmax.f32 %v344, 0.0
      %v424 = vmax.f32 %v349, 0.0
      %v425 = vmax.f32 %v354, 0.0
      %v426 = vmax.f32 %v359, 0.0
      %v427 = vmax.f32 %v364, 0.0
      %v428 = vmax.f32 %v369, 0.0
      %v429 = vmax.f32 %v374, 0.0
      %v430 = vmax.f32 %v379, 0.0
      %v431 = vmax.f32 %v384, 0.0
      %v432 = vmax.f32 %v389, 0.0
      %v433 = vmax.f32 %v394, 0.0
      %v434 = vmax.f32 %v399, 0.0
      %v435 = vmax.f32 %v404, 0.0
      %v436 = vmax.f32 %v409, 0.0
      %437 = vst [vmem:[%s172] sm:$0xff] %v412
      %438 = vst [vmem:[%s172 + $0x8] sm:$0xff] %v413
      %439 = vst [vmem:[%s172 + $0x10] sm:$0xff] %v414
      %440 = vst [vmem:[%s172 + $0x18] sm:$0xff] %v415
      %441 = vst [vmem:[%s172 + $0x20] sm:$0xff] %v416
      %442 = vst [vmem:[%s172 + $0x28] sm:$0xff] %v417
      %443 = vst [vmem:[%s172 + $0x30] sm:$0xff] %v418
      %444 = vst [vmem:[%s172 + $0x38] sm:$0xff] %v419
      %445 = vst [vmem:[%s172 + $0x40] sm:$0xff] %v420
      %446 = vst [vmem:[%s172 + $0x48] sm:$0xff] %v421
      %447 = vst [vmem:[%s172 + $0x50] sm:$0xff] %v422
      %448 = vst [vmem:[%s172 + $0x58] sm:$0xff] %v423
      %449 = vst [vmem:[%s172 + $0x60] sm:$0xff] %v424
      %450 = vst [vmem:[%s172 + $0x68] sm:$0xff] %v425
      %451 = vst [vmem:[%s172 + $0x70] sm:$0xff] %v426
      %452 = vst [vmem:[%s172 + $0x78] sm:$0xff] %v427
      %453 = vst [vmem:[%s172 + $0x80] sm:$0xff] %v428
      %454 = vst [vmem:[%s172 + $0x88] sm:$0xff] %v429
      %455 = vst [vmem:[%s172 + $0x90] sm:$0xff] %v430
      %456 = vst [vmem:[%s172 + $0x98] sm:$0xff] %v431
      %457 = vst [vmem:[%s172 + $0xa0] sm:$0xff] %v432
      %458 = vst [vmem:[%s172 + $0xa8] sm:$0xff] %v433
      %459 = vst [vmem:[%s172 + $0xb0] sm:$0xff] %v434
      %460 = vst [vmem:[%s172 + $0xb8] sm:$0xff] %v435
      %461 = vst [vmem:[%s172 + $0xc0] sm:$0xff] %v436
      %s462 = smul.u32 25, %s14
      %p463 = scmp.lt.s32.totalorder %s462, 49
      %s464 = scalar_select %p463, %s462, 49
      %s465 = smul.addr %s464, 8
      %s466 = scalar_lea.vmem %s3, %s465
      // Predicated region
      $region33: #{cnn_forward.2} parent=31 // pred_check
        %p467 = pneg %p100
      $region34: #{cnn_forward.2} parent=31 // pred_check_branch
        %469 = sbr.rel (%p467) target = $region36
      $region35: #{cnn_forward.2} parent=31 // pred_region
        %s470 = smul.u32 25, %s14
      $region36: #{cnn_forward.2} parent=31 // pred_fallthru
        _
    $region32: #{cnn_forward.2} parent=5 // pred_fallthru
      _
    %p471 = scmp.le.s32.totalorder 2, %s9
    // Predicated region
    $region37: #{cnn_forward.2} parent=5 // pred_check
      %p472 = pneg %p471
    $region38: #{cnn_forward.2} parent=5 // pred_check_branch
      %474 = sbr.rel (%p472) target = $region40
    $region39: #{cnn_forward.2} parent=5 // pred_region
      %s475 = ssub.s32 %s9, 2
      // Predicated region
      $region41: #{cnn_forward.2} parent=39 // pred_check
        %p476 = pneg %p106
      $region42: #{cnn_forward.2} parent=39 // pred_check_branch
        %478 = sbr.rel (%p476) target = $region44
      $region43: #{cnn_forward.2} parent=39 // pred_region
        %s479 = smul.u32 25, %s15
        %p480 = scmp.lt.s32.totalorder %s479, 49
        %s481 = scalar_select %p480, %s479, 49
        %s482 = smul.addr %s481, 8
        %s483 = scalar_lea.vmem %s3, %s482
      $region44: #{cnn_forward.2} parent=39 // pred_fallthru
        _
    $region40: #{cnn_forward.2} parent=5 // pred_fallthru
      _
  $region6: #{cnn_forward.2} parent=0 // loop_footer
    %s13 = sadd.s32 1, %s9
  $region7: #{cnn_forward.2} parent=0 // loop_footer_branch
    %8 = sbr.rel target = $region3
  $region8: #{cnn_forward.2} parent=0 // loop_exit
    _

// kernel: cnn_forward.3
$region0: #{cnn_forward.3}
  #allocation0 [shape = 'u32[]', space=smem, size = 0x4, offset = 0x4, fixed_abs, tag = 'smem constant byte address 0x4 - core index']
  #allocation1 [shape = 'u32[144,128]{1,0:T(1,128)}', space=vmem, size = 0x12000, scoped, tag = 'internal scratch']
  %s0 = inlined_call_operand.vmem [shape: f32[608,128], index: 0, kind: input, shape index: {}]
  %s1 = inlined_call_operand.vmem [shape: f32[9,128,64], index: 1, kind: input, shape index: {}]
  %s2 = inlined_call_operand.vmem [shape: f32[1,64], index: 2, kind: input, shape index: {}]
  %s3 = inlined_call_operand.vmem [shape: f32[64,3], index: 3, kind: input, shape index: {}]
  %s4 = inlined_call_operand.vmem [shape: f32[1,3], index: 4, kind: input, shape index: {}]
  %s5 = inlined_call_operand.vmem [shape: f32[512,3], index: 5, kind: output, shape index: {}]
  %s6 = sld [smem:[#allocation0]]
  $region53: #{cnn_forward.3} parent=0
    _
  %s8 = ssub.s32 1, %s6
  %s9 = scalar_select 0, %s8, %s6
  loop: start=0, step=1, limit=4
  $region2: #{cnn_forward.3} parent=0 // loop_pre_header
    _
  $region3: #{cnn_forward.3} parent=0 // loop_header
    %s11 = sphi 0, %s15
    %p12 = scmp.ge.s32.totalorder %s11, 4
    %s21 = sphi 0, %s23
    %s24 = sphi 0, %s21
    %s25 = sphi 0, %s24
    %s41 = sphi 0, %s25
    %s45 = sphi 0, %s45
    %s47 = sphi 0, %s45
    %s48 = sphi 0, %s47
    %s62 = sphi 0, %s48
    %s66 = sphi 0, %s66
    %s68 = sphi 0, %s66
    %s69 = sphi 0, %s68
    %s83 = sphi 0, %s69
    %s87 = sphi 0, %s87
    %s89 = sphi 0, %s87
    %s90 = sphi 0, %s89
    %s104 = sphi 0, %s90
    %s108 = sphi 0, %s108
    %s110 = sphi 0, %s108
    %s111 = sphi 0, %s110
    %s125 = sphi 0, %s111
    %s131 = sphi 0, %s133
    %s134 = sphi 0, %s131
    %s135 = sphi 0, %s134
    %s151 = sphi 0, %s135
  $region4: #{cnn_forward.3} parent=0 // loop_header_branch
    %14 = sbr.rel (%p12) target = $region8
  $region5: #{cnn_forward.3} parent=0 // loop_body
    %s16 = ssub.s32 %s11, 1
    %s17 = ssub.s32 %s11, 2
    %s18 = sadd.s32 %s11, 1
    %s19 = ssub.s32 %s11, %s18
    %p20 = scmp.eq.s32.totalorder %s19, 0
    %s22 = sadd.s32 %s21, 1
    %s23 = scalar_select %p20, %s21, %s22
    %p26 = pneg %p20
    %p27 = scmp.eq.s32.totalorder %s11, 1
    %p28 = por %p26, %p27
    %p29 = scmp.ne.s32.totalorder %s21, %s24
    %p30 = scmp.eq.s32.totalorder %s11, 0
    %p31 = por %p29, %p30
    %p32 = scmp.ne.s32.totalorder %s21, %s24
    %p33 = scmp.eq.s32.totalorder %s16, 1
    %p34 = por %p32, %p33
    %p35 = scmp.ne.s32.totalorder %s24, %s25
    %p36 = scmp.eq.s32.totalorder %s16, 0
    %p37 = por %p35, %p36
    %p38 = scmp.ne.s32.totalorder %s24, %s25
    %p39 = scmp.eq.s32.totalorder %s17, 1
    %p40 = por %p38, %p39
    %p42 = scmp.ne.s32.totalorder %s25, %s41
    %p43 = scmp.eq.s32.totalorder %s17, 0
    %p44 = por %p42, %p43
    %s46 = sadd.s32 %s45, 1
    %p49 = scmp.eq.s32.totalorder %s11, 1
    %p50 = scmp.ne.s32.totalorder %s45, %s47
    %p51 = scmp.eq.s32.totalorder %s11, 0
    %p52 = por %p50, %p51
    %p53 = scmp.ne.s32.totalorder %s45, %s47
    %p54 = scmp.eq.s32.totalorder %s16, 1
    %p55 = por %p53, %p54
    %p56 = scmp.ne.s32.totalorder %s47, %s48
    %p57 = scmp.eq.s32.totalorder %s16, 0
    %p58 = por %p56, %p57
    %p59 = scmp.ne.s32.totalorder %s47, %s48
    %p60 = scmp.eq.s32.totalorder %s17, 1
    %p61 = por %p59, %p60
    %p63 = scmp.ne.s32.totalorder %s48, %s62
    %p64 = scmp.eq.s32.totalorder %s17, 0
    %p65 = por %p63, %p64
    %s67 = sadd.s32 %s66, 1
    %p70 = scmp.eq.s32.totalorder %s11, 1
    %p71 = scmp.ne.s32.totalorder %s66, %s68
    %p72 = scmp.eq.s32.totalorder %s11, 0
    %p73 = por %p71, %p72
    %p74 = scmp.ne.s32.totalorder %s66, %s68
    %p75 = scmp.eq.s32.totalorder %s16, 1
    %p76 = por %p74, %p75
    %p77 = scmp.ne.s32.totalorder %s68, %s69
    %p78 = scmp.eq.s32.totalorder %s16, 0
    %p79 = por %p77, %p78
    %p80 = scmp.ne.s32.totalorder %s68, %s69
    %p81 = scmp.eq.s32.totalorder %s17, 1
    %p82 = por %p80, %p81
    %p84 = scmp.ne.s32.totalorder %s69, %s83
    %p85 = scmp.eq.s32.totalorder %s17, 0
    %p86 = por %p84, %p85
    %s88 = sadd.s32 %s87, 1
    %p91 = scmp.eq.s32.totalorder %s11, 1
    %p92 = scmp.ne.s32.totalorder %s87, %s89
    %p93 = scmp.eq.s32.totalorder %s11, 0
    %p94 = por %p92, %p93
    %p95 = scmp.ne.s32.totalorder %s87, %s89
    %p96 = scmp.eq.s32.totalorder %s16, 1
    %p97 = por %p95, %p96
    %p98 = scmp.ne.s32.totalorder %s89, %s90
    %p99 = scmp.eq.s32.totalorder %s16, 0
    %p100 = por %p98, %p99
    %p101 = scmp.ne.s32.totalorder %s89, %s90
    %p102 = scmp.eq.s32.totalorder %s17, 1
    %p103 = por %p101, %p102
    %p105 = scmp.ne.s32.totalorder %s90, %s104
    %p106 = scmp.eq.s32.totalorder %s17, 0
    %p107 = por %p105, %p106
    %s109 = sadd.s32 %s108, 1
    %p112 = scmp.eq.s32.totalorder %s11, 1
    %p113 = scmp.ne.s32.totalorder %s108, %s110
    %p114 = scmp.eq.s32.totalorder %s11, 0
    %p115 = por %p113, %p114
    %p116 = scmp.ne.s32.totalorder %s108, %s110
    %p117 = scmp.eq.s32.totalorder %s16, 1
    %p118 = por %p116, %p117
    %p119 = scmp.ne.s32.totalorder %s110, %s111
    %p120 = scmp.eq.s32.totalorder %s16, 0
    %p121 = por %p119, %p120
    %p122 = scmp.ne.s32.totalorder %s110, %s111
    %p123 = scmp.eq.s32.totalorder %s17, 1
    %p124 = por %p122, %p123
    %p126 = scmp.ne.s32.totalorder %s111, %s125
    %p127 = scmp.eq.s32.totalorder %s17, 0
    %p128 = por %p126, %p127
    %s129 = ssub.s32 %s11, %s18
    %p130 = scmp.eq.s32.totalorder %s129, 0
    %s132 = sadd.s32 %s131, 1
    %s133 = scalar_select %p130, %s131, %s132
    %p136 = pneg %p130
    %p137 = scmp.eq.s32.totalorder %s11, 1
    %p138 = por %p136, %p137
    %p139 = scmp.ne.s32.totalorder %s131, %s134
    %p140 = scmp.eq.s32.totalorder %s11, 0
    %p141 = por %p139, %p140
    %p142 = scmp.ne.s32.totalorder %s131, %s134
    %p143 = scmp.eq.s32.totalorder %s16, 1
    %p144 = por %p142, %p143
    %p145 = scmp.ne.s32.totalorder %s134, %s135
    %p146 = scmp.eq.s32.totalorder %s16, 0
    %p147 = por %p145, %p146
    %p148 = scmp.ne.s32.totalorder %s134, %s135
    %p149 = scmp.eq.s32.totalorder %s17, 1
    %p150 = por %p148, %p149
    %p152 = scmp.ne.s32.totalorder %s135, %s151
    %p153 = scmp.eq.s32.totalorder %s17, 0
    %p154 = por %p152, %p153
    %p155 = scmp.le.s32.totalorder 1, %s11
    %p156 = scmp.lt.s32.totalorder %s11, 3
    %p157 = pnand %p155, %p156
    %p158 = pneg %p157
    // Predicated region
    $region9: #{cnn_forward.3} parent=5 // pred_check
      _
    $region10: #{cnn_forward.3} parent=5 // pred_check_branch
      %160 = sbr.rel (%p157) target = $region12
    $region11: #{cnn_forward.3} parent=5 // pred_region
      %s161 = ssub.s32 %s11, 1
      // Predicated region
      $region13: #{cnn_forward.3} parent=11 // pred_check
        %p162 = pneg %p58
      $region14: #{cnn_forward.3} parent=11 // pred_check_branch
        %164 = sbr.rel (%p162) target = $region16
      $region15: #{cnn_forward.3} parent=11 // pred_region
        _
      $region16: #{cnn_forward.3} parent=11 // pred_fallthru
        _
      // Predicated region
      $region17: #{cnn_forward.3} parent=11 // pred_check
        %p165 = pneg %p79
      $region18: #{cnn_forward.3} parent=11 // pred_check_branch
        %167 = sbr.rel (%p165) target = $region20
      $region19: #{cnn_forward.3} parent=11 // pred_region
        _
      $region20: #{cnn_forward.3} parent=11 // pred_fallthru
        _
      // Predicated region
      $region21: #{cnn_forward.3} parent=11 // pred_check
        %p168 = pneg %p100
      $region22: #{cnn_forward.3} parent=11 // pred_check_branch
        %170 = sbr.rel (%p168) target = $region24
      $region23: #{cnn_forward.3} parent=11 // pred_region
        _
      $region24: #{cnn_forward.3} parent=11 // pred_fallthru
        _
      // Predicated region
      $region25: #{cnn_forward.3} parent=11 // pred_check
        %p171 = pneg %p121
      $region26: #{cnn_forward.3} parent=11 // pred_check_branch
        %173 = sbr.rel (%p171) target = $region28
      $region27: #{cnn_forward.3} parent=11 // pred_region
        _
      $region28: #{cnn_forward.3} parent=11 // pred_fallthru
        _
    $region12: #{cnn_forward.3} parent=5 // pred_fallthru
      _
    %p174 = scmp.lt.s32.totalorder %s11, 2
    // Predicated region
    $region29: #{cnn_forward.3} parent=5 // pred_check
      %p175 = pneg %p174
    $region30: #{cnn_forward.3} parent=5 // pred_check_branch
      %177 = sbr.rel (%p175) target = $region32
    $region31: #{cnn_forward.3} parent=5 // pred_region
      // Predicated region
      $region33: #{cnn_forward.3} parent=31 // pred_check
        %p178 = pneg %p31
      $region34: #{cnn_forward.3} parent=31 // pred_check_branch
        %180 = sbr.rel (%p178) target = $region36
      $region35: #{cnn_forward.3} parent=31 // pred_region
        %s181 = smul.u32 38, %s11
        %p182 = scmp.lt.s32.totalorder %s181, 75
        %s183 = scalar_select %p182, %s181, 75
        %s184 = smul.addr %s183, 8
        %s185 = scalar_lea.vmem %s0, %s184
        %s186 = smul.u32 38, %s11
      $region36: #{cnn_forward.3} parent=31 // pred_fallthru
        _
    $region32: #{cnn_forward.3} parent=5 // pred_fallthru
      _
    %p187 = scmp.le.s32.totalorder 1, %s11
    %p188 = scmp.lt.s32.totalorder %s11, 3
    %p189 = pnand %p187, %p188
    %p190 = pneg %p189
    // Predicated region
    $region37: #{cnn_forward.3} parent=5 // pred_check
      _
    $region38: #{cnn_forward.3} parent=5 // pred_check_branch
      %192 = sbr.rel (%p189) target = $region40
    $region39: #{cnn_forward.3} parent=5 // pred_region
      %s193 = ssub.s32 %s11, 1
      %s194 = smul.u32 38, %s16
      %p195 = scmp.lt.s32.totalorder %s194, 75
      %s196 = scalar_select %p195, %s194, 75
      %s197 = smul.addr %s196, 8
      %s198 = scalar_lea.vmem %s0, %s197
      %p199 = pneg %p37
      %p200 = pneg %p34
      %p201 = pneg %p58
      %p202 = pneg %p55
      %p203 = pneg %p79
      %p204 = pneg %p76
      %p205 = pneg %p100
      %p206 = pneg %p97
      %p207 = pneg %p121
      %p208 = pneg %p118
      %p209 = pneg %p147
      %p210 = pneg %p144
      %s211 = smul.u32 32, %s16
      %p212 = scmp.lt.s32.totalorder %s211, 63
      %s213 = scalar_select %p212, %s211, 63
      %s214 = smul.addr %s213, 8
      %s215 = scalar_lea.vmem %s5, %s214
      %s216 = smul.u32 38, %s16
      %p217 = scmp.lt.s32.totalorder %s216, 75
      %s218 = scalar_select %p217, %s216, 75
      %s219 = smul.addr %s218, 8
      %s220 = scalar_lea.vmem %s0, %s219
      %s221 = smul.u32 38, %s16
      %s222 = smul.u32 32, %s16
      %p223 = scmp.lt.s32.totalorder %s222, 63
      %s224 = scalar_select %p223, %s222, 63
      %s225 = smul.addr %s224, 8
      %s226 = scalar_lea.vmem %s5, %s225
      %s227 = smul.u32 32, %s16
      %v228 = vld [vmem:[%s220] sm:$0xff]
      %v229 = vld [vmem:[%s220 + $0x8] sm:$0xff]
      %v230 = vld [vmem:[%s220 + $0x10] sm:$0xff]
      %v231 = vld [vmem:[%s220 + $0x18] sm:$0xff]
      %v232 = vld [vmem:[%s220 + $0x20] sm:$0xff]
      %v233 = vld [vmem:[%s220 + $0x28] sm:$0xff]
      %v234 = vld [vmem:[%s220 + $0x30] sm:$0xff]
      %v235 = vld [vmem:[%s220 + $0x38] sm:$0xff]
      %v236 = vld [vmem:[%s220 + $0x40] sm:$0xff]
      %v237 = vld [vmem:[%s220 + $0x48] sm:$0xff]
      %v238 = vld [vmem:[%s220 + $0x50] sm:$0xff]
      %v239 = vld [vmem:[%s220 + $0x58] sm:$0xff]
      %v240 = vld [vmem:[%s220 + $0x60] sm:$0xff]
      %v241 = vld [vmem:[%s220 + $0x68] sm:$0xff]
      %v242 = vld [vmem:[%s220 + $0x70] sm:$0xff]
      %v243 = vld [vmem:[%s220 + $0x78] sm:$0xff]
      %v244 = vld [vmem:[%s220 + $0x80] sm:$0xff]
      %v245 = vld [vmem:[%s220 + $0x88] sm:$0xff]
      %v246 = vld [vmem:[%s220 + $0x90] sm:$0xff]
      %v247 = vld [vmem:[%s220 + $0x98] sm:$0xff]
      %v248 = vld [vmem:[%s220 + $0xa0] sm:$0xff]
      %v249 = vld [vmem:[%s220 + $0xa8] sm:$0xff]
      %v250 = vld [vmem:[%s220 + $0xb0] sm:$0xff]
      %v251 = vld [vmem:[%s220 + $0xb8] sm:$0xff]
      %v252 = vld [vmem:[%s220 + $0xc0] sm:$0xff]
      %v253 = vld [vmem:[%s220 + $0xc8] sm:$0xff]
      %v254 = vld [vmem:[%s220 + $0xd0] sm:$0xff]
      %v255 = vld [vmem:[%s220 + $0xd8] sm:$0xff]
      %v256 = vld [vmem:[%s220 + $0xe0] sm:$0xff]
      %v257 = vld [vmem:[%s220 + $0xe8] sm:$0xff]
      %v258 = vld [vmem:[%s220 + $0xf0] sm:$0xff]
      %v259 = vld [vmem:[%s220 + $0xf8] sm:$0xff]
      %v260 = vld [vmem:[%s1] sm:$0xff]
      %v261 = vld [vmem:[%s1 + $0x8] sm:$0xff]
      %v262 = vld [vmem:[%s1 + $0x10] sm:$0xff]
      %v263 = vld [vmem:[%s1 + $0x18] sm:$0xff]
      %v264 = vld [vmem:[%s1 + $0x20] sm:$0xff]
      %v265 = vld [vmem:[%s1 + $0x28] sm:$0xff]
      %v266 = vld [vmem:[%s1 + $0x30] sm:$0xff]
      %v267 = vld [vmem:[%s1 + $0x38] sm:$0xff]
      %v268 = vld [vmem:[%s1 + $0x40] sm:$0xff]
      %v269 = vld [vmem:[%s1 + $0x48] sm:$0xff]
      %v270 = vld [vmem:[%s1 + $0x50] sm:$0xff]
      %v271 = vld [vmem:[%s1 + $0x58] sm:$0xff]
      %v272 = vld [vmem:[%s1 + $0x60] sm:$0xff]
      %v273 = vld [vmem:[%s1 + $0x68] sm:$0xff]
      %v274 = vld [vmem:[%s1 + $0x70] sm:$0xff]
      %v275 = vld [vmem:[%s1 + $0x78] sm:$0xff]
      %v276 = vld [vmem:[%s220 + $0x1] sm:$0xff]
      %v277 = vld [vmem:[%s220 + $0x9] sm:$0xff]
      %v278 = vld [vmem:[%s220 + $0x11] sm:$0xff]
      %v279 = vld [vmem:[%s220 + $0x19] sm:$0xff]
      %v280 = vld [vmem:[%s220 + $0x21] sm:$0xff]
      %v281 = vld [vmem:[%s220 + $0x29] sm:$0xff]
      %v282 = vld [vmem:[%s220 + $0x31] sm:$0xff]
      %v283 = vld [vmem:[%s220 + $0x39] sm:$0xff]
      %v284 = vld [vmem:[%s220 + $0x41] sm:$0xff]
      %v285 = vld [vmem:[%s220 + $0x49] sm:$0xff]
      %v286 = vld [vmem:[%s220 + $0x51] sm:$0xff]
      %v287 = vld [vmem:[%s220 + $0x59] sm:$0xff]
      %v288 = vld [vmem:[%s220 + $0x61] sm:$0xff]
      %v289 = vld [vmem:[%s220 + $0x69] sm:$0xff]
      %v290 = vld [vmem:[%s220 + $0x71] sm:$0xff]
      %v291 = vld [vmem:[%s220 + $0x79] sm:$0xff]
      %v292 = vld [vmem:[%s220 + $0x81] sm:$0xff]
      %v293 = vld [vmem:[%s220 + $0x89] sm:$0xff]
      %v294 = vld [vmem:[%s220 + $0x91] sm:$0xff]
      %v295 = vld [vmem:[%s220 + $0x99] sm:$0xff]
      %v296 = vld [vmem:[%s220 + $0xa1] sm:$0xff]
      %v297 = vld [vmem:[%s220 + $0xa9] sm:$0xff]
      %v298 = vld [vmem:[%s220 + $0xb1] sm:$0xff]
      %v299 = vld [vmem:[%s220 + $0xb9] sm:$0xff]
      %v300 = vld [vmem:[%s220 + $0xc1] sm:$0xff]
      %v301 = vld [vmem:[%s220 + $0xc9] sm:$0xff]
      %v302 = vld [vmem:[%s220 + $0xd1] sm:$0xff]
      %v303 = vld [vmem:[%s220 + $0xd9] sm:$0xff]
      %v304 = vld [vmem:[%s220 + $0xe1] sm:$0xff]
      %v305 = vld [vmem:[%s220 + $0xe9] sm:$0xff]
      %v306 = vld [vmem:[%s220 + $0xf1] sm:$0xff]
      %v307 = vld [vmem:[%s220 + $0xf9] sm:$0xff]
      %s308 = scalar_lea.vmem %s1, 128
      %v309 = vld [vmem:[%s308] sm:$0xff]
      %v310 = vld [vmem:[%s308 + $0x8] sm:$0xff]
      %v311 = vld [vmem:[%s308 + $0x10] sm:$0xff]
      %v312 = vld [vmem:[%s308 + $0x18] sm:$0xff]
      %v313 = vld [vmem:[%s308 + $0x20] sm:$0xff]
      %v314 = vld [vmem:[%s308 + $0x28] sm:$0xff]
      %v315 = vld [vmem:[%s308 + $0x30] sm:$0xff]
      %v316 = vld [vmem:[%s308 + $0x38] sm:$0xff]
      %v317 = vld [vmem:[%s308 + $0x40] sm:$0xff]
      %v318 = vld [vmem:[%s308 + $0x48] sm:$0xff]
      %v319 = vld [vmem:[%s308 + $0x50] sm:$0xff]
      %v320 = vld [vmem:[%s308 + $0x58] sm:$0xff]
      %v321 = vld [vmem:[%s308 + $0x60] sm:$0xff]
      %v322 = vld [vmem:[%s308 + $0x68] sm:$0xff]
      %v323 = vld [vmem:[%s308 + $0x70] sm:$0xff]
      %v324 = vld [vmem:[%s308 + $0x78] sm:$0xff]
      %325 = vmatprep.subr.mxu0 0.0
      %326 = vmatpush1.msra.mxu0 %v309
      %327 = vmatprep.subr.mxu0 0.0
      %328 = vmatpush1.msra.mxu0 %v310
      %329 = vmatprep.subr.mxu0 0.0
      %330 = vmatpush1.msra.mxu0 %v311
      %331 = vmatprep.subr.mxu0 0.0
      %332 = vmatpush1.msra.mxu0 %v312
      %333 = vmatprep.subr.mxu0 0.0
      %334 = vmatpush1.msra.mxu0 %v313
      %335 = vmatprep.subr.mxu0 0.0
      %336 = vmatpush1.msra.mxu0 %v314
      %337 = vmatprep.subr.mxu0 0.0
      %338 = vmatpush1.msra.mxu0 %v315
      %339 = vmatprep.subr.mxu0 0.0
      %340 = vmatpush1.msra.mxu0 %v316
      %341 = vmatprep.subr.mxu0 0.0
      %342 = vmatpush1.msra.mxu0 %v317
      %343 = vmatprep.subr.mxu0 0.0
      %344 = vmatpush1.msra.mxu0 %v318
      %345 = vmatprep.subr.mxu0 0.0
      %346 = vmatpush1.msra.mxu0 %v319
      %347 = vmatprep.subr.mxu0 0.0
      %348 = vmatpush1.msra.mxu0 %v320
      %349 = vmatprep.subr.mxu0 0.0
      %350 = vmatpush1.msra.mxu0 %v321
      %351 = vmatprep.subr.mxu0 0.0
      %352 = vmatpush1.msra.mxu0 %v322
      %353 = vmatprep.subr.mxu0 0.0
      %354 = vmatpush1.msra.mxu0 %v323
      %355 = vmatprep.subr.mxu0 0.0
      %356 = vmatpush1.msra.mxu0 %v324
      %357 = vmatprep.subr.mxu0 0.0
      %358 = vmatpush1.msra.mxu0 0.0
      %359 = vmatprep.subr.mxu0 0.0
      %360 = vmatpush1.msra.mxu0 0.0
      %361 = vmatprep.subr.mxu0 0.0
      %362 = vmatpush1.msra.mxu0 0.0
      %363 = vmatprep.subr.mxu0 0.0
      %364 = vmatpush1.msra.mxu0 0.0
      %365 = vmatprep.subr.mxu0 0.0
      %366 = vmatpush1.msra.mxu0 0.0
      %367 = vmatprep.subr.mxu0 0.0
      %368 = vmatpush1.msra.mxu0 0.0
      %369 = vmatprep.subr.mxu0 0.0
      %370 = vmatpush1.msra.mxu0 0.0
      %371 = vmatprep.subr.mxu0 0.0
      %372 = vmatpush1.msra.mxu0 0.0
      %373 = vmatprep.subr.mxu0 0.0
      %374 = vmatpush1.msra.mxu0 0.0
      %375 = vmatprep.subr.mxu0 0.0
      %376 = vmatpush1.msra.mxu0 0.0
      %377 = vmatprep.subr.mxu0 0.0
      %378 = vmatpush1.msra.mxu0 0.0
      %379 = vmatprep.subr.mxu0 0.0
      %380 = vmatpush1.msra.mxu0 0.0
      %381 = vmatprep.subr.mxu0 0.0
      %382 = vmatpush1.msra.mxu0 0.0
      %383 = vmatprep.subr.mxu0 0.0
      %384 = vmatpush1.msra.mxu0 0.0
      %385 = vmatprep.subr.mxu0 0.0
      %386 = vmatpush1.msra.mxu0 0.0
      %387 = vmatprep.subr.mxu0 0.0
      %388 = vmatpush1.msra.mxu0 0.0
      %389 = vmatprep.mubr.f32.mxu0 0.0
      %390 = vmatmul.mubr.f32.gmra.mrb[0].mxu0 %v276
      %v391 = vpop.f32.mrb[0].mxu0
      %v392 = vadd.f32 0.0, %v391
      %v393 = vpop.f32.mrb[0].mxu0
      %394 = vmatprep.mubr.f32.mxu0 0.0
      %395 = vmatmul.mubr.f32.gmra.mrb[0].mxu0 %v277
      %v396 = vpop.f32.mrb[0].mxu0
      %v397 = vadd.f32 0.0, %v396
      %v398 = vpop.f32.mrb[0].mxu0
      %399 = vmatprep.mubr.f32.mxu0 0.0
      %400 = vmatmul.mubr.f32.gmra.mrb[0].mxu0 %v278
      %v401 = vpop.f32.mrb[0].mxu0
      %v402 = vadd.f32 0.0, %v401
      %v403 = vpop.f32.mrb[0].mxu0
      %404 = vmatprep.mubr.f32.mxu0 0.0
      %405 = vmatmul.mubr.f32.gmra.mrb[0].mxu0 %v279
      %v406 = vpop.f32.mrb[0].mxu0
      %v407 = vadd.f32 0.0, %v406
      %v408 = vpop.f32.mrb[0].mxu0
      %409 = vmatprep.mubr.f32.mxu0 0.0
      %410 = vmatmul.mubr.f32.gmra.mrb[0].mxu0 %v280
      %v411 = vpop.f32.mrb[0].mxu0
      %v412 = vadd.f32 0.0, %v411
      %v413 = vpop.f32.mrb[0].mxu0
      %414 = vmatprep.mubr.f32.mxu0 0.0
      %415 = vmatmul.mubr.f32.gmra.mrb[0].mxu0 %v281
      %v416 = vpop.f32.mrb[0].mxu0
      %v417 = vadd.f32 0.0, %v416
      %v418 = vpop.f32.mrb[0].mxu0
      %419 = vmatprep.mubr.f32.mxu0 0.0
      %420 = vmatmul.mubr.f32.gmra.mrb[0].mxu0 %v282
      %v421 = vpop.f32.mrb[0].mxu0
      %v422 = vadd.f32 0.0, %v421
      %v423 = vpop.f32.mrb[0].mxu0
      %424 = vmatprep.mubr.f32.mxu0 0.0
      %425 = vmatmul.mubr.f32.gmra.mrb[0].mxu0 %v283
      %v426 = vpop.f32.mrb[0].mxu0
      %v427 = vadd.f32 0.0, %v426
      %v428 = vpop.f32.mrb[0].mxu0
      %429 = vmatprep.mubr.f32.mxu0 0.0
      %430 = vmatmul.mubr.f32.gmra.mrb[0].mxu0 %v284
      %v431 = vpop.f32.mrb[0].mxu0
      %v432 = vadd.f32 0.0, %v431
      %v433 = vpop.f32.mrb[0].mxu0
      %434 = vmatprep.mubr.f32.mxu0 0.0
      %435 = vmatmul.mubr.f32.gmra.mrb[0].mxu0 %v285
      %v436 = vpop.f32.mrb[0].mxu0
      %v437 = vadd.f32 0.0, %v436
      %v438 = vpop.f32.mrb[0].mxu0
      %439 = vmatprep.mubr.f32.mxu0 0.0
      %440 = vmatmul.mubr.f32.gmra.mrb[0].mxu0 %v286
      %v441 = vpop.f32.mrb[0].mxu0
      %v442 = vadd.f32 0.0, %v441
      %v443 = vpop.f32.mrb[0].mxu0
      %444 = vmatprep.mubr.f32.mxu0 0.0
      %445 = vmatmul.mubr.f32.gmra.mrb[0].mxu0 %v287
      %v446 = vpop.f32.mrb[0].mxu0
      %v447 = vadd.f32 0.0, %v446
      %v448 = vpop.f32.mrb[0].mxu0
      %449 = vmatprep.mubr.f32.mxu0 0.0
      %450 = vmatmul.mubr.f32.gmra.mrb[0].mxu0 %v288
      %v451 = vpop.f32.mrb[0].mxu0
      %v452 = vadd.f32 0.0, %v451
      %v453 = vpop.f32.mrb[0].mxu0
      %454 = vmatprep.mubr.f32.mxu0 0.0
      %455 = vmatmul.mubr.f32.gmra.mrb[0].mxu0 %v289
      %v456 = vpop.f32.mrb[0].mxu0
      %v457 = vadd.f32 0.0, %v456
      %v458 = vpop.f32.mrb[0].mxu0
      %459 = vmatprep.mubr.f32.mxu0 0.0
      %460 = vmatmul.mubr.f32.gmra.mrb[0].mxu0 %v290
      %v461 = vpop.f32.mrb[0].mxu0
      %v462 = vadd.f32 0.0, %v461
      %v463 = vpop.f32.mrb[0].mxu0
      %464 = vmatprep.mubr.f32.mxu0 0.0
      %465 = vmatmul.mubr.f32.gmra.mrb[0].mxu0 %v291
      %v466 = vpop.f32.mrb[0].mxu0
      %v467 = vadd.f32 0.0, %v466
      %v468 = vpop.f32.mrb[0].mxu0
      %469 = vmatprep.mubr.f32.mxu0 0.0
      %470 = vmatmul.mubr.f32.gmra.mrb[0].mxu0 %v292
      %v471 = vpop.f32.mrb[0].mxu0
      %v472 = vadd.f32 0.0, %v471
      %v473 = vpop.f32.mrb[0].mxu0
      %474 = vmatprep.mubr.f32.mxu0 0.0
      %475 = vmatmul.mubr.f32.gmra.mrb[0].mxu0 %v293
      %v476 = vpop.f32.mrb[0].mxu0
      %v477 = vadd.f32 0.0, %v476
      %v478 = vpop.f32.mrb[0].mxu0
      %479 = vmatprep.mubr.f32.mxu0 0.0
      %480 = vmatmul.mubr.f32.gmra.mrb[0].mxu0 %v294
      %v481 = vpop.f32.mrb[0].mxu0
      %v482 = vadd.f32 0.0, %v481
      %v483 = vpop.f32.mrb[0].mxu0
      %484 = vmatprep.mubr.f32.mxu0 0.0
      %485 = vmatmul.mubr.f32.gmra.mrb[0].mxu0 %v295
      %v486 = vpop.f32.mrb[0].mxu0
      %v487 = vadd.f32 0.0, %v486
      %v488 = vpop.f32.mrb[0].mxu0
      %489 = vmatprep.mubr.f32.mxu0 0.0
      %490 = vmatmul.mubr.f32.gmra.mrb[0].mxu0 %v296
      %v491 = vpop.f32.mrb[0].mxu0
      %v492 = vadd.f32 0.0, %v491
      %v493 = vpop.f32.mrb[0].mxu0
      %494 = vmatprep.mubr.f32.mxu0 0.0
      %495 = vmatmul.mubr.f32.gmra.mrb[0].mxu0 %v297
      %v496 = vpop.f32.mrb[0].mxu0
      %v497 = vadd.f32 0.0, %v496
      %v498 = vpop.f32.mrb[0].mxu0
      %499 = vmatprep.mubr.f32.mxu0 0.0
      %500 = vmatmul.mubr.f32.gmra.mrb[0].mxu0 %v298
      %v501 = vpop.f32.mrb[0].mxu0
      %v502 = vadd.f32 0.0, %v501
      %v503 = vpop.f32.mrb[0].mxu0
      %504 = vmatprep.mubr.f32.mxu0 0.0
      %505 = vmatmul.mubr.f32.gmra.mrb[0].mxu0 %v299
      %v506 = vpop.f32.mrb[0].mxu0
      %v507 = vadd.f32 0.0, %v506
      %v508 = vpop.f32.mrb[0].mxu0
      %509 = vmatprep.mubr.f32.mxu0 0.0
      %510 = vmatmul.mubr.f32.gmra.mrb[0].mxu0 %v300
      %v511 = vpop.f32.mrb[0].mxu0
      %v512 = vadd.f32 0.0, %v511
      %v513 = vpop.f32.mrb[0].mxu0
      %514 = vmatprep.mubr.f32.mxu0 0.0
      %515 = vmatmul.mubr.f32.gmra.mrb[0].mxu0 %v301
      %v516 = vpop.f32.mrb[0].mxu0
      %v517 = vadd.f32 0.0, %v516
      %v518 = vpop.f32.mrb[0].mxu0
      %519 = vmatprep.mubr.f32.mxu0 0.0
      %520 = vmatmul.mubr.f32.gmra.mrb[0].mxu0 %v302
      %v521 = vpop.f32.mrb[0].mxu0
      %v522 = vadd.f32 0.0, %v521
      %v523 = vpop.f32.mrb[0].mxu0
      %524 = vmatprep.mubr.f32.mxu0 0.0
      %525 = vmatmul.mubr.f32.gmra.mrb[0].mxu0 %v303
      %v526 = vpop.f32.mrb[0].mxu0
      %v527 = vadd.f32 0.0, %v526
      %v528 = vpop.f32.mrb[0].mxu0
      %529 = vmatprep.mubr.f32.mxu0 0.0
      %530 = vmatmul.mubr.f32.gmra.mrb[0].mxu0 %v304
      %v531 = vpop.f32.mrb[0].mxu0
      %v532 = vadd.f32 0.0, %v531
      %v533 = vpop.f32.mrb[0].mxu0
      %534 = vmatprep.mubr.f32.mxu0 0.0
      %535 = vmatmul.mubr.f32.gmra.mrb[0].mxu0 %v305
      %v536 = vpop.f32.mrb[0].mxu0
      %v537 = vadd.f32 0.0, %v536
      %v538 = vpop.f32.mrb[0].mxu0
      %539 = vmatprep.mubr.f32.mxu0 0.0
      %540 = vmatmul.mubr.f32.gmra.mrb[0].mxu0 %v306
      %v541 = vpop.f32.mrb[0].mxu0
      %v542 = vadd.f32 0.0, %v541
      %v543 = vpop.f32.mrb[0].mxu0
      %544 = vmatprep.mubr.f32.mxu0 0.0
      %545 = vmatmul.mubr.f32.gmra.mrb[0].mxu0 %v307
      %v546 = vpop.f32.mrb[0].mxu0
      %v547 = vadd.f32 0.0, %v546
      %v548 = vpop.f32.mrb[0].mxu0
      %549 = vdwg.mxu0
      %550 = vmatprep.subr.mxu0 0.0
      %551 = vmatpush1.msra.mxu0 %v260
      %552 = vmatprep.subr.mxu0 0.0
      %553 = vmatpush1.msra.mxu0 %v261
      %554 = vmatprep.subr.mxu0 0.0
      %555 = vmatpush1.msra.mxu0 %v262
      %556 = vmatprep.subr.mxu0 0.0
      %557 = vmatpush1.msra.mxu0 %v263
      %558 = vmatprep.subr.mxu0 0.0
      %559 = vmatpush1.msra.mxu0 %v264
      %560 = vmatprep.subr.mxu0 0.0
      %561 = vmatpush1.msra.mxu0 %v265
      %562 = vmatprep.subr.mxu0 0.0
      %563 = vmatpush1.msra.mxu0 %v266
      %564 = vmatprep.subr.mxu0 0.0
      %565 = vmatpush1.msra.mxu0 %v267
      %566 = vmatprep.subr.mxu0 0.0
      %567 = vmatpush1.msra.mxu0 %v268
      %568 = vmatprep.subr.mxu0 0.0
      %569 = vmatpush1.msra.mxu0 %v269
      %570 = vmatprep.subr.mxu0 0.0
      %571 = vmatpush1.msra.mxu0 %v270
      %572 = vmatprep.subr.mxu0 0.0
      %573 = vmatpush1.msra.mxu0 %v271
      %574 = vmatprep.subr.mxu0 0.0
      %575 = vmatpush1.msra.mxu0 %v272
      %576 = vmatprep.subr.mxu0 0.0
      %577 = vmatpush1.msra.mxu0 %v273
      %578 = vmatprep.subr.mxu0 0.0
      %579 = vmatpush1.msra.mxu0 %v274
      %580 = vmatprep.subr.mxu0 0.0
      %581 = vmatpush1.msra.mxu0 %v275
      %582 = vmatprep.subr.mxu0 0.0
      %583 = vmatpush1.msra.mxu0 0.0
      %584 = vmatprep.subr.mxu0 0.0
      %585 = vmatpush1.msra.mxu0 0.0
      %586 = vmatprep.subr.mxu0 0.0
      %587 = vmatpush1.msra.mxu0 0.0
      %588 = vmatprep.subr.mxu0 0.0
      %589 = vmatpush1.msra.mxu0 0.0
      %590 = vmatprep.subr.mxu0 0.0
      %591 = vmatpush1.msra.mxu0 0.0
      %592 = vmatprep.subr.mxu0 0.0
      %593 = vmatpush1.msra.mxu0 0.0
      %594 = vmatprep.subr.mxu0 0.0
      %595 = vmatpush1.msra.mxu0 0.0
      %596 = vmatprep.subr.mxu0 0.0
      %597 = vmatpush1.msra.mxu0 0.0
      %598 = vmatprep.subr.mxu0 0.0
      %599 = vmatpush1.msra.mxu0 0.0
      %600 = vmatprep.subr.mxu0 0.0
      %601 = vmatpush1.msra.mxu0 0.0
      %602 = vmatprep.subr.mxu0 0.0
      %603 = vmatpush1.msra.mxu0 0.0
      %604 = vmatprep.subr.mxu0 0.0
      %605 = vmatpush1.msra.mxu0 0.0
      %606 = vmatprep.subr.mxu0 0.0
      %607 = vmatpush1.msra.mxu0 0.0
      %608 = vmatprep.subr.mxu0 0.0
      %609 = vmatpush1.msra.mxu0 0.0
      %610 = vmatprep.subr.mxu0 0.0
      %611 = vmatpush1.msra.mxu0 0.0
      %612 = vmatprep.subr.mxu0 0.0
      %613 = vmatpush1.msra.mxu0 0.0
      %614 = vmatprep.mubr.f32.mxu0 0.0
      %615 = vmatmul.mubr.f32.gmra.mrb[0].mxu0 %v228
      %v616 = vpop.f32.mrb[0].mxu0
      %v617 = vadd.f32 %v392, %v616
      %v618 = vpop.f32.mrb[0].mxu0
      %619 = vmatprep.mubr.f32.mxu0 0.0
      %620 = vmatmul.mubr.f32.gmra.mrb[0].mxu0 %v229
      %v621 = vpop.f32.mrb[0].mxu0
      %v622 = vadd.f32 %v397, %v621
      %v623 = vpop.f32.mrb[0].mxu0
      %624 = vmatprep.mubr.f32.mxu0 0.0
      %625 = vmatmul.mubr.f32.gmra.mrb[0].mxu0 %v230
      %v626 = vpop.f32.mrb[0].mxu0
      %v627 = vadd.f32 %v402, %v626
      %v628 = vpop.f32.mrb[0].mxu0
      %629 = vmatprep.mubr.f32.mxu0 0.0
      %630 = vmatmul.mubr.f32.gmra.mrb[0].mxu0 %v231
      %v631 = vpop.f32.mrb[0].mxu0
      %v632 = vadd.f32 %v407, %v631
      %v633 = vpop.f32.mrb[0].mxu0
      %634 = vmatprep.mubr.f32.mxu0 0.0
      %635 = vmatmul.mubr.f32.gmra.mrb[0].mxu0 %v232
      %v636 = vpop.f32.mrb[0].mxu0
      %v637 = vadd.f32 %v412, %v636
      %v638 = vpop.f32.mrb[0].mxu0
      %639 = vmatprep.mubr.f32.mxu0 0.0
      %640 = vmatmul.mubr.f32.gmra.mrb[0].mxu0 %v233
      %v641 = vpop.f32.mrb[0].mxu0
      %v642 = vadd.f32 %v417, %v641
      %v643 = vpop.f32.mrb[0].mxu0
      %644 = vmatprep.mubr.f32.mxu0 0.0
      %645 = vmatmul.mubr.f32.gmra.mrb[0].mxu0 %v234
      %v646 = vpop.f32.mrb[0].mxu0
      %v647 = vadd.f32 %v422, %v646
      %v648 = vpop.f32.mrb[0].mxu0
      %649 = vmatprep.mubr.f32.mxu0 0.0
      %650 = vmatmul.mubr.f32.gmra.mrb[0].mxu0 %v235
      %v651 = vpop.f32.mrb[0].mxu0
      %v652 = vadd.f32 %v427, %v651
      %v653 = vpop.f32.mrb[0].mxu0
      %654 = vmatprep.mubr.f32.mxu0 0.0
      %655 = vmatmul.mubr.f32.gmra.mrb[0].mxu0 %v236
      %v656 = vpop.f32.mrb[0].mxu0
      %v657 = vadd.f32 %v432, %v656
      %v658 = vpop.f32.mrb[0].mxu0
      %659 = vmatprep.mubr.f32.mxu0 0.0
      %660 = vmatmul.mubr.f32.gmra.mrb[0].mxu0 %v237
      %v661 = vpop.f32.mrb[0].mxu0
      %v662 = vadd.f32 %v437, %v661
      %v663 = vpop.f32.mrb[0].mxu0
      %664 = vmatprep.mubr.f32.mxu0 0.0
      %665 = vmatmul.mubr.f32.gmra.mrb[0].mxu0 %v238
      %v666 = vpop.f32.mrb[0].mxu0
      %v667 = vadd.f32 %v442, %v666
      %v668 = vpop.f32.mrb[0].mxu0
      %669 = vmatprep.mubr.f32.mxu0 0.0
      %670 = vmatmul.mubr.f32.gmra.mrb[0].mxu0 %v239
      %v671 = vpop.f32.mrb[0].mxu0
      %v672 = vadd.f32 %v447, %v671
      %v673 = vpop.f32.mrb[0].mxu0
      %674 = vmatprep.mubr.f32.mxu0 0.0
      %675 = vmatmul.mubr.f32.gmra.mrb[0].mxu0 %v240
      %v676 = vpop.f32.mrb[0].mxu0
      %v677 = vadd.f32 %v452, %v676
      %v678 = vpop.f32.mrb[0].mxu0
      %679 = vmatprep.mubr.f32.mxu0 0.0
      %680 = vmatmul.mubr.f32.gmra.mrb[0].mxu0 %v241
      %v681 = vpop.f32.mrb[0].mxu0
      %v682 = vadd.f32 %v457, %v681
      %v683 = vpop.f32.mrb[0].mxu0
      %684 = vmatprep.mubr.f32.mxu0 0.0
      %685 = vmatmul.mubr.f32.gmra.mrb[0].mxu0 %v242
      %v686 = vpop.f32.mrb[0].mxu0
      %v687 = vadd.f32 %v462, %v686
      %v688 = vpop.f32.mrb[0].mxu0
      %689 = vmatprep.mubr.f32.mxu0 0.0
      %690 = vmatmul.mubr.f32.gmra.mrb[0].mxu0 %v243
      %v691 = vpop.f32.mrb[0].mxu0
      %v692 = vadd.f32 %v467, %v691
      %v693 = vpop.f32.mrb[0].mxu0
      %694 = vmatprep.mubr.f32.mxu0 0.0
      %695 = vmatmul.mubr.f32.gmra.mrb[0].mxu0 %v244
      %v696 = vpop.f32.mrb[0].mxu0
      %v697 = vadd.f32 %v472, %v696
      %v698 = vpop.f32.mrb[0].mxu0
      %699 = vmatprep.mubr.f32.mxu0 0.0
      %700 = vmatmul.mubr.f32.gmra.mrb[0].mxu0 %v245
      %v701 = vpop.f32.mrb[0].mxu0
      %v702 = vadd.f32 %v477, %v701
      %v703 = vpop.f32.mrb[0].mxu0
      %704 = vmatprep.mubr.f32.mxu0 0.0
      %705 = vmatmul.mubr.f32.gmra.mrb[0].mxu0 %v246
      %v706 = vpop.f32.mrb[0].mxu0
      %v707 = vadd.f32 %v482, %v706
      %v708 = vpop.f32.mrb[0].mxu0
      %709 = vmatprep.mubr.f32.mxu0 0.0
      %710 = vmatmul.mubr.f32.gmra.mrb[0].mxu0 %v247
      %v711 = vpop.f32.mrb[0].mxu0
      %v712 = vadd.f32 %v487, %v711
      %v713 = vpop.f32.mrb[0].mxu0
      %714 = vmatprep.mubr.f32.mxu0 0.0
      %715 = vmatmul.mubr.f32.gmra.mrb[0].mxu0 %v248
      %v716 = vpop.f32.mrb[0].mxu0
      %v717 = vadd.f32 %v492, %v716
      %v718 = vpop.f32.mrb[0].mxu0
      %719 = vmatprep.mubr.f32.mxu0 0.0
      %720 = vmatmul.mubr.f32.gmra.mrb[0].mxu0 %v249
      %v721 = vpop.f32.mrb[0].mxu0
      %v722 = vadd.f32 %v497, %v721
      %v723 = vpop.f32.mrb[0].mxu0
      %724 = vmatprep.mubr.f32.mxu0 0.0
      %725 = vmatmul.mubr.f32.gmra.mrb[0].mxu0 %v250
      %v726 = vpop.f32.mrb[0].mxu0
      %v727 = vadd.f32 %v502, %v726
      %v728 = vpop.f32.mrb[0].mxu0
      %729 = vmatprep.mubr.f32.mxu0 0.0
      %730 = vmatmul.mubr.f32.gmra.mrb[0].mxu0 %v251
      %v731 = vpop.f32.mrb[0].mxu0
      %v732 = vadd.f32 %v507, %v731
      %v733 = vpop.f32.mrb[0].mxu0
      %734 = vmatprep.mubr.f32.mxu0 0.0
      %735 = vmatmul.mubr.f32.gmra.mrb[0].mxu0 %v252
      %v736 = vpop.f32.mrb[0].mxu0
      %v737 = vadd.f32 %v512, %v736
      %v738 = vpop.f32.mrb[0].mxu0
      %739 = vmatprep.mubr.f32.mxu0 0.0
      %740 = vmatmul.mubr.f32.gmra.mrb[0].mxu0 %v253
      %v741 = vpop.f32.mrb[0].mxu0
      %v742 = vadd.f32 %v517, %v741
      %v743 = vpop.f32.mrb[0].mxu0
      %744 = vmatprep.mubr.f32.mxu0 0.0
      %745 = vmatmul.mubr.f32.gmra.mrb[0].mxu0 %v254
      %v746 = vpop.f32.mrb[0].mxu0
      %v747 = vadd.f32 %v522, %v746
      %v748 = vpop.f32.mrb[0].mxu0
      %749 = vmatprep.mubr.f32.mxu0 0.0
      %750 = vmatmul.mubr.f32.gmra.mrb[0].mxu0 %v255
      %v751 = vpop.f32.mrb[0].mxu0
      %v752 = vadd.f32 %v527, %v751
      %v753 = vpop.f32.mrb[0].mxu0
      %754 = vmatprep.mubr.f32.mxu0 0.0
      %755 = vmatmul.mubr.f32.gmra.mrb[0].mxu0 %v256
      %v756 = vpop.f32.mrb[0].mxu0
      %v757 = vadd.f32 %v532, %v756
      %v758 = vpop.f32.mrb[0].mxu0
      %759 = vmatprep.mubr.f32.mxu0 0.0
      %760 = vmatmul.mubr.f32.gmra.mrb[0].mxu0 %v257
      %v761 = vpop.f32.mrb[0].mxu0
      %v762 = vadd.f32 %v537, %v761
      %v763 = vpop.f32.mrb[0].mxu0
      %764 = vmatprep.mubr.f32.mxu0 0.0
      %765 = vmatmul.mubr.f32.gmra.mrb[0].mxu0 %v258
      %v766 = vpop.f32.mrb[0].mxu0
      %v767 = vadd.f32 %v542, %v766
      %v768 = vpop.f32.mrb[0].mxu0
      %769 = vmatprep.mubr.f32.mxu0 0.0
      %770 = vmatmul.mubr.f32.gmra.mrb[0].mxu0 %v259
      %v771 = vpop.f32.mrb[0].mxu0
      %v772 = vadd.f32 %v547, %v771
      %v773 = vpop.f32.mrb[0].mxu0
      %774 = vdwg.mxu0
      %v775 = vld [vmem:[%s220 + $0x2] sm:$0xff]
      %v776 = vld [vmem:[%s220 + $0xa] sm:$0xff]
      %v777 = vld [vmem:[%s220 + $0x12] sm:$0xff]
      %v778 = vld [vmem:[%s220 + $0x1a] sm:$0xff]
      %v779 = vld [vmem:[%s220 + $0x22] sm:$0xff]
      %v780 = vld [vmem:[%s220 + $0x2a] sm:$0xff]
      %v781 = vld [vmem:[%s220 + $0x32] sm:$0xff]
      %v782 = vld [vmem:[%s220 + $0x3a] sm:$0xff]
      %v783 = vld [vmem:[%s220 + $0x42] sm:$0xff]
      %v784 = vld [vmem:[%s220 + $0x4a] sm:$0xff]
      %v785 = vld [vmem:[%s220 + $0x52] sm:$0xff]
      %v786 = vld [vmem:[%s220 + $0x5a] sm:$0xff]
      %v787 = vld [vmem:[%s220 + $0x62] sm:$0xff]
      %v788 = vld [vmem:[%s220 + $0x6a] sm:$0xff]
      %v789 = vld [vmem:[%s220 + $0x72] sm:$0xff]
      %v790 = vld [vmem:[%s220 + $0x7a] sm:$0xff]
      %v791 = vld [vmem:[%s220 + $0x82] sm:$0xff]
      %v792 = vld [vmem:[%s220 + $0x8a] sm:$0xff]
      %v793 = vld [vmem:[%s220 + $0x92] sm:$0xff]
      %v794 = vld [vmem:[%s220 + $0x9a] sm:$0xff]
      %v795 = vld [vmem:[%s220 + $0xa2] sm:$0xff]
      %v796 = vld [vmem:[%s220 + $0xaa] sm:$0xff]
      %v797 = vld [vmem:[%s220 + $0xb2] sm:$0xff]
      %v798 = vld [vmem:[%s220 + $0xba] sm:$0xff]
      %v799 = vld [vmem:[%s220 + $0xc2] sm:$0xff]
      %v800 = vld [vmem:[%s220 + $0xca] sm:$0xff]
      %v801 = vld [vmem:[%s220 + $0xd2] sm:$0xff]
      %v802 = vld [vmem:[%s220 + $0xda] sm:$0xff]
      %v803 = vld [vmem:[%s220 + $0xe2] sm:$0xff]
      %v804 = vld [vmem:[%s220 + $0xea] sm:$0xff]
      %v805 = vld [vmem:[%s220 + $0xf2] sm:$0xff]
      %v806 = vld [vmem:[%s220 + $0xfa] sm:$0xff]
      %s807 = scalar_lea.vmem %s1, 256
      %v808 = vld [vmem:[%s807] sm:$0xff]
      %v809 = vld [vmem:[%s807 + $0x8] sm:$0xff]
      %v810 = vld [vmem:[%s807 + $0x10] sm:$0xff]
      %v811 = vld [vmem:[%s807 + $0x18] sm:$0xff]
      %v812 = vld [vmem:[%s807 + $0x20] sm:$0xff]
      %v813 = vld [vmem:[%s807 + $0x28] sm:$0xff]
      %v814 = vld [vmem:[%s807 + $0x30] sm:$0xff]
      %v815 = vld [vmem:[%s807 + $0x38] sm:$0xff]
      %v816 = vld [vmem:[%s807 + $0x40] sm:$0xff]
      %v817 = vld [vmem:[%s807 + $0x48] sm:$0xff]
      %v818 = vld [vmem:[%s807 + $0x50] sm:$0xff]
      %v819 = vld [vmem:[%s807 + $0x58] sm:$0xff]
      %v820 = vld [vmem:[%s807 + $0x60] sm:$0xff]
      %v821 = vld [vmem:[%s807 + $0x68] sm:$0xff]
      %v822 = vld [vmem:[%s807 + $0x70] sm:$0xff]
      %v823 = vld [vmem:[%s807 + $0x78] sm:$0xff]
      %824 = vmatprep.subr.mxu0 0.0
      %825 = vmatpush1.msra.mxu0 %v808
      %826 = vmatprep.subr.mxu0 0.0
      %827 = vmatpush1.msra.mxu0 %v809
      %828 = vmatprep.subr.mxu0 0.0
      %829 = vmatpush1.msra.mxu0 %v810
      %830 = vmatprep.subr.mxu0 0.0
      %831 = vmatpush1.msra.mxu0 %v811
      %832 = vmatprep.subr.mxu0 0.0
      %833 = vmatpush1.msra.mxu0 %v812
      %834 = vmatprep.subr.mxu0 0.0
      %835 = vmatpush1.msra.mxu0 %v813
      %836 = vmatprep.subr.mxu0 0.0
      %837 = vmatpush1.msra.mxu0 %v814
      %838 = vmatprep.subr.mxu0 0.0
      %839 = vmatpush1.msra.mxu0 %v815
      %840 = vmatprep.subr.mxu0 0.0
      %841 = vmatpush1.msra.mxu0 %v816
      %842 = vmatprep.subr.mxu0 0.0
      %843 = vmatpush1.msra.mxu0 %v817
      %844 = vmatprep.subr.mxu0 0.0
      %845 = vmatpush1.msra.mxu0 %v818
      %846 = vmatprep.subr.mxu0 0.0
      %847 = vmatpush1.msra.mxu0 %v819
      %848 = vmatprep.subr.mxu0 0.0
      %849 = vmatpush1.msra.mxu0 %v820
      %850 = vmatprep.subr.mxu0 0.0
      %851 = vmatpush1.msra.mxu0 %v821
      %852 = vmatprep.subr.mxu0 0.0
      %853 = vmatpush1.msra.mxu0 %v822
      %854 = vmatprep.subr.mxu0 0.0
      %855 = vmatpush1.msra.mxu0 %v823
      %856 = vmatprep.subr.mxu0 0.0
      %857 = vmatpush1.msra.mxu0 0.0
      %858 = vmatprep.subr.mxu0 0.0
      %859 = vmatpush1.msra.mxu0 0.0
      %860 = vmatprep.subr.mxu0 0.0
      %861 = vmatpush1.msra.mxu0 0.0
      %862 = vmatprep.subr.mxu0 0.0
      %863 = vmatpush1.msra.mxu0 0.0
      %864 = vmatprep.subr.mxu0 0.0
      %865 = vmatpush1.msra.mxu0 0.0
      %866 = vmatprep.subr.mxu0 0.0
      %867 = vmatpush1.msra.mxu0 0.0
      %868 = vmatprep.subr.mxu0 0.0
      %869 = vmatpush1.msra.mxu0 0.0
      %870 = vmatprep.subr.mxu0 0.0
      %871 = vmatpush1.msra.mxu0 0.0
      %872 = vmatprep.subr.mxu0 0.0
      %873 = vmatpush1.msra.mxu0 0.0
      %874 = vmatprep.subr.mxu0 0.0
      %875 = vmatpush1.msra.mxu0 0.0
      %876 = vmatprep.subr.mxu0 0.0
      %877 = vmatpush1.msra.mxu0 0.0
      %878 = vmatprep.subr.mxu0 0.0
      %879 = vmatpush1.msra.mxu0 0.0
      %880 = vmatprep.subr.mxu0 0.0
      %881 = vmatpush1.msra.mxu0 0.0
      %882 = vmatprep.subr.mxu0 0.0
      %883 = vmatpush1.msra.mxu0 0.0
      %884 = vmatprep.subr.mxu0 0.0
      %885 = vmatpush1.msra.mxu0 0.0
      %886 = vmatprep.subr.mxu0 0.0
      %887 = vmatpush1.msra.mxu0 0.0
      %888 = vmatprep.mubr.f32.mxu0 0.0
      %889 = vmatmul.mubr.f32.gmra.mrb[0].mxu0 %v775
      %v890 = vpop.f32.mrb[0].mxu0
      %v891 = vadd.f32 0.0, %v890
      %v892 = vpop.f32.mrb[0].mxu0
      %893 = vmatprep.mubr.f32.mxu0 0.0
      %894 = vmatmul.mubr.f32.gmra.mrb[0].mxu0 %v776
      %v895 = vpop.f32.mrb[0].mxu0
      %v896 = vadd.f32 0.0, %v895
      %v897 = vpop.f32.mrb[0].mxu0
      %898 = vmatprep.mubr.f32.mxu0 0.0
      %899 = vmatmul.mubr.f32.gmra.mrb[0].mxu0 %v777
      %v900 = vpop.f32.mrb[0].mxu0
      %v901 = vadd.f32 0.0, %v900
      %v902 = vpop.f32.mrb[0].mxu0
      %903 = vmatprep.mubr.f32.mxu0 0.0
      %904 = vmatmul.mubr.f32.gmra.mrb[0].mxu0 %v778
      %v905 = vpop.f32.mrb[0].mxu0
      %v906 = vadd.f32 0.0, %v905
      %v907 = vpop.f32.mrb[0].mxu0
      %908 = vmatprep.mubr.f32.mxu0 0.0
      %909 = vmatmul.mubr.f32.gmra.mrb[0].mxu0 %v779
      %v910 = vpop.f32.mrb[0].mxu0
      %v911 = vadd.f32 0.0, %v910
      %v912 = vpop.f32.mrb[0].mxu0
      %913 = vmatprep.mubr.f32.mxu0 0.0
      %914 = vmatmul.mubr.f32.gmra.mrb[0].mxu0 %v780
      %v915 = vpop.f32.mrb[0].mxu0
      %v916 = vadd.f32 0.0, %v915
      %v917 = vpop.f32.mrb[0].mxu0
      %918 = vmatprep.mubr.f32.mxu0 0.0
      %919 = vmatmul.mubr.f32.gmra.mrb[0].mxu0 %v781
      %v920 = vpop.f32.mrb[0].mxu0
      %v921 = vadd.f32 0.0, %v920
      %v922 = vpop.f32.mrb[0].mxu0
      %923 = vmatprep.mubr.f32.mxu0 0.0
      %924 = vmatmul.mubr.f32.gmra.mrb[0].mxu0 %v782
      %v925 = vpop.f32.mrb[0].mxu0
      %v926 = vadd.f32 0.0, %v925
      %v927 = vpop.f32.mrb[0].mxu0
      %928 = vmatprep.mubr.f32.mxu0 0.0
      %929 = vmatmul.mubr.f32.gmra.mrb[0].mxu0 %v783
      %v930 = vpop.f32.mrb[0].mxu0
      %v931 = vadd.f32 0.0, %v930
      %v932 = vpop.f32.mrb[0].mxu0
      %933 = vmatprep.mubr.f32.mxu0 0.0
      %934 = vmatmul.mubr.f32.gmra.mrb[0].mxu0 %v784
      %v935 = vpop.f32.mrb[0].mxu0
      %v936 = vadd.f32 0.0, %v935
      %v937 = vpop.f32.mrb[0].mxu0
      %938 = vmatprep.mubr.f32.mxu0 0.0
      %939 = vmatmul.mubr.f32.gmra.mrb[0].mxu0 %v785
      %v940 = vpop.f32.mrb[0].mxu0
      %v941 = vadd.f32 0.0, %v940
      %v942 = vpop.f32.mrb[0].mxu0
      %943 = vmatprep.mubr.f32.mxu0 0.0
      %944 = vmatmul.mubr.f32.gmra.mrb[0].mxu0 %v786
      %v945 = vpop.f32.mrb[0].mxu0
      %v946 = vadd.f32 0.0, %v945
      %v947 = vpop.f32.mrb[0].mxu0
      %948 = vmatprep.mubr.f32.mxu0 0.0
      %949 = vmatmul.mubr.f32.gmra.mrb[0].mxu0 %v787
      %v950 = vpop.f32.mrb[0].mxu0
      %v951 = vadd.f32 0.0, %v950
      %v952 = vpop.f32.mrb[0].mxu0
      %953 = vmatprep.mubr.f32.mxu0 0.0
      %954 = vmatmul.mubr.f32.gmra.mrb[0].mxu0 %v788
      %v955 = vpop.f32.mrb[0].mxu0
      %v956 = vadd.f32 0.0, %v955
      %v957 = vpop.f32.mrb[0].mxu0
      %958 = vmatprep.mubr.f32.mxu0 0.0
      %959 = vmatmul.mubr.f32.gmra.mrb[0].mxu0 %v789
      %v960 = vpop.f32.mrb[0].mxu0
      %v961 = vadd.f32 0.0, %v960
      %v962 = vpop.f32.mrb[0].mxu0
      %963 = vmatprep.mubr.f32.mxu0 0.0
      %964 = vmatmul.mubr.f32.gmra.mrb[0].mxu0 %v790
      %v965 = vpop.f32.mrb[0].mxu0
      %v966 = vadd.f32 0.0, %v965
      %v967 = vpop.f32.mrb[0].mxu0
      %968 = vmatprep.mubr.f32.mxu0 0.0
      %969 = vmatmul.mubr.f32.gmra.mrb[0].mxu0 %v791
      %v970 = vpop.f32.mrb[0].mxu0
      %v971 = vadd.f32 0.0, %v970
      %v972 = vpop.f32.mrb[0].mxu0
      %973 = vmatprep.mubr.f32.mxu0 0.0
      %974 = vmatmul.mubr.f32.gmra.mrb[0].mxu0 %v792
      %v975 = vpop.f32.mrb[0].mxu0
      %v976 = vadd.f32 0.0, %v975
      %v977 = vpop.f32.mrb[0].mxu0
      %978 = vmatprep.mubr.f32.mxu0 0.0
      %979 = vmatmul.mubr.f32.gmra.mrb[0].mxu0 %v793
      %v980 = vpop.f32.mrb[0].mxu0
      %v981 = vadd.f32 0.0, %v980
      %v982 = vpop.f32.mrb[0].mxu0
      %983 = vmatprep.mubr.f32.mxu0 0.0
      %984 = vmatmul.mubr.f32.gmra.mrb[0].mxu0 %v794
      %v985 = vpop.f32.mrb[0].mxu0
      %v986 = vadd.f32 0.0, %v985
      %v987 = vpop.f32.mrb[0].mxu0
      %988 = vmatprep.mubr.f32.mxu0 0.0
      %989 = vmatmul.mubr.f32.gmra.mrb[0].mxu0 %v795
      %v990 = vpop.f32.mrb[0].mxu0
      %v991 = vadd.f32 0.0, %v990
      %v992 = vpop.f32.mrb[0].mxu0
      %993 = vmatprep.mubr.f32.mxu0 0.0
      %994 = vmatmul.mubr.f32.gmra.mrb[0].mxu0 %v796
      %v995 = vpop.f32.mrb[0].mxu0
      %v996 = vadd.f32 0.0, %v995
      %v997 = vpop.f32.mrb[0].mxu0
      %998 = vmatprep.mubr.f32.mxu0 0.0
      %999 = vmatmul.mubr.f32.gmra.mrb[0].mxu0 %v797
      %v1000 = vpop.f32.mrb[0].mxu0
      %v1001 = vadd.f32 0.0, %v1000
      %v1002 = vpop.f32.mrb[0].mxu0
      %1003 = vmatprep.mubr.f32.mxu0 0.0
      %1004 = vmatmul.mubr.f32.gmra.mrb[0].mxu0 %v798
      %v1005 = vpop.f32.mrb[0].mxu0
      %v1006 = vadd.f32 0.0, %v1005
      %v1007 = vpop.f32.mrb[0].mxu0
      %1008 = vmatprep.mubr.f32.mxu0 0.0
      %1009 = vmatmul.mubr.f32.gmra.mrb[0].mxu0 %v799
      %v1010 = vpop.f32.mrb[0].mxu0
      %v1011 = vadd.f32 0.0, %v1010
      %v1012 = vpop.f32.mrb[0].mxu0
      %1013 = vmatprep.mubr.f32.mxu0 0.0
      %1014 = vmatmul.mubr.f32.gmra.mrb[0].mxu0 %v800
      %v1015 = vpop.f32.mrb[0].mxu0
      %v1016 = vadd.f32 0.0, %v1015
      %v1017 = vpop.f32.mrb[0].mxu0
      %1018 = vmatprep.mubr.f32.mxu0 0.0
      %1019 = vmatmul.mubr.f32.gmra.mrb[0].mxu0 %v801
      %v1020 = vpop.f32.mrb[0].mxu0
      %v1021 = vadd.f32 0.0, %v1020
      %v1022 = vpop.f32.mrb[0].mxu0
      %1023 = vmatprep.mubr.f32.mxu0 0.0
      %1024 = vmatmul.mubr.f32.gmra.mrb[0].mxu0 %v802
      %v1025 = vpop.f32.mrb[0].mxu0
      %v1026 = vadd.f32 0.0, %v1025
      %v1027 = vpop.f32.mrb[0].mxu0
      %1028 = vmatprep.mubr.f32.mxu0 0.0
      %1029 = vmatmul.mubr.f32.gmra.mrb[0].mxu0 %v803
      %v1030 = vpop.f32.mrb[0].mxu0
      %v1031 = vadd.f32 0.0, %v1030
      %v1032 = vpop.f32.mrb[0].mxu0
      %1033 = vmatprep.mubr.f32.mxu0 0.0
      %1034 = vmatmul.mubr.f32.gmra.mrb[0].mxu0 %v804
      %v1035 = vpop.f32.mrb[0].mxu0
      %v1036 = vadd.f32 0.0, %v1035
      %v1037 = vpop.f32.mrb[0].mxu0
      %1038 = vmatprep.mubr.f32.mxu0 0.0
      %1039 = vmatmul.mubr.f32.gmra.mrb[0].mxu0 %v805
      %v1040 = vpop.f32.mrb[0].mxu0
      %v1041 = vadd.f32 0.0, %v1040
      %v1042 = vpop.f32.mrb[0].mxu0
      %1043 = vmatprep.mubr.f32.mxu0 0.0
      %1044 = vmatmul.mubr.f32.gmra.mrb[0].mxu0 %v806
      %v1045 = vpop.f32.mrb[0].mxu0
      %v1046 = vadd.f32 0.0, %v1045
      %v1047 = vpop.f32.mrb[0].mxu0
      %1048 = vdwg.mxu0
      %v1049 = vadd.f32 %v617, %v891
      %v1050 = vadd.f32 %v622, %v896
      %v1051 = vadd.f32 %v627, %v901
      %v1052 = vadd.f32 %v632, %v906
      %v1053 = vadd.f32 %v637, %v911
      %v1054 = vadd.f32 %v642, %v916
      %v1055 = vadd.f32 %v647, %v921
      %v1056 = vadd.f32 %v652, %v926
      %v1057 = vadd.f32 %v657, %v931
      %v1058 = vadd.f32 %v662, %v936
      %v1059 = vadd.f32 %v667, %v941
      %v1060 = vadd.f32 %v672, %v946
      %v1061 = vadd.f32 %v677, %v951
      %v1062 = vadd.f32 %v682, %v956
      %v1063 = vadd.f32 %v687, %v961
      %v1064 = vadd.f32 %v692, %v966
      %v1065 = vadd.f32 %v697, %v971
      %v1066 = vadd.f32 %v702, %v976
      %v1067 = vadd.f32 %v707, %v981
      %v1068 = vadd.f32 %v712, %v986
      %v1069 = vadd.f32 %v717, %v991
      %v1070 = vadd.f32 %v722, %v996
      %v1071 = vadd.f32 %v727, %v1001
      %v1072 = vadd.f32 %v732, %v1006
      %v1073 = vadd.f32 %v737, %v1011
      %v1074 = vadd.f32 %v742, %v1016
      %v1075 = vadd.f32 %v747, %v1021
      %v1076 = vadd.f32 %v752, %v1026
      %v1077 = vadd.f32 %v757, %v1031
      %v1078 = vadd.f32 %v762, %v1036
      %v1079 = vadd.f32 %v767, %v1041
      %v1080 = vadd.f32 %v772, %v1046
      %v1081 = vld [vmem:[%s220 + $0x10] sm:$0xff]
      %v1082 = vld [vmem:[%s220 + $0x18] sm:$0xff]
      %v1083 = vld [vmem:[%s220 + $0x20] sm:$0xff]
      %v1084 = vld [vmem:[%s220 + $0x28] sm:$0xff]
      %v1085 = vld [vmem:[%s220 + $0x30] sm:$0xff]
      %v1086 = vld [vmem:[%s220 + $0x38] sm:$0xff]
      %v1087 = vld [vmem:[%s220 + $0x40] sm:$0xff]
      %v1088 = vld [vmem:[%s220 + $0x48] sm:$0xff]
      %v1089 = vld [vmem:[%s220 + $0x50] sm:$0xff]
      %v1090 = vld [vmem:[%s220 + $0x58] sm:$0xff]
      %v1091 = vld [vmem:[%s220 + $0x60] sm:$0xff]
      %v1092 = vld [vmem:[%s220 + $0x68] sm:$0xff]
      %v1093 = vld [vmem:[%s220 + $0x70] sm:$0xff]
      %v1094 = vld [vmem:[%s220 + $0x78] sm:$0xff]
      %v1095 = vld [vmem:[%s220 + $0x80] sm:$0xff]
      %v1096 = vld [vmem:[%s220 + $0x88] sm:$0xff]
      %v1097 = vld [vmem:[%s220 + $0x90] sm:$0xff]
      %v1098 = vld [vmem:[%s220 + $0x98] sm:$0xff]
      %v1099 = vld [vmem:[%s220 + $0xa0] sm:$0xff]
      %v1100 = vld [vmem:[%s220 + $0xa8] sm:$0xff]
      %v1101 = vld [vmem:[%s220 + $0xb0] sm:$0xff]
      %v1102 = vld [vmem:[%s220 + $0xb8] sm:$0xff]
      %v1103 = vld [vmem:[%s220 + $0xc0] sm:$0xff]
      %v1104 = vld [vmem:[%s220 + $0xc8] sm:$0xff]
      %v1105 = vld [vmem:[%s220 + $0xd0] sm:$0xff]
      %v1106 = vld [vmem:[%s220 + $0xd8] sm:$0xff]
      %v1107 = vld [vmem:[%s220 + $0xe0] sm:$0xff]
      %v1108 = vld [vmem:[%s220 + $0xe8] sm:$0xff]
      %v1109 = vld [vmem:[%s220 + $0xf0] sm:$0xff]
      %v1110 = vld [vmem:[%s220 + $0xf8] sm:$0xff]
      %v1111 = vld [vmem:[%s220 + $0x100] sm:$0xff]
      %v1112 = vld [vmem:[%s220 + $0x108] sm:$0xff]
      %s1113 = scalar_lea.vmem %s1, 384
      %v1114 = vld [vmem:[%s1113] sm:$0xff]
      %v1115 = vld [vmem:[%s1113 + $0x8] sm:$0xff]
      %v1116 = vld [vmem:[%s1113 + $0x10] sm:$0xff]
      %v1117 = vld [vmem:[%s1113 + $0x18] sm:$0xff]
      %v1118 = vld [vmem:[%s1113 + $0x20] sm:$0xff]
      %v1119 = vld [vmem:[%s1113 + $0x28] sm:$0xff]
      %v1120 = vld [vmem:[%s1113 + $0x30] sm:$0xff]
      %v1121 = vld [vmem:[%s1113 + $0x38] sm:$0xff]
      %v1122 = vld [vmem:[%s1113 + $0x40] sm:$0xff]
      %v1123 = vld [vmem:[%s1113 + $0x48] sm:$0xff]
      %v1124 = vld [vmem:[%s1113 + $0x50] sm:$0xff]
      %v1125 = vld [vmem:[%s1113 + $0x58] sm:$0xff]
      %v1126 = vld [vmem:[%s1113 + $0x60] sm:$0xff]
      %v1127 = vld [vmem:[%s1113 + $0x68] sm:$0xff]
      %v1128 = vld [vmem:[%s1113 + $0x70] sm:$0xff]
      %v1129 = vld [vmem:[%s1113 + $0x78] sm:$0xff]
      %1130 = vmatprep.subr.mxu0 0.0
      %1131 = vmatpush1.msra.mxu0 %v1114
      %1132 = vmatprep.subr.mxu0 0.0
      %1133 = vmatpush1.msra.mxu0 %v1115
      %1134 = vmatprep.subr.mxu0 0.0
      %1135 = vmatpush1.msra.mxu0 %v1116
      %1136 = vmatprep.subr.mxu0 0.0
      %1137 = vmatpush1.msra.mxu0 %v1117
      %1138 = vmatprep.subr.mxu0 0.0
      %1139 = vmatpush1.msra.mxu0 %v1118
      %1140 = vmatprep.subr.mxu0 0.0
      %1141 = vmatpush1.msra.mxu0 %v1119
      %1142 = vmatprep.subr.mxu0 0.0
      %1143 = vmatpush1.msra.mxu0 %v1120
      %1144 = vmatprep.subr.mxu0 0.0
      %1145 = vmatpush1.msra.mxu0 %v1121
      %1146 = vmatprep.subr.mxu0 0.0
      %1147 = vmatpush1.msra.mxu0 %v1122
      %1148 = vmatprep.subr.mxu0 0.0
      %1149 = vmatpush1.msra.mxu0 %v1123
      %1150 = vmatprep.subr.mxu0 0.0
      %1151 = vmatpush1.msra.mxu0 %v1124
      %1152 = vmatprep.subr.mxu0 0.0
      %1153 = vmatpush1.msra.mxu0 %v1125
      %1154 = vmatprep.subr.mxu0 0.0
      %1155 = vmatpush1.msra.mxu0 %v1126
      %1156 = vmatprep.subr.mxu0 0.0
      %1157 = vmatpush1.msra.mxu0 %v1127
      %1158 = vmatprep.subr.mxu0 0.0
      %1159 = vmatpush1.msra.mxu0 %v1128
      %1160 = vmatprep.subr.mxu0 0.0
      %1161 = vmatpush1.msra.mxu0 %v1129
      %1162 = vmatprep.subr.mxu0 0.0
      %1163 = vmatpush1.msra.mxu0 0.0
      %1164 = vmatprep.subr.mxu0 0.0
      %1165 = vmatpush1.msra.mxu0 0.0
      %1166 = vmatprep.subr.mxu0 0.0
      %1167 = vmatpush1.msra.mxu0 0.0
      %1168 = vmatprep.subr.mxu0 0.0
      %1169 = vmatpush1.msra.mxu0 0.0
      %1170 = vmatprep.subr.mxu0 0.0
      %1171 = vmatpush1.msra.mxu0 0.0
      %1172 = vmatprep.subr.mxu0 0.0
      %1173 = vmatpush1.msra.mxu0 0.0
      %1174 = vmatprep.subr.mxu0 0.0
      %1175 = vmatpush1.msra.mxu0 0.0
      %1176 = vmatprep.subr.mxu0 0.0
      %1177 = vmatpush1.msra.mxu0 0.0
      %1178 = vmatprep.subr.mxu0 0.0
      %1179 = vmatpush1.msra.mxu0 0.0
      %1180 = vmatprep.subr.mxu0 0.0
      %1181 = vmatpush1.msra.mxu0 0.0
      %1182 = vmatprep.subr.mxu0 0.0
      %1183 = vmatpush1.msra.mxu0 0.0
      %1184 = vmatprep.subr.mxu0 0.0
      %1185 = vmatpush1.msra.mxu0 0.0
      %1186 = vmatprep.subr.mxu0 0.0
      %1187 = vmatpush1.msra.mxu0 0.0
      %1188 = vmatprep.subr.mxu0 0.0
      %1189 = vmatpush1.msra.mxu0 0.0
      %1190 = vmatprep.subr.mxu0 0.0
      %1191 = vmatpush1.msra.mxu0 0.0
      %1192 = vmatprep.subr.mxu0 0.0
      %1193 = vmatpush1.msra.mxu0 0.0
      %1194 = vmatprep.mubr.f32.mxu0 0.0
      %1195 = vmatmul.mubr.f32.gmra.mrb[0].mxu0 %v1081
      %v1196 = vpop.f32.mrb[0].mxu0
      %v1197 = vadd.f32 0.0, %v1196
      %v1198 = vpop.f32.mrb[0].mxu0
      %1199 = vmatprep.mubr.f32.mxu0 0.0
      %1200 = vmatmul.mubr.f32.gmra.mrb[0].mxu0 %v1082
      %v1201 = vpop.f32.mrb[0].mxu0
      %v1202 = vadd.f32 0.0, %v1201
      %v1203 = vpop.f32.mrb[0].mxu0
      %1204 = vmatprep.mubr.f32.mxu0 0.0
      %1205 = vmatmul.mubr.f32.gmra.mrb[0].mxu0 %v1083
      %v1206 = vpop.f32.mrb[0].mxu0
      %v1207 = vadd.f32 0.0, %v1206
      %v1208 = vpop.f32.mrb[0].mxu0
      %1209 = vmatprep.mubr.f32.mxu0 0.0
      %1210 = vmatmul.mubr.f32.gmra.mrb[0].mxu0 %v1084
      %v1211 = vpop.f32.mrb[0].mxu0
      %v1212 = vadd.f32 0.0, %v1211
      %v1213 = vpop.f32.mrb[0].mxu0
      %1214 = vmatprep.mubr.f32.mxu0 0.0
      %1215 = vmatmul.mubr.f32.gmra.mrb[0].mxu0 %v1085
      %v1216 = vpop.f32.mrb[0].mxu0
      %v1217 = vadd.f32 0.0, %v1216
      %v1218 = vpop.f32.mrb[0].mxu0
      %1219 = vmatprep.mubr.f32.mxu0 0.0
      %1220 = vmatmul.mubr.f32.gmra.mrb[0].mxu0 %v1086
      %v1221 = vpop.f32.mrb[0].mxu0
      %v1222 = vadd.f32 0.0, %v1221
      %v1223 = vpop.f32.mrb[0].mxu0
      %1224 = vmatprep.mubr.f32.mxu0 0.0
      %1225 = vmatmul.mubr.f32.gmra.mrb[0].mxu0 %v1087
      %v1226 = vpop.f32.mrb[0].mxu0
      %v1227 = vadd.f32 0.0, %v1226
      %v1228 = vpop.f32.mrb[0].mxu0
      %1229 = vmatprep.mubr.f32.mxu0 0.0
      %1230 = vmatmul.mubr.f32.gmra.mrb[0].mxu0 %v1088
      %v1231 = vpop.f32.mrb[0].mxu0
      %v1232 = vadd.f32 0.0, %v1231
      %v1233 = vpop.f32.mrb[0].mxu0
      %1234 = vmatprep.mubr.f32.mxu0 0.0
      %1235 = vmatmul.mubr.f32.gmra.mrb[0].mxu0 %v1089
      %v1236 = vpop.f32.mrb[0].mxu0
      %v1237 = vadd.f32 0.0, %v1236
      %v1238 = vpop.f32.mrb[0].mxu0
      %1239 = vmatprep.mubr.f32.mxu0 0.0
      %1240 = vmatmul.mubr.f32.gmra.mrb[0].mxu0 %v1090
      %v1241 = vpop.f32.mrb[0].mxu0
      %v1242 = vadd.f32 0.0, %v1241
      %v1243 = vpop.f32.mrb[0].mxu0
      %1244 = vmatprep.mubr.f32.mxu0 0.0
      %1245 = vmatmul.mubr.f32.gmra.mrb[0].mxu0 %v1091
      %v1246 = vpop.f32.mrb[0].mxu0
      %v1247 = vadd.f32 0.0, %v1246
      %v1248 = vpop.f32.mrb[0].mxu0
      %1249 = vmatprep.mubr.f32.mxu0 0.0
      %1250 = vmatmul.mubr.f32.gmra.mrb[0].mxu0 %v1092
      %v1251 = vpop.f32.mrb[0].mxu0
      %v1252 = vadd.f32 0.0, %v1251
      %v1253 = vpop.f32.mrb[0].mxu0
      %1254 = vmatprep.mubr.f32.mxu0 0.0
      %1255 = vmatmul.mubr.f32.gmra.mrb[0].mxu0 %v1093
      %v1256 = vpop.f32.mrb[0].mxu0
      %v1257 = vadd.f32 0.0, %v1256
      %v1258 = vpop.f32.mrb[0].mxu0
      %1259 = vmatprep.mubr.f32.mxu0 0.0
      %1260 = vmatmul.mubr.f32.gmra.mrb[0].mxu0 %v1094
      %v1261 = vpop.f32.mrb[0].mxu0
      %v1262 = vadd.f32 0.0, %v1261
      %v1263 = vpop.f32.mrb[0].mxu0
      %1264 = vmatprep.mubr.f32.mxu0 0.0
      %1265 = vmatmul.mubr.f32.gmra.mrb[0].mxu0 %v1095
      %v1266 = vpop.f32.mrb[0].mxu0
      %v1267 = vadd.f32 0.0, %v1266
      %v1268 = vpop.f32.mrb[0].mxu0
      %1269 = vmatprep.mubr.f32.mxu0 0.0
      %1270 = vmatmul.mubr.f32.gmra.mrb[0].mxu0 %v1096
      %v1271 = vpop.f32.mrb[0].mxu0
      %v1272 = vadd.f32 0.0, %v1271
      %v1273 = vpop.f32.mrb[0].mxu0
      %1274 = vmatprep.mubr.f32.mxu0 0.0
      %1275 = vmatmul.mubr.f32.gmra.mrb[0].mxu0 %v1097
      %v1276 = vpop.f32.mrb[0].mxu0
      %v1277 = vadd.f32 0.0, %v1276
      %v1278 = vpop.f32.mrb[0].mxu0
      %1279 = vmatprep.mubr.f32.mxu0 0.0
      %1280 = vmatmul.mubr.f32.gmra.mrb[0].mxu0 %v1098
      %v1281 = vpop.f32.mrb[0].mxu0
      %v1282 = vadd.f32 0.0, %v1281
      %v1283 = vpop.f32.mrb[0].mxu0
      %1284 = vmatprep.mubr.f32.mxu0 0.0
      %1285 = vmatmul.mubr.f32.gmra.mrb[0].mxu0 %v1099
      %v1286 = vpop.f32.mrb[0].mxu0
      %v1287 = vadd.f32 0.0, %v1286
      %v1288 = vpop.f32.mrb[0].mxu0
      %1289 = vmatprep.mubr.f32.mxu0 0.0
      %1290 = vmatmul.mubr.f32.gmra.mrb[0].mxu0 %v1100
      %v1291 = vpop.f32.mrb[0].mxu0
      %v1292 = vadd.f32 0.0, %v1291
      %v1293 = vpop.f32.mrb[0].mxu0
      %1294 = vmatprep.mubr.f32.mxu0 0.0
      %1295 = vmatmul.mubr.f32.gmra.mrb[0].mxu0 %v1101
      %v1296 = vpop.f32.mrb[0].mxu0
      %v1297 = vadd.f32 0.0, %v1296
      %v1298 = vpop.f32.mrb[0].mxu0
      %1299 = vmatprep.mubr.f32.mxu0 0.0
      %1300 = vmatmul.mubr.f32.gmra.mrb[0].mxu0 %v1102
      %v1301 = vpop.f32.mrb[0].mxu0
      %v1302 = vadd.f32 0.0, %v1301
      %v1303 = vpop.f32.mrb[0].mxu0
      %1304 = vmatprep.mubr.f32.mxu0 0.0
      %1305 = vmatmul.mubr.f32.gmra.mrb[0].mxu0 %v1103
      %v1306 = vpop.f32.mrb[0].mxu0
      %v1307 = vadd.f32 0.0, %v1306
      %v1308 = vpop.f32.mrb[0].mxu0
      %1309 = vmatprep.mubr.f32.mxu0 0.0
      %1310 = vmatmul.mubr.f32.gmra.mrb[0].mxu0 %v1104
      %v1311 = vpop.f32.mrb[0].mxu0
      %v1312 = vadd.f32 0.0, %v1311
      %v1313 = vpop.f32.mrb[0].mxu0
      %1314 = vmatprep.mubr.f32.mxu0 0.0
      %1315 = vmatmul.mubr.f32.gmra.mrb[0].mxu0 %v1105
      %v1316 = vpop.f32.mrb[0].mxu0
      %v1317 = vadd.f32 0.0, %v1316
      %v1318 = vpop.f32.mrb[0].mxu0
      %1319 = vmatprep.mubr.f32.mxu0 0.0
      %1320 = vmatmul.mubr.f32.gmra.mrb[0].mxu0 %v1106
      %v1321 = vpop.f32.mrb[0].mxu0
      %v1322 = vadd.f32 0.0, %v1321
      %v1323 = vpop.f32.mrb[0].mxu0
      %1324 = vmatprep.mubr.f32.mxu0 0.0
      %1325 = vmatmul.mubr.f32.gmra.mrb[0].mxu0 %v1107
      %v1326 = vpop.f32.mrb[0].mxu0
      %v1327 = vadd.f32 0.0, %v1326
      %v1328 = vpop.f32.mrb[0].mxu0
      %1329 = vmatprep.mubr.f32.mxu0 0.0
      %1330 = vmatmul.mubr.f32.gmra.mrb[0].mxu0 %v1108
      %v1331 = vpop.f32.mrb[0].mxu0
      %v1332 = vadd.f32 0.0, %v1331
      %v1333 = vpop.f32.mrb[0].mxu0
      %1334 = vmatprep.mubr.f32.mxu0 0.0
      %1335 = vmatmul.mubr.f32.gmra.mrb[0].mxu0 %v1109
      %v1336 = vpop.f32.mrb[0].mxu0
      %v1337 = vadd.f32 0.0, %v1336
      %v1338 = vpop.f32.mrb[0].mxu0
      %1339 = vmatprep.mubr.f32.mxu0 0.0
      %1340 = vmatmul.mubr.f32.gmra.mrb[0].mxu0 %v1110
      %v1341 = vpop.f32.mrb[0].mxu0
      %v1342 = vadd.f32 0.0, %v1341
      %v1343 = vpop.f32.mrb[0].mxu0
      %1344 = vmatprep.mubr.f32.mxu0 0.0
      %1345 = vmatmul.mubr.f32.gmra.mrb[0].mxu0 %v1111
      %v1346 = vpop.f32.mrb[0].mxu0
      %v1347 = vadd.f32 0.0, %v1346
      %v1348 = vpop.f32.mrb[0].mxu0
      %1349 = vmatprep.mubr.f32.mxu0 0.0
      %1350 = vmatmul.mubr.f32.gmra.mrb[0].mxu0 %v1112
      %v1351 = vpop.f32.mrb[0].mxu0
      %v1352 = vadd.f32 0.0, %v1351
      %v1353 = vpop.f32.mrb[0].mxu0
      %1354 = vdwg.mxu0
      %v1355 = vadd.f32 %v1049, %v1197
      %v1356 = vadd.f32 %v1050, %v1202
      %v1357 = vadd.f32 %v1051, %v1207
      %v1358 = vadd.f32 %v1052, %v1212
      %v1359 = vadd.f32 %v1053, %v1217
      %v1360 = vadd.f32 %v1054, %v1222
      %v1361 = vadd.f32 %v1055, %v1227
      %v1362 = vadd.f32 %v1056, %v1232
      %v1363 = vadd.f32 %v1057, %v1237
      %v1364 = vadd.f32 %v1058, %v1242
      %v1365 = vadd.f32 %v1059, %v1247
      %v1366 = vadd.f32 %v1060, %v1252
      %v1367 = vadd.f32 %v1061, %v1257
      %v1368 = vadd.f32 %v1062, %v1262
      %v1369 = vadd.f32 %v1063, %v1267
      %v1370 = vadd.f32 %v1064, %v1272
      %v1371 = vadd.f32 %v1065, %v1277
      %v1372 = vadd.f32 %v1066, %v1282
      %v1373 = vadd.f32 %v1067, %v1287
      %v1374 = vadd.f32 %v1068, %v1292
      %v1375 = vadd.f32 %v1069, %v1297
      %v1376 = vadd.f32 %v1070, %v1302
      %v1377 = vadd.f32 %v1071, %v1307
      %v1378 = vadd.f32 %v1072, %v1312
      %v1379 = vadd.f32 %v1073, %v1317
      %v1380 = vadd.f32 %v1074, %v1322
      %v1381 = vadd.f32 %v1075, %v1327
      %v1382 = vadd.f32 %v1076, %v1332
      %v1383 = vadd.f32 %v1077, %v1337
      %v1384 = vadd.f32 %v1078, %v1342
      %v1385 = vadd.f32 %v1079, %v1347
      %v1386 = vadd.f32 %v1080, %v1352
      %v1387 = vld [vmem:[%s220 + $0x11] sm:$0xff]
      %v1388 = vld [vmem:[%s220 + $0x19] sm:$0xff]
      %v1389 = vld [vmem:[%s220 + $0x21] sm:$0xff]
      %v1390 = vld [vmem:[%s220 + $0x29] sm:$0xff]
      %v1391 = vld [vmem:[%s220 + $0x31] sm:$0xff]
      %v1392 = vld [vmem:[%s220 + $0x39] sm:$0xff]
      %v1393 = vld [vmem:[%s220 + $0x41] sm:$0xff]
      %v1394 = vld [vmem:[%s220 + $0x49] sm:$0xff]
      %v1395 = vld [vmem:[%s220 + $0x51] sm:$0xff]
      %v1396 = vld [vmem:[%s220 + $0x59] sm:$0xff]
      %v1397 = vld [vmem:[%s220 + $0x61] sm:$0xff]
      %v1398 = vld [vmem:[%s220 + $0x69] sm:$0xff]
      %v1399 = vld [vmem:[%s220 + $0x71] sm:$0xff]
      %v1400 = vld [vmem:[%s220 + $0x79] sm:$0xff]
      %v1401 = vld [vmem:[%s220 + $0x81] sm:$0xff]
      %v1402 = vld [vmem:[%s220 + $0x89] sm:$0xff]
      %v1403 = vld [vmem:[%s220 + $0x91] sm:$0xff]
      %v1404 = vld [vmem:[%s220 + $0x99] sm:$0xff]
      %v1405 = vld [vmem:[%s220 + $0xa1] sm:$0xff]
      %v1406 = vld [vmem:[%s220 + $0xa9] sm:$0xff]
      %v1407 = vld [vmem:[%s220 + $0xb1] sm:$0xff]
      %v1408 = vld [vmem:[%s220 + $0xb9] sm:$0xff]
      %v1409 = vld [vmem:[%s220 + $0xc1] sm:$0xff]
      %v1410 = vld [vmem:[%s220 + $0xc9] sm:$0xff]
      %v1411 = vld [vmem:[%s220 + $0xd1] sm:$0xff]
      %v1412 = vld [vmem:[%s220 + $0xd9] sm:$0xff]
      %v1413 = vld [vmem:[%s220 + $0xe1] sm:$0xff]
      %v1414 = vld [vmem:[%s220 + $0xe9] sm:$0xff]
      %v1415 = vld [vmem:[%s220 + $0xf1] sm:$0xff]
      %v1416 = vld [vmem:[%s220 + $0xf9] sm:$0xff]
      %v1417 = vld [vmem:[%s220 + $0x101] sm:$0xff]
      %v1418 = vld [vmem:[%s220 + $0x109] sm:$0xff]
      %s1419 = scalar_lea.vmem %s1, 512
      %v1420 = vld [vmem:[%s1419] sm:$0xff]
      %v1421 = vld [vmem:[%s1419 + $0x8] sm:$0xff]
      %v1422 = vld [vmem:[%s1419 + $0x10] sm:$0xff]
      %v1423 = vld [vmem:[%s1419 + $0x18] sm:$0xff]
      %v1424 = vld [vmem:[%s1419 + $0x20] sm:$0xff]
      %v1425 = vld [vmem:[%s1419 + $0x28] sm:$0xff]
      %v1426 = vld [vmem:[%s1419 + $0x30] sm:$0xff]
      %v1427 = vld [vmem:[%s1419 + $0x38] sm:$0xff]
      %v1428 = vld [vmem:[%s1419 + $0x40] sm:$0xff]
      %v1429 = vld [vmem:[%s1419 + $0x48] sm:$0xff]
      %v1430 = vld [vmem:[%s1419 + $0x50] sm:$0xff]
      %v1431 = vld [vmem:[%s1419 + $0x58] sm:$0xff]
      %v1432 = vld [vmem:[%s1419 + $0x60] sm:$0xff]
      %v1433 = vld [vmem:[%s1419 + $0x68] sm:$0xff]
      %v1434 = vld [vmem:[%s1419 + $0x70] sm:$0xff]
      %v1435 = vld [vmem:[%s1419 + $0x78] sm:$0xff]
      %1436 = vmatprep.subr.mxu0 0.0
      %1437 = vmatpush1.msra.mxu0 %v1420
      %1438 = vmatprep.subr.mxu0 0.0
      %1439 = vmatpush1.msra.mxu0 %v1421
      %1440 = vmatprep.subr.mxu0 0.0
      %1441 = vmatpush1.msra.mxu0 %v1422
      %1442 = vmatprep.subr.mxu0 0.0
      %1443 = vmatpush1.msra.mxu0 %v1423
      %1444 = vmatprep.subr.mxu0 0.0
      %1445 = vmatpush1.msra.mxu0 %v1424
      %1446 = vmatprep.subr.mxu0 0.0
      %1447 = vmatpush1.msra.mxu0 %v1425
      %1448 = vmatprep.subr.mxu0 0.0
      %1449 = vmatpush1.msra.mxu0 %v1426
      %1450 = vmatprep.subr.mxu0 0.0
      %1451 = vmatpush1.msra.mxu0 %v1427
      %1452 = vmatprep.subr.mxu0 0.0
      %1453 = vmatpush1.msra.mxu0 %v1428
      %1454 = vmatprep.subr.mxu0 0.0
      %1455 = vmatpush1.msra.mxu0 %v1429
      %1456 = vmatprep.subr.mxu0 0.0
      %1457 = vmatpush1.msra.mxu0 %v1430
      %1458 = vmatprep.subr.mxu0 0.0
      %1459 = vmatpush1.msra.mxu0 %v1431
      %1460 = vmatprep.subr.mxu0 0.0
      %1461 = vmatpush1.msra.mxu0 %v1432
      %1462 = vmatprep.subr.mxu0 0.0
      %1463 = vmatpush1.msra.mxu0 %v1433
      %1464 = vmatprep.subr.mxu0 0.0
      %1465 = vmatpush1.msra.mxu0 %v1434
      %1466 = vmatprep.subr.mxu0 0.0
      %1467 = vmatpush1.msra.mxu0 %v1435
      %1468 = vmatprep.subr.mxu0 0.0
      %1469 = vmatpush1.msra.mxu0 0.0
      %1470 = vmatprep.subr.mxu0 0.0
      %1471 = vmatpush1.msra.mxu0 0.0
      %1472 = vmatprep.subr.mxu0 0.0
      %1473 = vmatpush1.msra.mxu0 0.0
      %1474 = vmatprep.subr.mxu0 0.0
      %1475 = vmatpush1.msra.mxu0 0.0
      %1476 = vmatprep.subr.mxu0 0.0
      %1477 = vmatpush1.msra.mxu0 0.0
      %1478 = vmatprep.subr.mxu0 0.0
      %1479 = vmatpush1.msra.mxu0 0.0
      %1480 = vmatprep.subr.mxu0 0.0
      %1481 = vmatpush1.msra.mxu0 0.0
      %1482 = vmatprep.subr.mxu0 0.0
      %1483 = vmatpush1.msra.mxu0 0.0
      %1484 = vmatprep.subr.mxu0 0.0
      %1485 = vmatpush1.msra.mxu0 0.0
      %1486 = vmatprep.subr.mxu0 0.0
      %1487 = vmatpush1.msra.mxu0 0.0
      %1488 = vmatprep.subr.mxu0 0.0
      %1489 = vmatpush1.msra.mxu0 0.0
      %1490 = vmatprep.subr.mxu0 0.0
      %1491 = vmatpush1.msra.mxu0 0.0
      %1492 = vmatprep.subr.mxu0 0.0
      %1493 = vmatpush1.msra.mxu0 0.0
      %1494 = vmatprep.subr.mxu0 0.0
      %1495 = vmatpush1.msra.mxu0 0.0
      %1496 = vmatprep.subr.mxu0 0.0
      %1497 = vmatpush1.msra.mxu0 0.0
      %1498 = vmatprep.subr.mxu0 0.0
      %1499 = vmatpush1.msra.mxu0 0.0
      %1500 = vmatprep.mubr.f32.mxu0 0.0
      %1501 = vmatmul.mubr.f32.gmra.mrb[0].mxu0 %v1387
      %v1502 = vpop.f32.mrb[0].mxu0
      %v1503 = vadd.f32 0.0, %v1502
      %v1504 = vpop.f32.mrb[0].mxu0
      %1505 = vmatprep.mubr.f32.mxu0 0.0
      %1506 = vmatmul.mubr.f32.gmra.mrb[0].mxu0 %v1388
      %v1507 = vpop.f32.mrb[0].mxu0
      %v1508 = vadd.f32 0.0, %v1507
      %v1509 = vpop.f32.mrb[0].mxu0
      %1510 = vmatprep.mubr.f32.mxu0 0.0
      %1511 = vmatmul.mubr.f32.gmra.mrb[0].mxu0 %v1389
      %v1512 = vpop.f32.mrb[0].mxu0
      %v1513 = vadd.f32 0.0, %v1512
      %v1514 = vpop.f32.mrb[0].mxu0
      %1515 = vmatprep.mubr.f32.mxu0 0.0
      %1516 = vmatmul.mubr.f32.gmra.mrb[0].mxu0 %v1390
      %v1517 = vpop.f32.mrb[0].mxu0
      %v1518 = vadd.f32 0.0, %v1517
      %v1519 = vpop.f32.mrb[0].mxu0
      %1520 = vmatprep.mubr.f32.mxu0 0.0
      %1521 = vmatmul.mubr.f32.gmra.mrb[0].mxu0 %v1391
      %v1522 = vpop.f32.mrb[0].mxu0
      %v1523 = vadd.f32 0.0, %v1522
      %v1524 = vpop.f32.mrb[0].mxu0
      %1525 = vmatprep.mubr.f32.mxu0 0.0
      %1526 = vmatmul.mubr.f32.gmra.mrb[0].mxu0 %v1392
      %v1527 = vpop.f32.mrb[0].mxu0
      %v1528 = vadd.f32 0.0, %v1527
      %v1529 = vpop.f32.mrb[0].mxu0
      %1530 = vmatprep.mubr.f32.mxu0 0.0
      %1531 = vmatmul.mubr.f32.gmra.mrb[0].mxu0 %v1393
      %v1532 = vpop.f32.mrb[0].mxu0
      %v1533 = vadd.f32 0.0, %v1532
      %v1534 = vpop.f32.mrb[0].mxu0
      %1535 = vmatprep.mubr.f32.mxu0 0.0
      %1536 = vmatmul.mubr.f32.gmra.mrb[0].mxu0 %v1394
      %v1537 = vpop.f32.mrb[0].mxu0
      %v1538 = vadd.f32 0.0, %v1537
      %v1539 = vpop.f32.mrb[0].mxu0
      %1540 = vmatprep.mubr.f32.mxu0 0.0
      %1541 = vmatmul.mubr.f32.gmra.mrb[0].mxu0 %v1395
      %v1542 = vpop.f32.mrb[0].mxu0
      %v1543 = vadd.f32 0.0, %v1542
      %v1544 = vpop.f32.mrb[0].mxu0
      %1545 = vmatprep.mubr.f32.mxu0 0.0
      %1546 = vmatmul.mubr.f32.gmra.mrb[0].mxu0 %v1396
      %v1547 = vpop.f32.mrb[0].mxu0
      %v1548 = vadd.f32 0.0, %v1547
      %v1549 = vpop.f32.mrb[0].mxu0
      %1550 = vmatprep.mubr.f32.mxu0 0.0
      %1551 = vmatmul.mubr.f32.gmra.mrb[0].mxu0 %v1397
      %v1552 = vpop.f32.mrb[0].mxu0
      %v1553 = vadd.f32 0.0, %v1552
      %v1554 = vpop.f32.mrb[0].mxu0
      %1555 = vmatprep.mubr.f32.mxu0 0.0
      %1556 = vmatmul.mubr.f32.gmra.mrb[0].mxu0 %v1398
      %v1557 = vpop.f32.mrb[0].mxu0
      %v1558 = vadd.f32 0.0, %v1557
      %v1559 = vpop.f32.mrb[0].mxu0
      %1560 = vmatprep.mubr.f32.mxu0 0.0
      %1561 = vmatmul.mubr.f32.gmra.mrb[0].mxu0 %v1399
      %v1562 = vpop.f32.mrb[0].mxu0
      %v1563 = vadd.f32 0.0, %v1562
      %v1564 = vpop.f32.mrb[0].mxu0
      %1565 = vmatprep.mubr.f32.mxu0 0.0
      %1566 = vmatmul.mubr.f32.gmra.mrb[0].mxu0 %v1400
      %v1567 = vpop.f32.mrb[0].mxu0
      %v1568 = vadd.f32 0.0, %v1567
      %v1569 = vpop.f32.mrb[0].mxu0
      %1570 = vmatprep.mubr.f32.mxu0 0.0
      %1571 = vmatmul.mubr.f32.gmra.mrb[0].mxu0 %v1401
      %v1572 = vpop.f32.mrb[0].mxu0
      %v1573 = vadd.f32 0.0, %v1572
      %v1574 = vpop.f32.mrb[0].mxu0
      %1575 = vmatprep.mubr.f32.mxu0 0.0
      %1576 = vmatmul.mubr.f32.gmra.mrb[0].mxu0 %v1402
      %v1577 = vpop.f32.mrb[0].mxu0
      %v1578 = vadd.f32 0.0, %v1577
      %v1579 = vpop.f32.mrb[0].mxu0
      %1580 = vmatprep.mubr.f32.mxu0 0.0
      %1581 = vmatmul.mubr.f32.gmra.mrb[0].mxu0 %v1403
      %v1582 = vpop.f32.mrb[0].mxu0
      %v1583 = vadd.f32 0.0, %v1582
      %v1584 = vpop.f32.mrb[0].mxu0
      %1585 = vmatprep.mubr.f32.mxu0 0.0
      %1586 = vmatmul.mubr.f32.gmra.mrb[0].mxu0 %v1404
      %v1587 = vpop.f32.mrb[0].mxu0
      %v1588 = vadd.f32 0.0, %v1587
      %v1589 = vpop.f32.mrb[0].mxu0
      %1590 = vmatprep.mubr.f32.mxu0 0.0
      %1591 = vmatmul.mubr.f32.gmra.mrb[0].mxu0 %v1405
      %v1592 = vpop.f32.mrb[0].mxu0
      %v1593 = vadd.f32 0.0, %v1592
      %v1594 = vpop.f32.mrb[0].mxu0
      %1595 = vmatprep.mubr.f32.mxu0 0.0
      %1596 = vmatmul.mubr.f32.gmra.mrb[0].mxu0 %v1406
      %v1597 = vpop.f32.mrb[0].mxu0
      %v1598 = vadd.f32 0.0, %v1597
      %v1599 = vpop.f32.mrb[0].mxu0
      %1600 = vmatprep.mubr.f32.mxu0 0.0
      %1601 = vmatmul.mubr.f32.gmra.mrb[0].mxu0 %v1407
      %v1602 = vpop.f32.mrb[0].mxu0
      %v1603 = vadd.f32 0.0, %v1602
      %v1604 = vpop.f32.mrb[0].mxu0
      %1605 = vmatprep.mubr.f32.mxu0 0.0
      %1606 = vmatmul.mubr.f32.gmra.mrb[0].mxu0 %v1408
      %v1607 = vpop.f32.mrb[0].mxu0
      %v1608 = vadd.f32 0.0, %v1607
      %v1609 = vpop.f32.mrb[0].mxu0
      %1610 = vmatprep.mubr.f32.mxu0 0.0
      %1611 = vmatmul.mubr.f32.gmra.mrb[0].mxu0 %v1409
      %v1612 = vpop.f32.mrb[0].mxu0
      %v1613 = vadd.f32 0.0, %v1612
      %v1614 = vpop.f32.mrb[0].mxu0
      %1615 = vmatprep.mubr.f32.mxu0 0.0
      %1616 = vmatmul.mubr.f32.gmra.mrb[0].mxu0 %v1410
      %v1617 = vpop.f32.mrb[0].mxu0
      %v1618 = vadd.f32 0.0, %v1617
      %v1619 = vpop.f32.mrb[0].mxu0
      %1620 = vmatprep.mubr.f32.mxu0 0.0
      %1621 = vmatmul.mubr.f32.gmra.mrb[0].mxu0 %v1411
      %v1622 = vpop.f32.mrb[0].mxu0
      %v1623 = vadd.f32 0.0, %v1622
      %v1624 = vpop.f32.mrb[0].mxu0
      %1625 = vmatprep.mubr.f32.mxu0 0.0
      %1626 = vmatmul.mubr.f32.gmra.mrb[0].mxu0 %v1412
      %v1627 = vpop.f32.mrb[0].mxu0
      %v1628 = vadd.f32 0.0, %v1627
      %v1629 = vpop.f32.mrb[0].mxu0
      %1630 = vmatprep.mubr.f32.mxu0 0.0
      %1631 = vmatmul.mubr.f32.gmra.mrb[0].mxu0 %v1413
      %v1632 = vpop.f32.mrb[0].mxu0
      %v1633 = vadd.f32 0.0, %v1632
      %v1634 = vpop.f32.mrb[0].mxu0
      %1635 = vmatprep.mubr.f32.mxu0 0.0
      %1636 = vmatmul.mubr.f32.gmra.mrb[0].mxu0 %v1414
      %v1637 = vpop.f32.mrb[0].mxu0
      %v1638 = vadd.f32 0.0, %v1637
      %v1639 = vpop.f32.mrb[0].mxu0
      %1640 = vmatprep.mubr.f32.mxu0 0.0
      %1641 = vmatmul.mubr.f32.gmra.mrb[0].mxu0 %v1415
      %v1642 = vpop.f32.mrb[0].mxu0
      %v1643 = vadd.f32 0.0, %v1642
      %v1644 = vpop.f32.mrb[0].mxu0
      %1645 = vmatprep.mubr.f32.mxu0 0.0
      %1646 = vmatmul.mubr.f32.gmra.mrb[0].mxu0 %v1416
      %v1647 = vpop.f32.mrb[0].mxu0
      %v1648 = vadd.f32 0.0, %v1647
      %v1649 = vpop.f32.mrb[0].mxu0
      %1650 = vmatprep.mubr.f32.mxu0 0.0
      %1651 = vmatmul.mubr.f32.gmra.mrb[0].mxu0 %v1417
      %v1652 = vpop.f32.mrb[0].mxu0
      %v1653 = vadd.f32 0.0, %v1652
      %v1654 = vpop.f32.mrb[0].mxu0
      %1655 = vmatprep.mubr.f32.mxu0 0.0
      %1656 = vmatmul.mubr.f32.gmra.mrb[0].mxu0 %v1418
      %v1657 = vpop.f32.mrb[0].mxu0
      %v1658 = vadd.f32 0.0, %v1657
      %v1659 = vpop.f32.mrb[0].mxu0
      %1660 = vdwg.mxu0
      %v1661 = vadd.f32 %v1355, %v1503
      %v1662 = vadd.f32 %v1356, %v1508
      %v1663 = vadd.f32 %v1357, %v1513
      %v1664 = vadd.f32 %v1358, %v1518
      %v1665 = vadd.f32 %v1359, %v1523
      %v1666 = vadd.f32 %v1360, %v1528
      %v1667 = vadd.f32 %v1361, %v1533
      %v1668 = vadd.f32 %v1362, %v1538
      %v1669 = vadd.f32 %v1363, %v1543
      %v1670 = vadd.f32 %v1364, %v1548
      %v1671 = vadd.f32 %v1365, %v1553
      %v1672 = vadd.f32 %v1366, %v1558
      %v1673 = vadd.f32 %v1367, %v1563
      %v1674 = vadd.f32 %v1368, %v1568
      %v1675 = vadd.f32 %v1369, %v1573
      %v1676 = vadd.f32 %v1370, %v1578
      %v1677 = vadd.f32 %v1371, %v1583
      %v1678 = vadd.f32 %v1372, %v1588
      %v1679 = vadd.f32 %v1373, %v1593
      %v1680 = vadd.f32 %v1374, %v1598
      %v1681 = vadd.f32 %v1375, %v1603
      %v1682 = vadd.f32 %v1376, %v1608
      %v1683 = vadd.f32 %v1377, %v1613
      %v1684 = vadd.f32 %v1378, %v1618
      %v1685 = vadd.f32 %v1379, %v1623
      %v1686 = vadd.f32 %v1380, %v1628
      %v1687 = vadd.f32 %v1381, %v1633
      %v1688 = vadd.f32 %v1382, %v1638
      %v1689 = vadd.f32 %v1383, %v1643
      %v1690 = vadd.f32 %v1384, %v1648
      %v1691 = vadd.f32 %v1385, %v1653
      %v1692 = vadd.f32 %v1386, %v1658
      %v1693 = vld [vmem:[%s220 + $0x12] sm:$0xff]
      %v1694 = vld [vmem:[%s220 + $0x1a] sm:$0xff]
      %v1695 = vld [vmem:[%s220 + $0x22] sm:$0xff]
      %v1696 = vld [vmem:[%s220 + $0x2a] sm:$0xff]
      %v1697 = vld [vmem:[%s220 + $0x32] sm:$0xff]
      %v1698 = vld [vmem:[%s220 + $0x3a] sm:$0xff]
      %v1699 = vld [vmem:[%s220 + $0x42] sm:$0xff]
      %v1700 = vld [vmem:[%s220 + $0x4a] sm:$0xff]
      %v1701 = vld [vmem:[%s220 + $0x52] sm:$0xff]
      %v1702 = vld [vmem:[%s220 + $0x5a] sm:$0xff]
      %v1703 = vld [vmem:[%s220 + $0x62] sm:$0xff]
      %v1704 = vld [vmem:[%s220 + $0x6a] sm:$0xff]
      %v1705 = vld [vmem:[%s220 + $0x72] sm:$0xff]
      %v1706 = vld [vmem:[%s220 + $0x7a] sm:$0xff]
      %v1707 = vld [vmem:[%s220 + $0x82] sm:$0xff]
      %v1708 = vld [vmem:[%s220 + $0x8a] sm:$0xff]
      %v1709 = vld [vmem:[%s220 + $0x92] sm:$0xff]
      %v1710 = vld [vmem:[%s220 + $0x9a] sm:$0xff]
      %v1711 = vld [vmem:[%s220 + $0xa2] sm:$0xff]
      %v1712 = vld [vmem:[%s220 + $0xaa] sm:$0xff]
      %v1713 = vld [vmem:[%s220 + $0xb2] sm:$0xff]
      %v1714 = vld [vmem:[%s220 + $0xba] sm:$0xff]
      %v1715 = vld [vmem:[%s220 + $0xc2] sm:$0xff]
      %v1716 = vld [vmem:[%s220 + $0xca] sm:$0xff]
      %v1717 = vld [vmem:[%s220 + $0xd2] sm:$0xff]
      %v1718 = vld [vmem:[%s220 + $0xda] sm:$0xff]
      %v1719 = vld [vmem:[%s220 + $0xe2] sm:$0xff]
      %v1720 = vld [vmem:[%s220 + $0xea] sm:$0xff]
      %v1721 = vld [vmem:[%s220 + $0xf2] sm:$0xff]
      %v1722 = vld [vmem:[%s220 + $0xfa] sm:$0xff]
      %v1723 = vld [vmem:[%s220 + $0x102] sm:$0xff]
      %v1724 = vld [vmem:[%s220 + $0x10a] sm:$0xff]
      %s1725 = scalar_lea.vmem %s1, 640
      %v1726 = vld [vmem:[%s1725] sm:$0xff]
      %v1727 = vld [vmem:[%s1725 + $0x8] sm:$0xff]
      %v1728 = vld [vmem:[%s1725 + $0x10] sm:$0xff]
      %v1729 = vld [vmem:[%s1725 + $0x18] sm:$0xff]
      %v1730 = vld [vmem:[%s1725 + $0x20] sm:$0xff]
      %v1731 = vld [vmem:[%s1725 + $0x28] sm:$0xff]
      %v1732 = vld [vmem:[%s1725 + $0x30] sm:$0xff]
      %v1733 = vld [vmem:[%s1725 + $0x38] sm:$0xff]
      %v1734 = vld [vmem:[%s1725 + $0x40] sm:$0xff]
      %v1735 = vld [vmem:[%s1725 + $0x48] sm:$0xff]
      %v1736 = vld [vmem:[%s1725 + $0x50] sm:$0xff]
      %v1737 = vld [vmem:[%s1725 + $0x58] sm:$0xff]
      %v1738 = vld [vmem:[%s1725 + $0x60] sm:$0xff]
      %v1739 = vld [vmem:[%s1725 + $0x68] sm:$0xff]
      %v1740 = vld [vmem:[%s1725 + $0x70] sm:$0xff]
      %v1741 = vld [vmem:[%s1725 + $0x78] sm:$0xff]
      %1742 = vmatprep.subr.mxu0 0.0
      %1743 = vmatpush1.msra.mxu0 %v1726
      %1744 = vmatprep.subr.mxu0 0.0
      %1745 = vmatpush1.msra.mxu0 %v1727
      %1746 = vmatprep.subr.mxu0 0.0
      %1747 = vmatpush1.msra.mxu0 %v1728
      %1748 = vmatprep.subr.mxu0 0.0
      %1749 = vmatpush1.msra.mxu0 %v1729
      %1750 = vmatprep.subr.mxu0 0.0
      %1751 = vmatpush1.msra.mxu0 %v1730
      %1752 = vmatprep.subr.mxu0 0.0
      %1753 = vmatpush1.msra.mxu0 %v1731
      %1754 = vmatprep.subr.mxu0 0.0
      %1755 = vmatpush1.msra.mxu0 %v1732
      %1756 = vmatprep.subr.mxu0 0.0
      %1757 = vmatpush1.msra.mxu0 %v1733
      %1758 = vmatprep.subr.mxu0 0.0
      %1759 = vmatpush1.msra.mxu0 %v1734
      %1760 = vmatprep.subr.mxu0 0.0
      %1761 = vmatpush1.msra.mxu0 %v1735
      %1762 = vmatprep.subr.mxu0 0.0
      %1763 = vmatpush1.msra.mxu0 %v1736
      %1764 = vmatprep.subr.mxu0 0.0
      %1765 = vmatpush1.msra.mxu0 %v1737
      %1766 = vmatprep.subr.mxu0 0.0
      %1767 = vmatpush1.msra.mxu0 %v1738
      %1768 = vmatprep.subr.mxu0 0.0
      %1769 = vmatpush1.msra.mxu0 %v1739
      %1770 = vmatprep.subr.mxu0 0.0
      %1771 = vmatpush1.msra.mxu0 %v1740
      %1772 = vmatprep.subr.mxu0 0.0
      %1773 = vmatpush1.msra.mxu0 %v1741
      %1774 = vmatprep.subr.mxu0 0.0
      %1775 = vmatpush1.msra.mxu0 0.0
      %1776 = vmatprep.subr.mxu0 0.0
      %1777 = vmatpush1.msra.mxu0 0.0
      %1778 = vmatprep.subr.mxu0 0.0
      %1779 = vmatpush1.msra.mxu0 0.0
      %1780 = vmatprep.subr.mxu0 0.0
      %1781 = vmatpush1.msra.mxu0 0.0
      %1782 = vmatprep.subr.mxu0 0.0
      %1783 = vmatpush1.msra.mxu0 0.0
      %1784 = vmatprep.subr.mxu0 0.0
      %1785 = vmatpush1.msra.mxu0 0.0
      %1786 = vmatprep.subr.mxu0 0.0
      %1787 = vmatpush1.msra.mxu0 0.0
      %1788 = vmatprep.subr.mxu0 0.0
      %1789 = vmatpush1.msra.mxu0 0.0
      %1790 = vmatprep.subr.mxu0 0.0
      %1791 = vmatpush1.msra.mxu0 0.0
      %1792 = vmatprep.subr.mxu0 0.0
      %1793 = vmatpush1.msra.mxu0 0.0
      %1794 = vmatprep.subr.mxu0 0.0
      %1795 = vmatpush1.msra.mxu0 0.0
      %1796 = vmatprep.subr.mxu0 0.0
      %1797 = vmatpush1.msra.mxu0 0.0
      %1798 = vmatprep.subr.mxu0 0.0
      %1799 = vmatpush1.msra.mxu0 0.0
      %1800 = vmatprep.subr.mxu0 0.0
      %1801 = vmatpush1.msra.mxu0 0.0
      %1802 = vmatprep.subr.mxu0 0.0
      %1803 = vmatpush1.msra.mxu0 0.0
      %1804 = vmatprep.subr.mxu0 0.0
      %1805 = vmatpush1.msra.mxu0 0.0
      %1806 = vmatprep.mubr.f32.mxu0 0.0
      %1807 = vmatmul.mubr.f32.gmra.mrb[0].mxu0 %v1693
      %v1808 = vpop.f32.mrb[0].mxu0
      %v1809 = vadd.f32 0.0, %v1808
      %v1810 = vpop.f32.mrb[0].mxu0
      %1811 = vmatprep.mubr.f32.mxu0 0.0
      %1812 = vmatmul.mubr.f32.gmra.mrb[0].mxu0 %v1694
      %v1813 = vpop.f32.mrb[0].mxu0
      %v1814 = vadd.f32 0.0, %v1813
      %v1815 = vpop.f32.mrb[0].mxu0
      %1816 = vmatprep.mubr.f32.mxu0 0.0
      %1817 = vmatmul.mubr.f32.gmra.mrb[0].mxu0 %v1695
      %v1818 = vpop.f32.mrb[0].mxu0
      %v1819 = vadd.f32 0.0, %v1818
      %v1820 = vpop.f32.mrb[0].mxu0
      %1821 = vmatprep.mubr.f32.mxu0 0.0
      %1822 = vmatmul.mubr.f32.gmra.mrb[0].mxu0 %v1696
      %v1823 = vpop.f32.mrb[0].mxu0
      %v1824 = vadd.f32 0.0, %v1823
      %v1825 = vpop.f32.mrb[0].mxu0
      %1826 = vmatprep.mubr.f32.mxu0 0.0
      %1827 = vmatmul.mubr.f32.gmra.mrb[0].mxu0 %v1697
      %v1828 = vpop.f32.mrb[0].mxu0
      %v1829 = vadd.f32 0.0, %v1828
      %v1830 = vpop.f32.mrb[0].mxu0
      %1831 = vmatprep.mubr.f32.mxu0 0.0
      %1832 = vmatmul.mubr.f32.gmra.mrb[0].mxu0 %v1698
      %v1833 = vpop.f32.mrb[0].mxu0
      %v1834 = vadd.f32 0.0, %v1833
      %v1835 = vpop.f32.mrb[0].mxu0
      %1836 = vmatprep.mubr.f32.mxu0 0.0
      %1837 = vmatmul.mubr.f32.gmra.mrb[0].mxu0 %v1699
      %v1838 = vpop.f32.mrb[0].mxu0
      %v1839 = vadd.f32 0.0, %v1838
      %v1840 = vpop.f32.mrb[0].mxu0
      %1841 = vmatprep.mubr.f32.mxu0 0.0
      %1842 = vmatmul.mubr.f32.gmra.mrb[0].mxu0 %v1700
      %v1843 = vpop.f32.mrb[0].mxu0
      %v1844 = vadd.f32 0.0, %v1843
      %v1845 = vpop.f32.mrb[0].mxu0
      %1846 = vmatprep.mubr.f32.mxu0 0.0
      %1847 = vmatmul.mubr.f32.gmra.mrb[0].mxu0 %v1701
      %v1848 = vpop.f32.mrb[0].mxu0
      %v1849 = vadd.f32 0.0, %v1848
      %v1850 = vpop.f32.mrb[0].mxu0
      %1851 = vmatprep.mubr.f32.mxu0 0.0
      %1852 = vmatmul.mubr.f32.gmra.mrb[0].mxu0 %v1702
      %v1853 = vpop.f32.mrb[0].mxu0
      %v1854 = vadd.f32 0.0, %v1853
      %v1855 = vpop.f32.mrb[0].mxu0
      %1856 = vmatprep.mubr.f32.mxu0 0.0
      %1857 = vmatmul.mubr.f32.gmra.mrb[0].mxu0 %v1703
      %v1858 = vpop.f32.mrb[0].mxu0
      %v1859 = vadd.f32 0.0, %v1858
      %v1860 = vpop.f32.mrb[0].mxu0
      %1861 = vmatprep.mubr.f32.mxu0 0.0
      %1862 = vmatmul.mubr.f32.gmra.mrb[0].mxu0 %v1704
      %v1863 = vpop.f32.mrb[0].mxu0
      %v1864 = vadd.f32 0.0, %v1863
      %v1865 = vpop.f32.mrb[0].mxu0
      %1866 = vmatprep.mubr.f32.mxu0 0.0
      %1867 = vmatmul.mubr.f32.gmra.mrb[0].mxu0 %v1705
      %v1868 = vpop.f32.mrb[0].mxu0
      %v1869 = vadd.f32 0.0, %v1868
      %v1870 = vpop.f32.mrb[0].mxu0
      %1871 = vmatprep.mubr.f32.mxu0 0.0
      %1872 = vmatmul.mubr.f32.gmra.mrb[0].mxu0 %v1706
      %v1873 = vpop.f32.mrb[0].mxu0
      %v1874 = vadd.f32 0.0, %v1873
      %v1875 = vpop.f32.mrb[0].mxu0
      %1876 = vmatprep.mubr.f32.mxu0 0.0
      %1877 = vmatmul.mubr.f32.gmra.mrb[0].mxu0 %v1707
      %v1878 = vpop.f32.mrb[0].mxu0
      %v1879 = vadd.f32 0.0, %v1878
      %v1880 = vpop.f32.mrb[0].mxu0
      %1881 = vmatprep.mubr.f32.mxu0 0.0
      %1882 = vmatmul.mubr.f32.gmra.mrb[0].mxu0 %v1708
      %v1883 = vpop.f32.mrb[0].mxu0
      %v1884 = vadd.f32 0.0, %v1883
      %v1885 = vpop.f32.mrb[0].mxu0
      %1886 = vmatprep.mubr.f32.mxu0 0.0
      %1887 = vmatmul.mubr.f32.gmra.mrb[0].mxu0 %v1709
      %v1888 = vpop.f32.mrb[0].mxu0
      %v1889 = vadd.f32 0.0, %v1888
      %v1890 = vpop.f32.mrb[0].mxu0
      %1891 = vmatprep.mubr.f32.mxu0 0.0
      %1892 = vmatmul.mubr.f32.gmra.mrb[0].mxu0 %v1710
      %v1893 = vpop.f32.mrb[0].mxu0
      %v1894 = vadd.f32 0.0, %v1893
      %v1895 = vpop.f32.mrb[0].mxu0
      %1896 = vmatprep.mubr.f32.mxu0 0.0
      %1897 = vmatmul.mubr.f32.gmra.mrb[0].mxu0 %v1711
      %v1898 = vpop.f32.mrb[0].mxu0
      %v1899 = vadd.f32 0.0, %v1898
      %v1900 = vpop.f32.mrb[0].mxu0
      %1901 = vmatprep.mubr.f32.mxu0 0.0
      %1902 = vmatmul.mubr.f32.gmra.mrb[0].mxu0 %v1712
      %v1903 = vpop.f32.mrb[0].mxu0
      %v1904 = vadd.f32 0.0, %v1903
      %v1905 = vpop.f32.mrb[0].mxu0
      %1906 = vmatprep.mubr.f32.mxu0 0.0
      %1907 = vmatmul.mubr.f32.gmra.mrb[0].mxu0 %v1713
      %v1908 = vpop.f32.mrb[0].mxu0
      %v1909 = vadd.f32 0.0, %v1908
      %v1910 = vpop.f32.mrb[0].mxu0
      %1911 = vmatprep.mubr.f32.mxu0 0.0
      %1912 = vmatmul.mubr.f32.gmra.mrb[0].mxu0 %v1714
      %v1913 = vpop.f32.mrb[0].mxu0
      %v1914 = vadd.f32 0.0, %v1913
      %v1915 = vpop.f32.mrb[0].mxu0
      %1916 = vmatprep.mubr.f32.mxu0 0.0
      %1917 = vmatmul.mubr.f32.gmra.mrb[0].mxu0 %v1715
      %v1918 = vpop.f32.mrb[0].mxu0
      %v1919 = vadd.f32 0.0, %v1918
      %v1920 = vpop.f32.mrb[0].mxu0
      %1921 = vmatprep.mubr.f32.mxu0 0.0
      %1922 = vmatmul.mubr.f32.gmra.mrb[0].mxu0 %v1716
      %v1923 = vpop.f32.mrb[0].mxu0
      %v1924 = vadd.f32 0.0, %v1923
      %v1925 = vpop.f32.mrb[0].mxu0
      %1926 = vmatprep.mubr.f32.mxu0 0.0
      %1927 = vmatmul.mubr.f32.gmra.mrb[0].mxu0 %v1717
      %v1928 = vpop.f32.mrb[0].mxu0
      %v1929 = vadd.f32 0.0, %v1928
      %v1930 = vpop.f32.mrb[0].mxu0
      %1931 = vmatprep.mubr.f32.mxu0 0.0
      %1932 = vmatmul.mubr.f32.gmra.mrb[0].mxu0 %v1718
      %v1933 = vpop.f32.mrb[0].mxu0
      %v1934 = vadd.f32 0.0, %v1933
      %v1935 = vpop.f32.mrb[0].mxu0
      %1936 = vmatprep.mubr.f32.mxu0 0.0
      %1937 = vmatmul.mubr.f32.gmra.mrb[0].mxu0 %v1719
      %v1938 = vpop.f32.mrb[0].mxu0
      %v1939 = vadd.f32 0.0, %v1938
      %v1940 = vpop.f32.mrb[0].mxu0
      %1941 = vmatprep.mubr.f32.mxu0 0.0
      %1942 = vmatmul.mubr.f32.gmra.mrb[0].mxu0 %v1720
      %v1943 = vpop.f32.mrb[0].mxu0
      %v1944 = vadd.f32 0.0, %v1943
      %v1945 = vpop.f32.mrb[0].mxu0
      %1946 = vmatprep.mubr.f32.mxu0 0.0
      %1947 = vmatmul.mubr.f32.gmra.mrb[0].mxu0 %v1721
      %v1948 = vpop.f32.mrb[0].mxu0
      %v1949 = vadd.f32 0.0, %v1948
      %v1950 = vpop.f32.mrb[0].mxu0
      %1951 = vmatprep.mubr.f32.mxu0 0.0
      %1952 = vmatmul.mubr.f32.gmra.mrb[0].mxu0 %v1722
      %v1953 = vpop.f32.mrb[0].mxu0
      %v1954 = vadd.f32 0.0, %v1953
      %v1955 = vpop.f32.mrb[0].mxu0
      %1956 = vmatprep.mubr.f32.mxu0 0.0
      %1957 = vmatmul.mubr.f32.gmra.mrb[0].mxu0 %v1723
      %v1958 = vpop.f32.mrb[0].mxu0
      %v1959 = vadd.f32 0.0, %v1958
      %v1960 = vpop.f32.mrb[0].mxu0
      %1961 = vmatprep.mubr.f32.mxu0 0.0
      %1962 = vmatmul.mubr.f32.gmra.mrb[0].mxu0 %v1724
      %v1963 = vpop.f32.mrb[0].mxu0
      %v1964 = vadd.f32 0.0, %v1963
      %v1965 = vpop.f32.mrb[0].mxu0
      %1966 = vdwg.mxu0
      %v1967 = vadd.f32 %v1661, %v1809
      %v1968 = vadd.f32 %v1662, %v1814
      %v1969 = vadd.f32 %v1663, %v1819
      %v1970 = vadd.f32 %v1664, %v1824
      %v1971 = vadd.f32 %v1665, %v1829
      %v1972 = vadd.f32 %v1666, %v1834
      %v1973 = vadd.f32 %v1667, %v1839
      %v1974 = vadd.f32 %v1668, %v1844
      %v1975 = vadd.f32 %v1669, %v1849
      %v1976 = vadd.f32 %v1670, %v1854
      %v1977 = vadd.f32 %v1671, %v1859
      %v1978 = vadd.f32 %v1672, %v1864
      %v1979 = vadd.f32 %v1673, %v1869
      %v1980 = vadd.f32 %v1674, %v1874
      %v1981 = vadd.f32 %v1675, %v1879
      %v1982 = vadd.f32 %v1676, %v1884
      %v1983 = vadd.f32 %v1677, %v1889
      %v1984 = vadd.f32 %v1678, %v1894
      %v1985 = vadd.f32 %v1679, %v1899
      %v1986 = vadd.f32 %v1680, %v1904
      %v1987 = vadd.f32 %v1681, %v1909
      %v1988 = vadd.f32 %v1682, %v1914
      %v1989 = vadd.f32 %v1683, %v1919
      %v1990 = vadd.f32 %v1684, %v1924
      %v1991 = vadd.f32 %v1685, %v1929
      %v1992 = vadd.f32 %v1686, %v1934
      %v1993 = vadd.f32 %v1687, %v1939
      %v1994 = vadd.f32 %v1688, %v1944
      %v1995 = vadd.f32 %v1689, %v1949
      %v1996 = vadd.f32 %v1690, %v1954
      %v1997 = vadd.f32 %v1691, %v1959
      %v1998 = vadd.f32 %v1692, %v1964
      %v1999 = vld [vmem:[%s220 + $0x20] sm:$0xff]
      %v2000 = vld [vmem:[%s220 + $0x28] sm:$0xff]
      %v2001 = vld [vmem:[%s220 + $0x30] sm:$0xff]
      %v2002 = vld [vmem:[%s220 + $0x38] sm:$0xff]
      %v2003 = vld [vmem:[%s220 + $0x40] sm:$0xff]
      %v2004 = vld [vmem:[%s220 + $0x48] sm:$0xff]
      %v2005 = vld [vmem:[%s220 + $0x50] sm:$0xff]
      %v2006 = vld [vmem:[%s220 + $0x58] sm:$0xff]
      %v2007 = vld [vmem:[%s220 + $0x60] sm:$0xff]
      %v2008 = vld [vmem:[%s220 + $0x68] sm:$0xff]
      %v2009 = vld [vmem:[%s220 + $0x70] sm:$0xff]
      %v2010 = vld [vmem:[%s220 + $0x78] sm:$0xff]
      %v2011 = vld [vmem:[%s220 + $0x80] sm:$0xff]
      %v2012 = vld [vmem:[%s220 + $0x88] sm:$0xff]
      %v2013 = vld [vmem:[%s220 + $0x90] sm:$0xff]
      %v2014 = vld [vmem:[%s220 + $0x98] sm:$0xff]
      %v2015 = vld [vmem:[%s220 + $0xa0] sm:$0xff]
      %v2016 = vld [vmem:[%s220 + $0xa8] sm:$0xff]
      %v2017 = vld [vmem:[%s220 + $0xb0] sm:$0xff]
      %v2018 = vld [vmem:[%s220 + $0xb8] sm:$0xff]
      %v2019 = vld [vmem:[%s220 + $0xc0] sm:$0xff]
      %v2020 = vld [vmem:[%s220 + $0xc8] sm:$0xff]
      %v2021 = vld [vmem:[%s220 + $0xd0] sm:$0xff]
      %v2022 = vld [vmem:[%s220 + $0xd8] sm:$0xff]
      %v2023 = vld [vmem:[%s220 + $0xe0] sm:$0xff]
      %v2024 = vld [vmem:[%s220 + $0xe8] sm:$0xff]
      %v2025 = vld [vmem:[%s220 + $0xf0] sm:$0xff]
      %v2026 = vld [vmem:[%s220 + $0xf8] sm:$0xff]
      %v2027 = vld [vmem:[%s220 + $0x100] sm:$0xff]
      %v2028 = vld [vmem:[%s220 + $0x108] sm:$0xff]
      %v2029 = vld [vmem:[%s220 + $0x110] sm:$0xff]
      %v2030 = vld [vmem:[%s220 + $0x118] sm:$0xff]
      %s2031 = scalar_lea.vmem %s1, 768
      %v2032 = vld [vmem:[%s2031] sm:$0xff]
      %v2033 = vld [vmem:[%s2031 + $0x8] sm:$0xff]
      %v2034 = vld [vmem:[%s2031 + $0x10] sm:$0xff]
      %v2035 = vld [vmem:[%s2031 + $0x18] sm:$0xff]
      %v2036 = vld [vmem:[%s2031 + $0x20] sm:$0xff]
      %v2037 = vld [vmem:[%s2031 + $0x28] sm:$0xff]
      %v2038 = vld [vmem:[%s2031 + $0x30] sm:$0xff]
      %v2039 = vld [vmem:[%s2031 + $0x38] sm:$0xff]
      %v2040 = vld [vmem:[%s2031 + $0x40] sm:$0xff]
      %v2041 = vld [vmem:[%s2031 + $0x48] sm:$0xff]
      %v2042 = vld [vmem:[%s2031 + $0x50] sm:$0xff]
      %v2043 = vld [vmem:[%s2031 + $0x58] sm:$0xff]
      %v2044 = vld [vmem:[%s2031 + $0x60] sm:$0xff]
      %v2045 = vld [vmem:[%s2031 + $0x68] sm:$0xff]
      %v2046 = vld [vmem:[%s2031 + $0x70] sm:$0xff]
      %v2047 = vld [vmem:[%s2031 + $0x78] sm:$0xff]
      %2048 = vmatprep.subr.mxu0 0.0
      %2049 = vmatpush1.msra.mxu0 %v2032
      %2050 = vmatprep.subr.mxu0 0.0
      %2051 = vmatpush1.msra.mxu0 %v2033
      %2052 = vmatprep.subr.mxu0 0.0
      %2053 = vmatpush1.msra.mxu0 %v2034
      %2054 = vmatprep.subr.mxu0 0.0
      %2055 = vmatpush1.msra.mxu0 %v2035
      %2056 = vmatprep.subr.mxu0 0.0
      %2057 = vmatpush1.msra.mxu0 %v2036
      %2058 = vmatprep.subr.mxu0 0.0
      %2059 = vmatpush1.msra.mxu0 %v2037
      %2060 = vmatprep.subr.mxu0 0.0
      %2061 = vmatpush1.msra.mxu0 %v2038
      %2062 = vmatprep.subr.mxu0 0.0
      %2063 = vmatpush1.msra.mxu0 %v2039
      %2064 = vmatprep.subr.mxu0 0.0
      %2065 = vmatpush1.msra.mxu0 %v2040
      %2066 = vmatprep.subr.mxu0 0.0
      %2067 = vmatpush1.msra.mxu0 %v2041
      %2068 = vmatprep.subr.mxu0 0.0
      %2069 = vmatpush1.msra.mxu0 %v2042
      %2070 = vmatprep.subr.mxu0 0.0
      %2071 = vmatpush1.msra.mxu0 %v2043
      %2072 = vmatprep.subr.mxu0 0.0
      %2073 = vmatpush1.msra.mxu0 %v2044
      %2074 = vmatprep.subr.mxu0 0.0
      %2075 = vmatpush1.msra.mxu0 %v2045
      %2076 = vmatprep.subr.mxu0 0.0
      %2077 = vmatpush1.msra.mxu0 %v2046
      %2078 = vmatprep.subr.mxu0 0.0
      %2079 = vmatpush1.msra.mxu0 %v2047
      %2080 = vmatprep.subr.mxu0 0.0
      %2081 = vmatpush1.msra.mxu0 0.0
      %2082 = vmatprep.subr.mxu0 0.0
      %2083 = vmatpush1.msra.mxu0 0.0
      %2084 = vmatprep.subr.mxu0 0.0
      %2085 = vmatpush1.msra.mxu0 0.0
      %2086 = vmatprep.subr.mxu0 0.0
      %2087 = vmatpush1.msra.mxu0 0.0
      %2088 = vmatprep.subr.mxu0 0.0
      %2089 = vmatpush1.msra.mxu0 0.0
      %2090 = vmatprep.subr.mxu0 0.0
      %2091 = vmatpush1.msra.mxu0 0.0
      %2092 = vmatprep.subr.mxu0 0.0
      %2093 = vmatpush1.msra.mxu0 0.0
      %2094 = vmatprep.subr.mxu0 0.0
      %2095 = vmatpush1.msra.mxu0 0.0
      %2096 = vmatprep.subr.mxu0 0.0
      %2097 = vmatpush1.msra.mxu0 0.0
      %2098 = vmatprep.subr.mxu0 0.0
      %2099 = vmatpush1.msra.mxu0 0.0
      %2100 = vmatprep.subr.mxu0 0.0
      %2101 = vmatpush1.msra.mxu0 0.0
      %2102 = vmatprep.subr.mxu0 0.0
      %2103 = vmatpush1.msra.mxu0 0.0
      %2104 = vmatprep.subr.mxu0 0.0
      %2105 = vmatpush1.msra.mxu0 0.0
      %2106 = vmatprep.subr.mxu0 0.0
      %2107 = vmatpush1.msra.mxu0 0.0
      %2108 = vmatprep.subr.mxu0 0.0
      %2109 = vmatpush1.msra.mxu0 0.0
      %2110 = vmatprep.subr.mxu0 0.0
      %2111 = vmatpush1.msra.mxu0 0.0
      %2112 = vmatprep.mubr.f32.mxu0 0.0
      %2113 = vmatmul.mubr.f32.gmra.mrb[0].mxu0 %v1999
      %v2114 = vpop.f32.mrb[0].mxu0
      %v2115 = vadd.f32 0.0, %v2114
      %v2116 = vpop.f32.mrb[0].mxu0
      %2117 = vmatprep.mubr.f32.mxu0 0.0
      %2118 = vmatmul.mubr.f32.gmra.mrb[0].mxu0 %v2000
      %v2119 = vpop.f32.mrb[0].mxu0
      %v2120 = vadd.f32 0.0, %v2119
      %v2121 = vpop.f32.mrb[0].mxu0
      %2122 = vmatprep.mubr.f32.mxu0 0.0
      %2123 = vmatmul.mubr.f32.gmra.mrb[0].mxu0 %v2001
      %v2124 = vpop.f32.mrb[0].mxu0
      %v2125 = vadd.f32 0.0, %v2124
      %v2126 = vpop.f32.mrb[0].mxu0
      %2127 = vmatprep.mubr.f32.mxu0 0.0
      %2128 = vmatmul.mubr.f32.gmra.mrb[0].mxu0 %v2002
      %v2129 = vpop.f32.mrb[0].mxu0
      %v2130 = vadd.f32 0.0, %v2129
      %v2131 = vpop.f32.mrb[0].mxu0
      %2132 = vmatprep.mubr.f32.mxu0 0.0
      %2133 = vmatmul.mubr.f32.gmra.mrb[0].mxu0 %v2003
      %v2134 = vpop.f32.mrb[0].mxu0
      %v2135 = vadd.f32 0.0, %v2134
      %v2136 = vpop.f32.mrb[0].mxu0
      %2137 = vmatprep.mubr.f32.mxu0 0.0
      %2138 = vmatmul.mubr.f32.gmra.mrb[0].mxu0 %v2004
      %v2139 = vpop.f32.mrb[0].mxu0
      %v2140 = vadd.f32 0.0, %v2139
      %v2141 = vpop.f32.mrb[0].mxu0
      %2142 = vmatprep.mubr.f32.mxu0 0.0
      %2143 = vmatmul.mubr.f32.gmra.mrb[0].mxu0 %v2005
      %v2144 = vpop.f32.mrb[0].mxu0
      %v2145 = vadd.f32 0.0, %v2144
      %v2146 = vpop.f32.mrb[0].mxu0
      %2147 = vmatprep.mubr.f32.mxu0 0.0
      %2148 = vmatmul.mubr.f32.gmra.mrb[0].mxu0 %v2006
      %v2149 = vpop.f32.mrb[0].mxu0
      %v2150 = vadd.f32 0.0, %v2149
      %v2151 = vpop.f32.mrb[0].mxu0
      %2152 = vmatprep.mubr.f32.mxu0 0.0
      %2153 = vmatmul.mubr.f32.gmra.mrb[0].mxu0 %v2007
      %v2154 = vpop.f32.mrb[0].mxu0
      %v2155 = vadd.f32 0.0, %v2154
      %v2156 = vpop.f32.mrb[0].mxu0
      %2157 = vmatprep.mubr.f32.mxu0 0.0
      %2158 = vmatmul.mubr.f32.gmra.mrb[0].mxu0 %v2008
      %v2159 = vpop.f32.mrb[0].mxu0
      %v2160 = vadd.f32 0.0, %v2159
      %v2161 = vpop.f32.mrb[0].mxu0
      %2162 = vmatprep.mubr.f32.mxu0 0.0
      %2163 = vmatmul.mubr.f32.gmra.mrb[0].mxu0 %v2009
      %v2164 = vpop.f32.mrb[0].mxu0
      %v2165 = vadd.f32 0.0, %v2164
      %v2166 = vpop.f32.mrb[0].mxu0
      %2167 = vmatprep.mubr.f32.mxu0 0.0
      %2168 = vmatmul.mubr.f32.gmra.mrb[0].mxu0 %v2010
      %v2169 = vpop.f32.mrb[0].mxu0
      %v2170 = vadd.f32 0.0, %v2169
      %v2171 = vpop.f32.mrb[0].mxu0
      %2172 = vmatprep.mubr.f32.mxu0 0.0
      %2173 = vmatmul.mubr.f32.gmra.mrb[0].mxu0 %v2011
      %v2174 = vpop.f32.mrb[0].mxu0
      %v2175 = vadd.f32 0.0, %v2174
      %v2176 = vpop.f32.mrb[0].mxu0
      %2177 = vmatprep.mubr.f32.mxu0 0.0
      %2178 = vmatmul.mubr.f32.gmra.mrb[0].mxu0 %v2012
      %v2179 = vpop.f32.mrb[0].mxu0
      %v2180 = vadd.f32 0.0, %v2179
      %v2181 = vpop.f32.mrb[0].mxu0
      %2182 = vmatprep.mubr.f32.mxu0 0.0
      %2183 = vmatmul.mubr.f32.gmra.mrb[0].mxu0 %v2013
      %v2184 = vpop.f32.mrb[0].mxu0
      %v2185 = vadd.f32 0.0, %v2184
      %v2186 = vpop.f32.mrb[0].mxu0
      %2187 = vmatprep.mubr.f32.mxu0 0.0
      %2188 = vmatmul.mubr.f32.gmra.mrb[0].mxu0 %v2014
      %v2189 = vpop.f32.mrb[0].mxu0
      %v2190 = vadd.f32 0.0, %v2189
      %v2191 = vpop.f32.mrb[0].mxu0
      %2192 = vmatprep.mubr.f32.mxu0 0.0
      %2193 = vmatmul.mubr.f32.gmra.mrb[0].mxu0 %v2015
      %v2194 = vpop.f32.mrb[0].mxu0
      %v2195 = vadd.f32 0.0, %v2194
      %v2196 = vpop.f32.mrb[0].mxu0
      %2197 = vmatprep.mubr.f32.mxu0 0.0
      %2198 = vmatmul.mubr.f32.gmra.mrb[0].mxu0 %v2016
      %v2199 = vpop.f32.mrb[0].mxu0
      %v2200 = vadd.f32 0.0, %v2199
      %v2201 = vpop.f32.mrb[0].mxu0
      %2202 = vmatprep.mubr.f32.mxu0 0.0
      %2203 = vmatmul.mubr.f32.gmra.mrb[0].mxu0 %v2017
      %v2204 = vpop.f32.mrb[0].mxu0
      %v2205 = vadd.f32 0.0, %v2204
      %v2206 = vpop.f32.mrb[0].mxu0
      %2207 = vmatprep.mubr.f32.mxu0 0.0
      %2208 = vmatmul.mubr.f32.gmra.mrb[0].mxu0 %v2018
      %v2209 = vpop.f32.mrb[0].mxu0
      %v2210 = vadd.f32 0.0, %v2209
      %v2211 = vpop.f32.mrb[0].mxu0
      %2212 = vmatprep.mubr.f32.mxu0 0.0
      %2213 = vmatmul.mubr.f32.gmra.mrb[0].mxu0 %v2019
      %v2214 = vpop.f32.mrb[0].mxu0
      %v2215 = vadd.f32 0.0, %v2214
      %v2216 = vpop.f32.mrb[0].mxu0
      %2217 = vmatprep.mubr.f32.mxu0 0.0
      %2218 = vmatmul.mubr.f32.gmra.mrb[0].mxu0 %v2020
      %v2219 = vpop.f32.mrb[0].mxu0
      %v2220 = vadd.f32 0.0, %v2219
      %v2221 = vpop.f32.mrb[0].mxu0
      %2222 = vmatprep.mubr.f32.mxu0 0.0
      %2223 = vmatmul.mubr.f32.gmra.mrb[0].mxu0 %v2021
      %v2224 = vpop.f32.mrb[0].mxu0
      %v2225 = vadd.f32 0.0, %v2224
      %v2226 = vpop.f32.mrb[0].mxu0
      %2227 = vmatprep.mubr.f32.mxu0 0.0
      %2228 = vmatmul.mubr.f32.gmra.mrb[0].mxu0 %v2022
      %v2229 = vpop.f32.mrb[0].mxu0
      %v2230 = vadd.f32 0.0, %v2229
      %v2231 = vpop.f32.mrb[0].mxu0
      %2232 = vmatprep.mubr.f32.mxu0 0.0
      %2233 = vmatmul.mubr.f32.gmra.mrb[0].mxu0 %v2023
      %v2234 = vpop.f32.mrb[0].mxu0
      %v2235 = vadd.f32 0.0, %v2234
      %v2236 = vpop.f32.mrb[0].mxu0
      %2237 = vmatprep.mubr.f32.mxu0 0.0
      %2238 = vmatmul.mubr.f32.gmra.mrb[0].mxu0 %v2024
      %v2239 = vpop.f32.mrb[0].mxu0
      %v2240 = vadd.f32 0.0, %v2239
      %v2241 = vpop.f32.mrb[0].mxu0
      %2242 = vmatprep.mubr.f32.mxu0 0.0
      %2243 = vmatmul.mubr.f32.gmra.mrb[0].mxu0 %v2025
      %v2244 = vpop.f32.mrb[0].mxu0
      %v2245 = vadd.f32 0.0, %v2244
      %v2246 = vpop.f32.mrb[0].mxu0
      %2247 = vmatprep.mubr.f32.mxu0 0.0
      %2248 = vmatmul.mubr.f32.gmra.mrb[0].mxu0 %v2026
      %v2249 = vpop.f32.mrb[0].mxu0
      %v2250 = vadd.f32 0.0, %v2249
      %v2251 = vpop.f32.mrb[0].mxu0
      %2252 = vmatprep.mubr.f32.mxu0 0.0
      %2253 = vmatmul.mubr.f32.gmra.mrb[0].mxu0 %v2027
      %v2254 = vpop.f32.mrb[0].mxu0
      %v2255 = vadd.f32 0.0, %v2254
      %v2256 = vpop.f32.mrb[0].mxu0
      %2257 = vmatprep.mubr.f32.mxu0 0.0
      %2258 = vmatmul.mubr.f32.gmra.mrb[0].mxu0 %v2028
      %v2259 = vpop.f32.mrb[0].mxu0
      %v2260 = vadd.f32 0.0, %v2259
      %v2261 = vpop.f32.mrb[0].mxu0
      %2262 = vmatprep.mubr.f32.mxu0 0.0
      %2263 = vmatmul.mubr.f32.gmra.mrb[0].mxu0 %v2029
      %v2264 = vpop.f32.mrb[0].mxu0
      %v2265 = vadd.f32 0.0, %v2264
      %v2266 = vpop.f32.mrb[0].mxu0
      %2267 = vmatprep.mubr.f32.mxu0 0.0
      %2268 = vmatmul.mubr.f32.gmra.mrb[0].mxu0 %v2030
      %v2269 = vpop.f32.mrb[0].mxu0
      %v2270 = vadd.f32 0.0, %v2269
      %v2271 = vpop.f32.mrb[0].mxu0
      %2272 = vdwg.mxu0
      %v2273 = vadd.f32 %v1967, %v2115
      %v2274 = vadd.f32 %v1968, %v2120
      %v2275 = vadd.f32 %v1969, %v2125
      %v2276 = vadd.f32 %v1970, %v2130
      %v2277 = vadd.f32 %v1971, %v2135
      %v2278 = vadd.f32 %v1972, %v2140
      %v2279 = vadd.f32 %v1973, %v2145
      %v2280 = vadd.f32 %v1974, %v2150
      %v2281 = vadd.f32 %v1975, %v2155
      %v2282 = vadd.f32 %v1976, %v2160
      %v2283 = vadd.f32 %v1977, %v2165
      %v2284 = vadd.f32 %v1978, %v2170
      %v2285 = vadd.f32 %v1979, %v2175
      %v2286 = vadd.f32 %v1980, %v2180
      %v2287 = vadd.f32 %v1981, %v2185
      %v2288 = vadd.f32 %v1982, %v2190
      %v2289 = vadd.f32 %v1983, %v2195
      %v2290 = vadd.f32 %v1984, %v2200
      %v2291 = vadd.f32 %v1985, %v2205
      %v2292 = vadd.f32 %v1986, %v2210
      %v2293 = vadd.f32 %v1987, %v2215
      %v2294 = vadd.f32 %v1988, %v2220
      %v2295 = vadd.f32 %v1989, %v2225
      %v2296 = vadd.f32 %v1990, %v2230
      %v2297 = vadd.f32 %v1991, %v2235
      %v2298 = vadd.f32 %v1992, %v2240
      %v2299 = vadd.f32 %v1993, %v2245
      %v2300 = vadd.f32 %v1994, %v2250
      %v2301 = vadd.f32 %v1995, %v2255
      %v2302 = vadd.f32 %v1996, %v2260
      %v2303 = vadd.f32 %v1997, %v2265
      %v2304 = vadd.f32 %v1998, %v2270
      %v2305 = vld [vmem:[%s220 + $0x21] sm:$0xff]
      %v2306 = vld [vmem:[%s220 + $0x29] sm:$0xff]
      %v2307 = vld [vmem:[%s220 + $0x31] sm:$0xff]
      %v2308 = vld [vmem:[%s220 + $0x39] sm:$0xff]
      %v2309 = vld [vmem:[%s220 + $0x41] sm:$0xff]
      %v2310 = vld [vmem:[%s220 + $0x49] sm:$0xff]
      %v2311 = vld [vmem:[%s220 + $0x51] sm:$0xff]
      %v2312 = vld [vmem:[%s220 + $0x59] sm:$0xff]
      %v2313 = vld [vmem:[%s220 + $0x61] sm:$0xff]
      %v2314 = vld [vmem:[%s220 + $0x69] sm:$0xff]
      %v2315 = vld [vmem:[%s220 + $0x71] sm:$0xff]
      %v2316 = vld [vmem:[%s220 + $0x79] sm:$0xff]
      %v2317 = vld [vmem:[%s220 + $0x81] sm:$0xff]
      %v2318 = vld [vmem:[%s220 + $0x89] sm:$0xff]
      %v2319 = vld [vmem:[%s220 + $0x91] sm:$0xff]
      %v2320 = vld [vmem:[%s220 + $0x99] sm:$0xff]
      %v2321 = vld [vmem:[%s220 + $0xa1] sm:$0xff]
      %v2322 = vld [vmem:[%s220 + $0xa9] sm:$0xff]
      %v2323 = vld [vmem:[%s220 + $0xb1] sm:$0xff]
      %v2324 = vld [vmem:[%s220 + $0xb9] sm:$0xff]
      %v2325 = vld [vmem:[%s220 + $0xc1] sm:$0xff]
      %v2326 = vld [vmem:[%s220 + $0xc9] sm:$0xff]
      %v2327 = vld [vmem:[%s220 + $0xd1] sm:$0xff]
      %v2328 = vld [vmem:[%s220 + $0xd9] sm:$0xff]
      %v2329 = vld [vmem:[%s220 + $0xe1] sm:$0xff]
      %v2330 = vld [vmem:[%s220 + $0xe9] sm:$0xff]
      %v2331 = vld [vmem:[%s220 + $0xf1] sm:$0xff]
      %v2332 = vld [vmem:[%s220 + $0xf9] sm:$0xff]
      %v2333 = vld [vmem:[%s220 + $0x101] sm:$0xff]
      %v2334 = vld [vmem:[%s220 + $0x109] sm:$0xff]
      %v2335 = vld [vmem:[%s220 + $0x111] sm:$0xff]
      %v2336 = vld [vmem:[%s220 + $0x119] sm:$0xff]
      %s2337 = scalar_lea.vmem %s1, 896
      %v2338 = vld [vmem:[%s2337] sm:$0xff]
      %v2339 = vld [vmem:[%s2337 + $0x8] sm:$0xff]
      %v2340 = vld [vmem:[%s2337 + $0x10] sm:$0xff]
      %v2341 = vld [vmem:[%s2337 + $0x18] sm:$0xff]
      %v2342 = vld [vmem:[%s2337 + $0x20] sm:$0xff]
      %v2343 = vld [vmem:[%s2337 + $0x28] sm:$0xff]
      %v2344 = vld [vmem:[%s2337 + $0x30] sm:$0xff]
      %v2345 = vld [vmem:[%s2337 + $0x38] sm:$0xff]
      %v2346 = vld [vmem:[%s2337 + $0x40] sm:$0xff]
      %v2347 = vld [vmem:[%s2337 + $0x48] sm:$0xff]
      %v2348 = vld [vmem:[%s2337 + $0x50] sm:$0xff]
      %v2349 = vld [vmem:[%s2337 + $0x58] sm:$0xff]
      %v2350 = vld [vmem:[%s2337 + $0x60] sm:$0xff]
      %v2351 = vld [vmem:[%s2337 + $0x68] sm:$0xff]
      %v2352 = vld [vmem:[%s2337 + $0x70] sm:$0xff]
      %v2353 = vld [vmem:[%s2337 + $0x78] sm:$0xff]
      %2354 = vmatprep.subr.mxu0 0.0
      %2355 = vmatpush1.msra.mxu0 %v2338
      %2356 = vmatprep.subr.mxu0 0.0
      %2357 = vmatpush1.msra.mxu0 %v2339
      %2358 = vmatprep.subr.mxu0 0.0
      %2359 = vmatpush1.msra.mxu0 %v2340
      %2360 = vmatprep.subr.mxu0 0.0
      %2361 = vmatpush1.msra.mxu0 %v2341
      %2362 = vmatprep.subr.mxu0 0.0
      %2363 = vmatpush1.msra.mxu0 %v2342
      %2364 = vmatprep.subr.mxu0 0.0
      %2365 = vmatpush1.msra.mxu0 %v2343
      %2366 = vmatprep.subr.mxu0 0.0
      %2367 = vmatpush1.msra.mxu0 %v2344
      %2368 = vmatprep.subr.mxu0 0.0
      %2369 = vmatpush1.msra.mxu0 %v2345
      %2370 = vmatprep.subr.mxu0 0.0
      %2371 = vmatpush1.msra.mxu0 %v2346
      %2372 = vmatprep.subr.mxu0 0.0
      %2373 = vmatpush1.msra.mxu0 %v2347
      %2374 = vmatprep.subr.mxu0 0.0
      %2375 = vmatpush1.msra.mxu0 %v2348
      %2376 = vmatprep.subr.mxu0 0.0
      %2377 = vmatpush1.msra.mxu0 %v2349
      %2378 = vmatprep.subr.mxu0 0.0
      %2379 = vmatpush1.msra.mxu0 %v2350
      %2380 = vmatprep.subr.mxu0 0.0
      %2381 = vmatpush1.msra.mxu0 %v2351
      %2382 = vmatprep.subr.mxu0 0.0
      %2383 = vmatpush1.msra.mxu0 %v2352
      %2384 = vmatprep.subr.mxu0 0.0
      %2385 = vmatpush1.msra.mxu0 %v2353
      %2386 = vmatprep.subr.mxu0 0.0
      %2387 = vmatpush1.msra.mxu0 0.0
      %2388 = vmatprep.subr.mxu0 0.0
      %2389 = vmatpush1.msra.mxu0 0.0
      %2390 = vmatprep.subr.mxu0 0.0
      %2391 = vmatpush1.msra.mxu0 0.0
      %2392 = vmatprep.subr.mxu0 0.0
      %2393 = vmatpush1.msra.mxu0 0.0
      %2394 = vmatprep.subr.mxu0 0.0
      %2395 = vmatpush1.msra.mxu0 0.0
      %2396 = vmatprep.subr.mxu0 0.0
      %2397 = vmatpush1.msra.mxu0 0.0
      %2398 = vmatprep.subr.mxu0 0.0
      %2399 = vmatpush1.msra.mxu0 0.0
      %2400 = vmatprep.subr.mxu0 0.0
      %2401 = vmatpush1.msra.mxu0 0.0
      %2402 = vmatprep.subr.mxu0 0.0
      %2403 = vmatpush1.msra.mxu0 0.0
      %2404 = vmatprep.subr.mxu0 0.0
      %2405 = vmatpush1.msra.mxu0 0.0
      %2406 = vmatprep.subr.mxu0 0.0
      %2407 = vmatpush1.msra.mxu0 0.0
      %2408 = vmatprep.subr.mxu0 0.0
      %2409 = vmatpush1.msra.mxu0 0.0
      %2410 = vmatprep.subr.mxu0 0.0
      %2411 = vmatpush1.msra.mxu0 0.0
      %2412 = vmatprep.subr.mxu0 0.0
      %2413 = vmatpush1.msra.mxu0 0.0
      %2414 = vmatprep.subr.mxu0 0.0
      %2415 = vmatpush1.msra.mxu0 0.0
      %2416 = vmatprep.subr.mxu0 0.0
      %2417 = vmatpush1.msra.mxu0 0.0
      %2418 = vmatprep.mubr.f32.mxu0 0.0
      %2419 = vmatmul.mubr.f32.gmra.mrb[0].mxu0 %v2305
      %v2420 = vpop.f32.mrb[0].mxu0
      %v2421 = vadd.f32 0.0, %v2420
      %v2422 = vpop.f32.mrb[0].mxu0
      %2423 = vmatprep.mubr.f32.mxu0 0.0
      %2424 = vmatmul.mubr.f32.gmra.mrb[0].mxu0 %v2306
      %v2425 = vpop.f32.mrb[0].mxu0
      %v2426 = vadd.f32 0.0, %v2425
      %v2427 = vpop.f32.mrb[0].mxu0
      %2428 = vmatprep.mubr.f32.mxu0 0.0
      %2429 = vmatmul.mubr.f32.gmra.mrb[0].mxu0 %v2307
      %v2430 = vpop.f32.mrb[0].mxu0
      %v2431 = vadd.f32 0.0, %v2430
      %v2432 = vpop.f32.mrb[0].mxu0
      %2433 = vmatprep.mubr.f32.mxu0 0.0
      %2434 = vmatmul.mubr.f32.gmra.mrb[0].mxu0 %v2308
      %v2435 = vpop.f32.mrb[0].mxu0
      %v2436 = vadd.f32 0.0, %v2435
      %v2437 = vpop.f32.mrb[0].mxu0
      %2438 = vmatprep.mubr.f32.mxu0 0.0
      %2439 = vmatmul.mubr.f32.gmra.mrb[0].mxu0 %v2309
      %v2440 = vpop.f32.mrb[0].mxu0
      %v2441 = vadd.f32 0.0, %v2440
      %v2442 = vpop.f32.mrb[0].mxu0
      %2443 = vmatprep.mubr.f32.mxu0 0.0
      %2444 = vmatmul.mubr.f32.gmra.mrb[0].mxu0 %v2310
      %v2445 = vpop.f32.mrb[0].mxu0
      %v2446 = vadd.f32 0.0, %v2445
      %v2447 = vpop.f32.mrb[0].mxu0
      %2448 = vmatprep.mubr.f32.mxu0 0.0
      %2449 = vmatmul.mubr.f32.gmra.mrb[0].mxu0 %v2311
      %v2450 = vpop.f32.mrb[0].mxu0
      %v2451 = vadd.f32 0.0, %v2450
      %v2452 = vpop.f32.mrb[0].mxu0
      %2453 = vmatprep.mubr.f32.mxu0 0.0
      %2454 = vmatmul.mubr.f32.gmra.mrb[0].mxu0 %v2312
      %v2455 = vpop.f32.mrb[0].mxu0
      %v2456 = vadd.f32 0.0, %v2455
      %v2457 = vpop.f32.mrb[0].mxu0
      %2458 = vmatprep.mubr.f32.mxu0 0.0
      %2459 = vmatmul.mubr.f32.gmra.mrb[0].mxu0 %v2313
      %v2460 = vpop.f32.mrb[0].mxu0
      %v2461 = vadd.f32 0.0, %v2460
      %v2462 = vpop.f32.mrb[0].mxu0
      %2463 = vmatprep.mubr.f32.mxu0 0.0
      %2464 = vmatmul.mubr.f32.gmra.mrb[0].mxu0 %v2314
      %v2465 = vpop.f32.mrb[0].mxu0
      %v2466 = vadd.f32 0.0, %v2465
      %v2467 = vpop.f32.mrb[0].mxu0
      %2468 = vmatprep.mubr.f32.mxu0 0.0
      %2469 = vmatmul.mubr.f32.gmra.mrb[0].mxu0 %v2315
      %v2470 = vpop.f32.mrb[0].mxu0
      %v2471 = vadd.f32 0.0, %v2470
      %v2472 = vpop.f32.mrb[0].mxu0
      %2473 = vmatprep.mubr.f32.mxu0 0.0
      %2474 = vmatmul.mubr.f32.gmra.mrb[0].mxu0 %v2316
      %v2475 = vpop.f32.mrb[0].mxu0
      %v2476 = vadd.f32 0.0, %v2475
      %v2477 = vpop.f32.mrb[0].mxu0
      %2478 = vmatprep.mubr.f32.mxu0 0.0
      %2479 = vmatmul.mubr.f32.gmra.mrb[0].mxu0 %v2317
      %v2480 = vpop.f32.mrb[0].mxu0
      %v2481 = vadd.f32 0.0, %v2480
      %v2482 = vpop.f32.mrb[0].mxu0
      %2483 = vmatprep.mubr.f32.mxu0 0.0
      %2484 = vmatmul.mubr.f32.gmra.mrb[0].mxu0 %v2318
      %v2485 = vpop.f32.mrb[0].mxu0
      %v2486 = vadd.f32 0.0, %v2485
      %v2487 = vpop.f32.mrb[0].mxu0
      %2488 = vmatprep.mubr.f32.mxu0 0.0
      %2489 = vmatmul.mubr.f32.gmra.mrb[0].mxu0 %v2319
      %v2490 = vpop.f32.mrb[0].mxu0
      %v2491 = vadd.f32 0.0, %v2490
      %v2492 = vpop.f32.mrb[0].mxu0
      %2493 = vmatprep.mubr.f32.mxu0 0.0
      %2494 = vmatmul.mubr.f32.gmra.mrb[0].mxu0 %v2320
      %v2495 = vpop.f32.mrb[0].mxu0
      %v2496 = vadd.f32 0.0, %v2495
      %v2497 = vpop.f32.mrb[0].mxu0
      %2498 = vmatprep.mubr.f32.mxu0 0.0
      %2499 = vmatmul.mubr.f32.gmra.mrb[0].mxu0 %v2321
      %v2500 = vpop.f32.mrb[0].mxu0
      %v2501 = vadd.f32 0.0, %v2500
      %v2502 = vpop.f32.mrb[0].mxu0
      %2503 = vmatprep.mubr.f32.mxu0 0.0
      %2504 = vmatmul.mubr.f32.gmra.mrb[0].mxu0 %v2322
      %v2505 = vpop.f32.mrb[0].mxu0
      %v2506 = vadd.f32 0.0, %v2505
      %v2507 = vpop.f32.mrb[0].mxu0
      %2508 = vmatprep.mubr.f32.mxu0 0.0
      %2509 = vmatmul.mubr.f32.gmra.mrb[0].mxu0 %v2323
      %v2510 = vpop.f32.mrb[0].mxu0
      %v2511 = vadd.f32 0.0, %v2510
      %v2512 = vpop.f32.mrb[0].mxu0
      %2513 = vmatprep.mubr.f32.mxu0 0.0
      %2514 = vmatmul.mubr.f32.gmra.mrb[0].mxu0 %v2324
      %v2515 = vpop.f32.mrb[0].mxu0
      %v2516 = vadd.f32 0.0, %v2515
      %v2517 = vpop.f32.mrb[0].mxu0
      %2518 = vmatprep.mubr.f32.mxu0 0.0
      %2519 = vmatmul.mubr.f32.gmra.mrb[0].mxu0 %v2325
      %v2520 = vpop.f32.mrb[0].mxu0
      %v2521 = vadd.f32 0.0, %v2520
      %v2522 = vpop.f32.mrb[0].mxu0
      %2523 = vmatprep.mubr.f32.mxu0 0.0
      %2524 = vmatmul.mubr.f32.gmra.mrb[0].mxu0 %v2326
      %v2525 = vpop.f32.mrb[0].mxu0
      %v2526 = vadd.f32 0.0, %v2525
      %v2527 = vpop.f32.mrb[0].mxu0
      %2528 = vmatprep.mubr.f32.mxu0 0.0
      %2529 = vmatmul.mubr.f32.gmra.mrb[0].mxu0 %v2327
      %v2530 = vpop.f32.mrb[0].mxu0
      %v2531 = vadd.f32 0.0, %v2530
      %v2532 = vpop.f32.mrb[0].mxu0
      %2533 = vmatprep.mubr.f32.mxu0 0.0
      %2534 = vmatmul.mubr.f32.gmra.mrb[0].mxu0 %v2328
      %v2535 = vpop.f32.mrb[0].mxu0
      %v2536 = vadd.f32 0.0, %v2535
      %v2537 = vpop.f32.mrb[0].mxu0
      %2538 = vmatprep.mubr.f32.mxu0 0.0
      %2539 = vmatmul.mubr.f32.gmra.mrb[0].mxu0 %v2329
      %v2540 = vpop.f32.mrb[0].mxu0
      %v2541 = vadd.f32 0.0, %v2540
      %v2542 = vpop.f32.mrb[0].mxu0
      %2543 = vmatprep.mubr.f32.mxu0 0.0
      %2544 = vmatmul.mubr.f32.gmra.mrb[0].mxu0 %v2330
      %v2545 = vpop.f32.mrb[0].mxu0
      %v2546 = vadd.f32 0.0, %v2545
      %v2547 = vpop.f32.mrb[0].mxu0
      %2548 = vmatprep.mubr.f32.mxu0 0.0
      %2549 = vmatmul.mubr.f32.gmra.mrb[0].mxu0 %v2331
      %v2550 = vpop.f32.mrb[0].mxu0
      %v2551 = vadd.f32 0.0, %v2550
      %v2552 = vpop.f32.mrb[0].mxu0
      %2553 = vmatprep.mubr.f32.mxu0 0.0
      %2554 = vmatmul.mubr.f32.gmra.mrb[0].mxu0 %v2332
      %v2555 = vpop.f32.mrb[0].mxu0
      %v2556 = vadd.f32 0.0, %v2555
      %v2557 = vpop.f32.mrb[0].mxu0
      %2558 = vmatprep.mubr.f32.mxu0 0.0
      %2559 = vmatmul.mubr.f32.gmra.mrb[0].mxu0 %v2333
      %v2560 = vpop.f32.mrb[0].mxu0
      %v2561 = vadd.f32 0.0, %v2560
      %v2562 = vpop.f32.mrb[0].mxu0
      %2563 = vmatprep.mubr.f32.mxu0 0.0
      %2564 = vmatmul.mubr.f32.gmra.mrb[0].mxu0 %v2334
      %v2565 = vpop.f32.mrb[0].mxu0
      %v2566 = vadd.f32 0.0, %v2565
      %v2567 = vpop.f32.mrb[0].mxu0
      %2568 = vmatprep.mubr.f32.mxu0 0.0
      %2569 = vmatmul.mubr.f32.gmra.mrb[0].mxu0 %v2335
      %v2570 = vpop.f32.mrb[0].mxu0
      %v2571 = vadd.f32 0.0, %v2570
      %v2572 = vpop.f32.mrb[0].mxu0
      %2573 = vmatprep.mubr.f32.mxu0 0.0
      %2574 = vmatmul.mubr.f32.gmra.mrb[0].mxu0 %v2336
      %v2575 = vpop.f32.mrb[0].mxu0
      %v2576 = vadd.f32 0.0, %v2575
      %v2577 = vpop.f32.mrb[0].mxu0
      %2578 = vdwg.mxu0
      %v2579 = vadd.f32 %v2273, %v2421
      %v2580 = vadd.f32 %v2274, %v2426
      %v2581 = vadd.f32 %v2275, %v2431
      %v2582 = vadd.f32 %v2276, %v2436
      %v2583 = vadd.f32 %v2277, %v2441
      %v2584 = vadd.f32 %v2278, %v2446
      %v2585 = vadd.f32 %v2279, %v2451
      %v2586 = vadd.f32 %v2280, %v2456
      %v2587 = vadd.f32 %v2281, %v2461
      %v2588 = vadd.f32 %v2282, %v2466
      %v2589 = vadd.f32 %v2283, %v2471
      %v2590 = vadd.f32 %v2284, %v2476
      %v2591 = vadd.f32 %v2285, %v2481
      %v2592 = vadd.f32 %v2286, %v2486
      %v2593 = vadd.f32 %v2287, %v2491
      %v2594 = vadd.f32 %v2288, %v2496
      %v2595 = vadd.f32 %v2289, %v2501
      %v2596 = vadd.f32 %v2290, %v2506
      %v2597 = vadd.f32 %v2291, %v2511
      %v2598 = vadd.f32 %v2292, %v2516
      %v2599 = vadd.f32 %v2293, %v2521
      %v2600 = vadd.f32 %v2294, %v2526
      %v2601 = vadd.f32 %v2295, %v2531
      %v2602 = vadd.f32 %v2296, %v2536
      %v2603 = vadd.f32 %v2297, %v2541
      %v2604 = vadd.f32 %v2298, %v2546
      %v2605 = vadd.f32 %v2299, %v2551
      %v2606 = vadd.f32 %v2300, %v2556
      %v2607 = vadd.f32 %v2301, %v2561
      %v2608 = vadd.f32 %v2302, %v2566
      %v2609 = vadd.f32 %v2303, %v2571
      %v2610 = vadd.f32 %v2304, %v2576
      %v2611 = vld [vmem:[%s220 + $0x22] sm:$0xff]
      %v2612 = vld [vmem:[%s220 + $0x2a] sm:$0xff]
      %v2613 = vld [vmem:[%s220 + $0x32] sm:$0xff]
      %v2614 = vld [vmem:[%s220 + $0x3a] sm:$0xff]
      %v2615 = vld [vmem:[%s220 + $0x42] sm:$0xff]
      %v2616 = vld [vmem:[%s220 + $0x4a] sm:$0xff]
      %v2617 = vld [vmem:[%s220 + $0x52] sm:$0xff]
      %v2618 = vld [vmem:[%s220 + $0x5a] sm:$0xff]
      %v2619 = vld [vmem:[%s220 + $0x62] sm:$0xff]
      %v2620 = vld [vmem:[%s220 + $0x6a] sm:$0xff]
      %v2621 = vld [vmem:[%s220 + $0x72] sm:$0xff]
      %v2622 = vld [vmem:[%s220 + $0x7a] sm:$0xff]
      %v2623 = vld [vmem:[%s220 + $0x82] sm:$0xff]
      %v2624 = vld [vmem:[%s220 + $0x8a] sm:$0xff]
      %v2625 = vld [vmem:[%s220 + $0x92] sm:$0xff]
      %v2626 = vld [vmem:[%s220 + $0x9a] sm:$0xff]
      %v2627 = vld [vmem:[%s220 + $0xa2] sm:$0xff]
      %v2628 = vld [vmem:[%s220 + $0xaa] sm:$0xff]
      %v2629 = vld [vmem:[%s220 + $0xb2] sm:$0xff]
      %v2630 = vld [vmem:[%s220 + $0xba] sm:$0xff]
      %v2631 = vld [vmem:[%s220 + $0xc2] sm:$0xff]
      %v2632 = vld [vmem:[%s220 + $0xca] sm:$0xff]
      %v2633 = vld [vmem:[%s220 + $0xd2] sm:$0xff]
      %v2634 = vld [vmem:[%s220 + $0xda] sm:$0xff]
      %v2635 = vld [vmem:[%s220 + $0xe2] sm:$0xff]
      %v2636 = vld [vmem:[%s220 + $0xea] sm:$0xff]
      %v2637 = vld [vmem:[%s220 + $0xf2] sm:$0xff]
      %v2638 = vld [vmem:[%s220 + $0xfa] sm:$0xff]
      %v2639 = vld [vmem:[%s220 + $0x102] sm:$0xff]
      %v2640 = vld [vmem:[%s220 + $0x10a] sm:$0xff]
      %v2641 = vld [vmem:[%s220 + $0x112] sm:$0xff]
      %v2642 = vld [vmem:[%s220 + $0x11a] sm:$0xff]
      %s2643 = scalar_lea.vmem %s1, 1024
      %v2644 = vld [vmem:[%s2643] sm:$0xff]
      %v2645 = vld [vmem:[%s2643 + $0x8] sm:$0xff]
      %v2646 = vld [vmem:[%s2643 + $0x10] sm:$0xff]
      %v2647 = vld [vmem:[%s2643 + $0x18] sm:$0xff]
      %v2648 = vld [vmem:[%s2643 + $0x20] sm:$0xff]
      %v2649 = vld [vmem:[%s2643 + $0x28] sm:$0xff]
      %v2650 = vld [vmem:[%s2643 + $0x30] sm:$0xff]
      %v2651 = vld [vmem:[%s2643 + $0x38] sm:$0xff]
      %v2652 = vld [vmem:[%s2643 + $0x40] sm:$0xff]
      %v2653 = vld [vmem:[%s2643 + $0x48] sm:$0xff]
      %v2654 = vld [vmem:[%s2643 + $0x50] sm:$0xff]
      %v2655 = vld [vmem:[%s2643 + $0x58] sm:$0xff]
      %v2656 = vld [vmem:[%s2643 + $0x60] sm:$0xff]
      %v2657 = vld [vmem:[%s2643 + $0x68] sm:$0xff]
      %v2658 = vld [vmem:[%s2643 + $0x70] sm:$0xff]
      %v2659 = vld [vmem:[%s2643 + $0x78] sm:$0xff]
      %2660 = vmatprep.subr.mxu0 0.0
      %2661 = vmatpush1.msra.mxu0 %v2644
      %2662 = vmatprep.subr.mxu0 0.0
      %2663 = vmatpush1.msra.mxu0 %v2645
      %2664 = vmatprep.subr.mxu0 0.0
      %2665 = vmatpush1.msra.mxu0 %v2646
      %2666 = vmatprep.subr.mxu0 0.0
      %2667 = vmatpush1.msra.mxu0 %v2647
      %2668 = vmatprep.subr.mxu0 0.0
      %2669 = vmatpush1.msra.mxu0 %v2648
      %2670 = vmatprep.subr.mxu0 0.0
      %2671 = vmatpush1.msra.mxu0 %v2649
      %2672 = vmatprep.subr.mxu0 0.0
      %2673 = vmatpush1.msra.mxu0 %v2650
      %2674 = vmatprep.subr.mxu0 0.0
      %2675 = vmatpush1.msra.mxu0 %v2651
      %2676 = vmatprep.subr.mxu0 0.0
      %2677 = vmatpush1.msra.mxu0 %v2652
      %2678 = vmatprep.subr.mxu0 0.0
      %2679 = vmatpush1.msra.mxu0 %v2653
      %2680 = vmatprep.subr.mxu0 0.0
      %2681 = vmatpush1.msra.mxu0 %v2654
      %2682 = vmatprep.subr.mxu0 0.0
      %2683 = vmatpush1.msra.mxu0 %v2655
      %2684 = vmatprep.subr.mxu0 0.0
      %2685 = vmatpush1.msra.mxu0 %v2656
      %2686 = vmatprep.subr.mxu0 0.0
      %2687 = vmatpush1.msra.mxu0 %v2657
      %2688 = vmatprep.subr.mxu0 0.0
      %2689 = vmatpush1.msra.mxu0 %v2658
      %2690 = vmatprep.subr.mxu0 0.0
      %2691 = vmatpush1.msra.mxu0 %v2659
      %2692 = vmatprep.subr.mxu0 0.0
      %2693 = vmatpush1.msra.mxu0 0.0
      %2694 = vmatprep.subr.mxu0 0.0
      %2695 = vmatpush1.msra.mxu0 0.0
      %2696 = vmatprep.subr.mxu0 0.0
      %2697 = vmatpush1.msra.mxu0 0.0
      %2698 = vmatprep.subr.mxu0 0.0
      %2699 = vmatpush1.msra.mxu0 0.0
      %2700 = vmatprep.subr.mxu0 0.0
      %2701 = vmatpush1.msra.mxu0 0.0
      %2702 = vmatprep.subr.mxu0 0.0
      %2703 = vmatpush1.msra.mxu0 0.0
      %2704 = vmatprep.subr.mxu0 0.0
      %2705 = vmatpush1.msra.mxu0 0.0
      %2706 = vmatprep.subr.mxu0 0.0
      %2707 = vmatpush1.msra.mxu0 0.0
      %2708 = vmatprep.subr.mxu0 0.0
      %2709 = vmatpush1.msra.mxu0 0.0
      %2710 = vmatprep.subr.mxu0 0.0
      %2711 = vmatpush1.msra.mxu0 0.0
      %2712 = vmatprep.subr.mxu0 0.0
      %2713 = vmatpush1.msra.mxu0 0.0
      %2714 = vmatprep.subr.mxu0 0.0
      %2715 = vmatpush1.msra.mxu0 0.0
      %2716 = vmatprep.subr.mxu0 0.0
      %2717 = vmatpush1.msra.mxu0 0.0
      %2718 = vmatprep.subr.mxu0 0.0
      %2719 = vmatpush1.msra.mxu0 0.0
      %2720 = vmatprep.subr.mxu0 0.0
      %2721 = vmatpush1.msra.mxu0 0.0
      %2722 = vmatprep.subr.mxu0 0.0
      %2723 = vmatpush1.msra.mxu0 0.0
      %2724 = vmatprep.mubr.f32.mxu0 0.0
      %2725 = vmatmul.mubr.f32.gmra.mrb[0].mxu0 %v2611
      %v2726 = vpop.f32.mrb[0].mxu0
      %v2727 = vadd.f32 0.0, %v2726
      %v2728 = vpop.f32.mrb[0].mxu0
      %2729 = vmatprep.mubr.f32.mxu0 0.0
      %2730 = vmatmul.mubr.f32.gmra.mrb[0].mxu0 %v2612
      %v2731 = vpop.f32.mrb[0].mxu0
      %v2732 = vadd.f32 0.0, %v2731
      %v2733 = vpop.f32.mrb[0].mxu0
      %2734 = vmatprep.mubr.f32.mxu0 0.0
      %2735 = vmatmul.mubr.f32.gmra.mrb[0].mxu0 %v2613
      %v2736 = vpop.f32.mrb[0].mxu0
      %v2737 = vadd.f32 0.0, %v2736
      %v2738 = vpop.f32.mrb[0].mxu0
      %2739 = vmatprep.mubr.f32.mxu0 0.0
      %2740 = vmatmul.mubr.f32.gmra.mrb[0].mxu0 %v2614
      %v2741 = vpop.f32.mrb[0].mxu0
      %v2742 = vadd.f32 0.0, %v2741
      %v2743 = vpop.f32.mrb[0].mxu0
      %2744 = vmatprep.mubr.f32.mxu0 0.0
      %2745 = vmatmul.mubr.f32.gmra.mrb[0].mxu0 %v2615
      %v2746 = vpop.f32.mrb[0].mxu0
      %v2747 = vadd.f32 0.0, %v2746
      %v2748 = vpop.f32.mrb[0].mxu0
      %2749 = vmatprep.mubr.f32.mxu0 0.0
      %2750 = vmatmul.mubr.f32.gmra.mrb[0].mxu0 %v2616
      %v2751 = vpop.f32.mrb[0].mxu0
      %v2752 = vadd.f32 0.0, %v2751
      %v2753 = vpop.f32.mrb[0].mxu0
      %2754 = vmatprep.mubr.f32.mxu0 0.0
      %2755 = vmatmul.mubr.f32.gmra.mrb[0].mxu0 %v2617
      %v2756 = vpop.f32.mrb[0].mxu0
      %v2757 = vadd.f32 0.0, %v2756
      %v2758 = vpop.f32.mrb[0].mxu0
      %2759 = vmatprep.mubr.f32.mxu0 0.0
      %2760 = vmatmul.mubr.f32.gmra.mrb[0].mxu0 %v2618
      %v2761 = vpop.f32.mrb[0].mxu0
      %v2762 = vadd.f32 0.0, %v2761
      %v2763 = vpop.f32.mrb[0].mxu0
      %2764 = vmatprep.mubr.f32.mxu0 0.0
      %2765 = vmatmul.mubr.f32.gmra.mrb[0].mxu0 %v2619
      %v2766 = vpop.f32.mrb[0].mxu0
      %v2767 = vadd.f32 0.0, %v2766
      %v2768 = vpop.f32.mrb[0].mxu0
      %2769 = vmatprep.mubr.f32.mxu0 0.0
      %2770 = vmatmul.mubr.f32.gmra.mrb[0].mxu0 %v2620
      %v2771 = vpop.f32.mrb[0].mxu0
      %v2772 = vadd.f32 0.0, %v2771
      %v2773 = vpop.f32.mrb[0].mxu0
      %2774 = vmatprep.mubr.f32.mxu0 0.0
      %2775 = vmatmul.mubr.f32.gmra.mrb[0].mxu0 %v2621
      %v2776 = vpop.f32.mrb[0].mxu0
      %v2777 = vadd.f32 0.0, %v2776
      %v2778 = vpop.f32.mrb[0].mxu0
      %2779 = vmatprep.mubr.f32.mxu0 0.0
      %2780 = vmatmul.mubr.f32.gmra.mrb[0].mxu0 %v2622
      %v2781 = vpop.f32.mrb[0].mxu0
      %v2782 = vadd.f32 0.0, %v2781
      %v2783 = vpop.f32.mrb[0].mxu0
      %2784 = vmatprep.mubr.f32.mxu0 0.0
      %2785 = vmatmul.mubr.f32.gmra.mrb[0].mxu0 %v2623
      %v2786 = vpop.f32.mrb[0].mxu0
      %v2787 = vadd.f32 0.0, %v2786
      %v2788 = vpop.f32.mrb[0].mxu0
      %2789 = vmatprep.mubr.f32.mxu0 0.0
      %2790 = vmatmul.mubr.f32.gmra.mrb[0].mxu0 %v2624
      %v2791 = vpop.f32.mrb[0].mxu0
      %v2792 = vadd.f32 0.0, %v2791
      %v2793 = vpop.f32.mrb[0].mxu0
      %2794 = vmatprep.mubr.f32.mxu0 0.0
      %2795 = vmatmul.mubr.f32.gmra.mrb[0].mxu0 %v2625
      %v2796 = vpop.f32.mrb[0].mxu0
      %v2797 = vadd.f32 0.0, %v2796
      %v2798 = vpop.f32.mrb[0].mxu0
      %2799 = vmatprep.mubr.f32.mxu0 0.0
      %2800 = vmatmul.mubr.f32.gmra.mrb[0].mxu0 %v2626
      %v2801 = vpop.f32.mrb[0].mxu0
      %v2802 = vadd.f32 0.0, %v2801
      %v2803 = vpop.f32.mrb[0].mxu0
      %2804 = vmatprep.mubr.f32.mxu0 0.0
      %2805 = vmatmul.mubr.f32.gmra.mrb[0].mxu0 %v2627
      %v2806 = vpop.f32.mrb[0].mxu0
      %v2807 = vadd.f32 0.0, %v2806
      %v2808 = vpop.f32.mrb[0].mxu0
      %2809 = vmatprep.mubr.f32.mxu0 0.0
      %2810 = vmatmul.mubr.f32.gmra.mrb[0].mxu0 %v2628
      %v2811 = vpop.f32.mrb[0].mxu0
      %v2812 = vadd.f32 0.0, %v2811
      %v2813 = vpop.f32.mrb[0].mxu0
      %2814 = vmatprep.mubr.f32.mxu0 0.0
      %2815 = vmatmul.mubr.f32.gmra.mrb[0].mxu0 %v2629
      %v2816 = vpop.f32.mrb[0].mxu0
      %v2817 = vadd.f32 0.0, %v2816
      %v2818 = vpop.f32.mrb[0].mxu0
      %2819 = vmatprep.mubr.f32.mxu0 0.0
      %2820 = vmatmul.mubr.f32.gmra.mrb[0].mxu0 %v2630
      %v2821 = vpop.f32.mrb[0].mxu0
      %v2822 = vadd.f32 0.0, %v2821
      %v2823 = vpop.f32.mrb[0].mxu0
      %2824 = vmatprep.mubr.f32.mxu0 0.0
      %2825 = vmatmul.mubr.f32.gmra.mrb[0].mxu0 %v2631
      %v2826 = vpop.f32.mrb[0].mxu0
      %v2827 = vadd.f32 0.0, %v2826
      %v2828 = vpop.f32.mrb[0].mxu0
      %2829 = vmatprep.mubr.f32.mxu0 0.0
      %2830 = vmatmul.mubr.f32.gmra.mrb[0].mxu0 %v2632
      %v2831 = vpop.f32.mrb[0].mxu0
      %v2832 = vadd.f32 0.0, %v2831
      %v2833 = vpop.f32.mrb[0].mxu0
      %2834 = vmatprep.mubr.f32.mxu0 0.0
      %2835 = vmatmul.mubr.f32.gmra.mrb[0].mxu0 %v2633
      %v2836 = vpop.f32.mrb[0].mxu0
      %v2837 = vadd.f32 0.0, %v2836
      %v2838 = vpop.f32.mrb[0].mxu0
      %2839 = vmatprep.mubr.f32.mxu0 0.0
      %2840 = vmatmul.mubr.f32.gmra.mrb[0].mxu0 %v2634
      %v2841 = vpop.f32.mrb[0].mxu0
      %v2842 = vadd.f32 0.0, %v2841
      %v2843 = vpop.f32.mrb[0].mxu0
      %2844 = vmatprep.mubr.f32.mxu0 0.0
      %2845 = vmatmul.mubr.f32.gmra.mrb[0].mxu0 %v2635
      %v2846 = vpop.f32.mrb[0].mxu0
      %v2847 = vadd.f32 0.0, %v2846
      %v2848 = vpop.f32.mrb[0].mxu0
      %2849 = vmatprep.mubr.f32.mxu0 0.0
      %2850 = vmatmul.mubr.f32.gmra.mrb[0].mxu0 %v2636
      %v2851 = vpop.f32.mrb[0].mxu0
      %v2852 = vadd.f32 0.0, %v2851
      %v2853 = vpop.f32.mrb[0].mxu0
      %2854 = vmatprep.mubr.f32.mxu0 0.0
      %2855 = vmatmul.mubr.f32.gmra.mrb[0].mxu0 %v2637
      %v2856 = vpop.f32.mrb[0].mxu0
      %v2857 = vadd.f32 0.0, %v2856
      %v2858 = vpop.f32.mrb[0].mxu0
      %2859 = vmatprep.mubr.f32.mxu0 0.0
      %2860 = vmatmul.mubr.f32.gmra.mrb[0].mxu0 %v2638
      %v2861 = vpop.f32.mrb[0].mxu0
      %v2862 = vadd.f32 0.0, %v2861
      %v2863 = vpop.f32.mrb[0].mxu0
      %2864 = vmatprep.mubr.f32.mxu0 0.0
      %2865 = vmatmul.mubr.f32.gmra.mrb[0].mxu0 %v2639
      %v2866 = vpop.f32.mrb[0].mxu0
      %v2867 = vadd.f32 0.0, %v2866
      %v2868 = vpop.f32.mrb[0].mxu0
      %2869 = vmatprep.mubr.f32.mxu0 0.0
      %2870 = vmatmul.mubr.f32.gmra.mrb[0].mxu0 %v2640
      %v2871 = vpop.f32.mrb[0].mxu0
      %v2872 = vadd.f32 0.0, %v2871
      %v2873 = vpop.f32.mrb[0].mxu0
      %2874 = vmatprep.mubr.f32.mxu0 0.0
      %2875 = vmatmul.mubr.f32.gmra.mrb[0].mxu0 %v2641
      %v2876 = vpop.f32.mrb[0].mxu0
      %v2877 = vadd.f32 0.0, %v2876
      %v2878 = vpop.f32.mrb[0].mxu0
      %2879 = vmatprep.mubr.f32.mxu0 0.0
      %2880 = vmatmul.mubr.f32.gmra.mrb[0].mxu0 %v2642
      %v2881 = vpop.f32.mrb[0].mxu0
      %v2882 = vadd.f32 0.0, %v2881
      %v2883 = vpop.f32.mrb[0].mxu0
      %2884 = vdwg.mxu0
      %v2885 = vadd.f32 %v2579, %v2727
      %v2886 = vadd.f32 %v2580, %v2732
      %v2887 = vadd.f32 %v2581, %v2737
      %v2888 = vadd.f32 %v2582, %v2742
      %v2889 = vadd.f32 %v2583, %v2747
      %v2890 = vadd.f32 %v2584, %v2752
      %v2891 = vadd.f32 %v2585, %v2757
      %v2892 = vadd.f32 %v2586, %v2762
      %v2893 = vadd.f32 %v2587, %v2767
      %v2894 = vadd.f32 %v2588, %v2772
      %v2895 = vadd.f32 %v2589, %v2777
      %v2896 = vadd.f32 %v2590, %v2782
      %v2897 = vadd.f32 %v2591, %v2787
      %v2898 = vadd.f32 %v2592, %v2792
      %v2899 = vadd.f32 %v2593, %v2797
      %v2900 = vadd.f32 %v2594, %v2802
      %v2901 = vadd.f32 %v2595, %v2807
      %v2902 = vadd.f32 %v2596, %v2812
      %v2903 = vadd.f32 %v2597, %v2817
      %v2904 = vadd.f32 %v2598, %v2822
      %v2905 = vadd.f32 %v2599, %v2827
      %v2906 = vadd.f32 %v2600, %v2832
      %v2907 = vadd.f32 %v2601, %v2837
      %v2908 = vadd.f32 %v2602, %v2842
      %v2909 = vadd.f32 %v2603, %v2847
      %v2910 = vadd.f32 %v2604, %v2852
      %v2911 = vadd.f32 %v2605, %v2857
      %v2912 = vadd.f32 %v2606, %v2862
      %v2913 = vadd.f32 %v2607, %v2867
      %v2914 = vadd.f32 %v2608, %v2872
      %v2915 = vadd.f32 %v2609, %v2877
      %v2916 = vadd.f32 %v2610, %v2882
      %v2917 = vld [vmem:[%s2] sm:$0x1]
      %v2919 = vlaneseq
      %v2920 = vshrl.u32 %v2919, 7
      %v2921 = vsub.s32 0, %v2920
      %v2922 = vrot.slane %v2917, %v2921
      %v2924 = vadd.f32 %v2885, %v2922
      %v2925 = vadd.f32 %v2886, %v2922
      %v2926 = vadd.f32 %v2887, %v2922
      %v2927 = vadd.f32 %v2888, %v2922
      %v2928 = vadd.f32 %v2889, %v2922
      %v2929 = vadd.f32 %v2890, %v2922
      %v2930 = vadd.f32 %v2891, %v2922
      %v2931 = vadd.f32 %v2892, %v2922
      %v2932 = vadd.f32 %v2893, %v2922
      %v2933 = vadd.f32 %v2894, %v2922
      %v2934 = vadd.f32 %v2895, %v2922
      %v2935 = vadd.f32 %v2896, %v2922
      %v2936 = vadd.f32 %v2897, %v2922
      %v2937 = vadd.f32 %v2898, %v2922
      %v2938 = vadd.f32 %v2899, %v2922
      %v2939 = vadd.f32 %v2900, %v2922
      %v2940 = vadd.f32 %v2901, %v2922
      %v2941 = vadd.f32 %v2902, %v2922
      %v2942 = vadd.f32 %v2903, %v2922
      %v2943 = vadd.f32 %v2904, %v2922
      %v2944 = vadd.f32 %v2905, %v2922
      %v2945 = vadd.f32 %v2906, %v2922
      %v2946 = vadd.f32 %v2907, %v2922
      %v2947 = vadd.f32 %v2908, %v2922
      %v2948 = vadd.f32 %v2909, %v2922
      %v2949 = vadd.f32 %v2910, %v2922
      %v2950 = vadd.f32 %v2911, %v2922
      %v2951 = vadd.f32 %v2912, %v2922
      %v2952 = vadd.f32 %v2913, %v2922
      %v2953 = vadd.f32 %v2914, %v2922
      %v2954 = vadd.f32 %v2915, %v2922
      %v2955 = vadd.f32 %v2916, %v2922
      %v2956 = vmax.f32 %v2924, 0.0
      %v2957 = vmax.f32 %v2925, 0.0
      %v2958 = vmax.f32 %v2926, 0.0
      %v2959 = vmax.f32 %v2927, 0.0
      %v2960 = vmax.f32 %v2928, 0.0
      %v2961 = vmax.f32 %v2929, 0.0
      %v2962 = vmax.f32 %v2930, 0.0
      %v2963 = vmax.f32 %v2931, 0.0
      %v2964 = vmax.f32 %v2932, 0.0
      %v2965 = vmax.f32 %v2933, 0.0
      %v2966 = vmax.f32 %v2934, 0.0
      %v2967 = vmax.f32 %v2935, 0.0
      %v2968 = vmax.f32 %v2936, 0.0
      %v2969 = vmax.f32 %v2937, 0.0
      %v2970 = vmax.f32 %v2938, 0.0
      %v2971 = vmax.f32 %v2939, 0.0
      %v2972 = vmax.f32 %v2940, 0.0
      %v2973 = vmax.f32 %v2941, 0.0
      %v2974 = vmax.f32 %v2942, 0.0
      %v2975 = vmax.f32 %v2943, 0.0
      %v2976 = vmax.f32 %v2944, 0.0
      %v2977 = vmax.f32 %v2945, 0.0
      %v2978 = vmax.f32 %v2946, 0.0
      %v2979 = vmax.f32 %v2947, 0.0
      %v2980 = vmax.f32 %v2948, 0.0
      %v2981 = vmax.f32 %v2949, 0.0
      %v2982 = vmax.f32 %v2950, 0.0
      %v2983 = vmax.f32 %v2951, 0.0
      %v2984 = vmax.f32 %v2952, 0.0
      %v2985 = vmax.f32 %v2953, 0.0
      %v2986 = vmax.f32 %v2954, 0.0
      %v2987 = vmax.f32 %v2955, 0.0
      %v2988 = vld [vmem:[%s3] sm:$0xff]
      %v2989 = vld [vmem:[%s3 + $0x8] sm:$0xff]
      %v2990 = vld [vmem:[%s3 + $0x10] sm:$0xff]
      %v2991 = vld [vmem:[%s3 + $0x18] sm:$0xff]
      %v2992 = vld [vmem:[%s3 + $0x20] sm:$0xff]
      %v2993 = vld [vmem:[%s3 + $0x28] sm:$0xff]
      %v2994 = vld [vmem:[%s3 + $0x30] sm:$0xff]
      %v2995 = vld [vmem:[%s3 + $0x38] sm:$0xff]
      %v2996 = vld [vmem:[%s4] sm:$0x1]
      %v2998 = vlaneseq
      %v2999 = vshrl.u32 %v2998, 7
      %v3000 = vsub.s32 0, %v2999
      %v3001 = vrot.slane %v2996, %v3000
      %vm3003 = vcmask 523264
      %v3005 = vsel %vm3003, %v2956, 0
      %v3008 = vsel %vm3003, %v2957, 0
      %v3011 = vsel %vm3003, %v2958, 0
      %v3014 = vsel %vm3003, %v2959, 0
      %v3017 = vsel %vm3003, %v2960, 0
      %v3020 = vsel %vm3003, %v2961, 0
      %v3023 = vsel %vm3003, %v2962, 0
      %v3026 = vsel %vm3003, %v2963, 0
      %v3029 = vsel %vm3003, %v2964, 0
      %v3032 = vsel %vm3003, %v2965, 0
      %v3035 = vsel %vm3003, %v2966, 0
      %v3038 = vsel %vm3003, %v2967, 0
      %v3041 = vsel %vm3003, %v2968, 0
      %v3044 = vsel %vm3003, %v2969, 0
      %v3047 = vsel %vm3003, %v2970, 0
      %v3050 = vsel %vm3003, %v2971, 0
      %v3053 = vsel %vm3003, %v2972, 0
      %v3056 = vsel %vm3003, %v2973, 0
      %v3059 = vsel %vm3003, %v2974, 0
      %v3062 = vsel %vm3003, %v2975, 0
      %v3065 = vsel %vm3003, %v2976, 0
      %v3068 = vsel %vm3003, %v2977, 0
      %v3071 = vsel %vm3003, %v2978, 0
      %v3074 = vsel %vm3003, %v2979, 0
      %v3077 = vsel %vm3003, %v2980, 0
      %v3080 = vsel %vm3003, %v2981, 0
      %v3083 = vsel %vm3003, %v2982, 0
      %v3086 = vsel %vm3003, %v2983, 0
      %v3089 = vsel %vm3003, %v2984, 0
      %v3092 = vsel %vm3003, %v2985, 0
      %v3095 = vsel %vm3003, %v2986, 0
      %v3098 = vsel %vm3003, %v2987, 0
      %3100 = vmatprep.subr.mxu0 0.0
      %3101 = vmatpush1.msra.mxu0 %v2988
      %3102 = vmatprep.subr.mxu0 0.0
      %3103 = vmatpush1.msra.mxu0 %v2989
      %3104 = vmatprep.subr.mxu0 0.0
      %3105 = vmatpush1.msra.mxu0 %v2990
      %3106 = vmatprep.subr.mxu0 0.0
      %3107 = vmatpush1.msra.mxu0 %v2991
      %3108 = vmatprep.subr.mxu0 0.0
      %3109 = vmatpush1.msra.mxu0 %v2992
      %3110 = vmatprep.subr.mxu0 0.0
      %3111 = vmatpush1.msra.mxu0 %v2993
      %3112 = vmatprep.subr.mxu0 0.0
      %3113 = vmatpush1.msra.mxu0 %v2994
      %3114 = vmatprep.subr.mxu0 0.0
      %3115 = vmatpush1.msra.mxu0 %v2995
      %3116 = vmatprep.subr.mxu0 0.0
      %3117 = vmatpush1.msra.mxu0 0.0
      %3118 = vmatprep.subr.mxu0 0.0
      %3119 = vmatpush1.msra.mxu0 0.0
      %3120 = vmatprep.subr.mxu0 0.0
      %3121 = vmatpush1.msra.mxu0 0.0
      %3122 = vmatprep.subr.mxu0 0.0
      %3123 = vmatpush1.msra.mxu0 0.0
      %3124 = vmatprep.subr.mxu0 0.0
      %3125 = vmatpush1.msra.mxu0 0.0
      %3126 = vmatprep.subr.mxu0 0.0
      %3127 = vmatpush1.msra.mxu0 0.0
      %3128 = vmatprep.subr.mxu0 0.0
      %3129 = vmatpush1.msra.mxu0 0.0
      %3130 = vmatprep.subr.mxu0 0.0
      %3131 = vmatpush1.msra.mxu0 0.0
      %3132 = vmatprep.subr.mxu0 0.0
      %3133 = vmatpush1.msra.mxu0 0.0
      %3134 = vmatprep.subr.mxu0 0.0
      %3135 = vmatpush1.msra.mxu0 0.0
      %3136 = vmatprep.subr.mxu0 0.0
      %3137 = vmatpush1.msra.mxu0 0.0
      %3138 = vmatprep.subr.mxu0 0.0
      %3139 = vmatpush1.msra.mxu0 0.0
      %3140 = vmatprep.subr.mxu0 0.0
      %3141 = vmatpush1.msra.mxu0 0.0
      %3142 = vmatprep.subr.mxu0 0.0
      %3143 = vmatpush1.msra.mxu0 0.0
      %3144 = vmatprep.subr.mxu0 0.0
      %3145 = vmatpush1.msra.mxu0 0.0
      %3146 = vmatprep.subr.mxu0 0.0
      %3147 = vmatpush1.msra.mxu0 0.0
      %3148 = vmatprep.subr.mxu0 0.0
      %3149 = vmatpush1.msra.mxu0 0.0
      %3150 = vmatprep.subr.mxu0 0.0
      %3151 = vmatpush1.msra.mxu0 0.0
      %3152 = vmatprep.subr.mxu0 0.0
      %3153 = vmatpush1.msra.mxu0 0.0
      %3154 = vmatprep.subr.mxu0 0.0
      %3155 = vmatpush1.msra.mxu0 0.0
      %3156 = vmatprep.subr.mxu0 0.0
      %3157 = vmatpush1.msra.mxu0 0.0
      %3158 = vmatprep.subr.mxu0 0.0
      %3159 = vmatpush1.msra.mxu0 0.0
      %3160 = vmatprep.subr.mxu0 0.0
      %3161 = vmatpush1.msra.mxu0 0.0
      %3162 = vmatprep.subr.mxu0 0.0
      %3163 = vmatpush1.msra.mxu0 0.0
      %3164 = vmatprep.mubr.f32.mxu0 0.0
      %3165 = vmatmul.mubr.f32.gmra.mrb[0].mxu0 %v3005
      %v3166 = vpop.f32.mrb[0].mxu0
      %v3167 = vadd.f32 %v3001, %v3166
      %v3168 = vpop.f32.mrb[0].mxu0
      %3169 = vmatprep.mubr.f32.mxu0 0.0
      %3170 = vmatmul.mubr.f32.gmra.mrb[0].mxu0 %v3008
      %v3171 = vpop.f32.mrb[0].mxu0
      %v3172 = vadd.f32 %v3001, %v3171
      %v3173 = vpop.f32.mrb[0].mxu0
      %3174 = vmatprep.mubr.f32.mxu0 0.0
      %3175 = vmatmul.mubr.f32.gmra.mrb[0].mxu0 %v3011
      %v3176 = vpop.f32.mrb[0].mxu0
      %v3177 = vadd.f32 %v3001, %v3176
      %v3178 = vpop.f32.mrb[0].mxu0
      %3179 = vmatprep.mubr.f32.mxu0 0.0
      %3180 = vmatmul.mubr.f32.gmra.mrb[0].mxu0 %v3014
      %v3181 = vpop.f32.mrb[0].mxu0
      %v3182 = vadd.f32 %v3001, %v3181
      %v3183 = vpop.f32.mrb[0].mxu0
      %3184 = vmatprep.mubr.f32.mxu0 0.0
      %3185 = vmatmul.mubr.f32.gmra.mrb[0].mxu0 %v3017
      %v3186 = vpop.f32.mrb[0].mxu0
      %v3187 = vadd.f32 %v3001, %v3186
      %v3188 = vpop.f32.mrb[0].mxu0
      %3189 = vmatprep.mubr.f32.mxu0 0.0
      %3190 = vmatmul.mubr.f32.gmra.mrb[0].mxu0 %v3020
      %v3191 = vpop.f32.mrb[0].mxu0
      %v3192 = vadd.f32 %v3001, %v3191
      %v3193 = vpop.f32.mrb[0].mxu0
      %3194 = vmatprep.mubr.f32.mxu0 0.0
      %3195 = vmatmul.mubr.f32.gmra.mrb[0].mxu0 %v3023
      %v3196 = vpop.f32.mrb[0].mxu0
      %v3197 = vadd.f32 %v3001, %v3196
      %v3198 = vpop.f32.mrb[0].mxu0
      %3199 = vmatprep.mubr.f32.mxu0 0.0
      %3200 = vmatmul.mubr.f32.gmra.mrb[0].mxu0 %v3026
      %v3201 = vpop.f32.mrb[0].mxu0
      %v3202 = vadd.f32 %v3001, %v3201
      %v3203 = vpop.f32.mrb[0].mxu0
      %3204 = vmatprep.mubr.f32.mxu0 0.0
      %3205 = vmatmul.mubr.f32.gmra.mrb[0].mxu0 %v3029
      %v3206 = vpop.f32.mrb[0].mxu0
      %v3207 = vadd.f32 %v3001, %v3206
      %v3208 = vpop.f32.mrb[0].mxu0
      %3209 = vmatprep.mubr.f32.mxu0 0.0
      %3210 = vmatmul.mubr.f32.gmra.mrb[0].mxu0 %v3032
      %v3211 = vpop.f32.mrb[0].mxu0
      %v3212 = vadd.f32 %v3001, %v3211
      %v3213 = vpop.f32.mrb[0].mxu0
      %3214 = vmatprep.mubr.f32.mxu0 0.0
      %3215 = vmatmul.mubr.f32.gmra.mrb[0].mxu0 %v3035
      %v3216 = vpop.f32.mrb[0].mxu0
      %v3217 = vadd.f32 %v3001, %v3216
      %v3218 = vpop.f32.mrb[0].mxu0
      %3219 = vmatprep.mubr.f32.mxu0 0.0
      %3220 = vmatmul.mubr.f32.gmra.mrb[0].mxu0 %v3038
      %v3221 = vpop.f32.mrb[0].mxu0
      %v3222 = vadd.f32 %v3001, %v3221
      %v3223 = vpop.f32.mrb[0].mxu0
      %3224 = vmatprep.mubr.f32.mxu0 0.0
      %3225 = vmatmul.mubr.f32.gmra.mrb[0].mxu0 %v3041
      %v3226 = vpop.f32.mrb[0].mxu0
      %v3227 = vadd.f32 %v3001, %v3226
      %v3228 = vpop.f32.mrb[0].mxu0
      %3229 = vmatprep.mubr.f32.mxu0 0.0
      %3230 = vmatmul.mubr.f32.gmra.mrb[0].mxu0 %v3044
      %v3231 = vpop.f32.mrb[0].mxu0
      %v3232 = vadd.f32 %v3001, %v3231
      %v3233 = vpop.f32.mrb[0].mxu0
      %3234 = vmatprep.mubr.f32.mxu0 0.0
      %3235 = vmatmul.mubr.f32.gmra.mrb[0].mxu0 %v3047
      %v3236 = vpop.f32.mrb[0].mxu0
      %v3237 = vadd.f32 %v3001, %v3236
      %v3238 = vpop.f32.mrb[0].mxu0
      %3239 = vmatprep.mubr.f32.mxu0 0.0
      %3240 = vmatmul.mubr.f32.gmra.mrb[0].mxu0 %v3050
      %v3241 = vpop.f32.mrb[0].mxu0
      %v3242 = vadd.f32 %v3001, %v3241
      %v3243 = vpop.f32.mrb[0].mxu0
      %3244 = vmatprep.mubr.f32.mxu0 0.0
      %3245 = vmatmul.mubr.f32.gmra.mrb[0].mxu0 %v3053
      %v3246 = vpop.f32.mrb[0].mxu0
      %v3247 = vadd.f32 %v3001, %v3246
      %v3248 = vpop.f32.mrb[0].mxu0
      %3249 = vmatprep.mubr.f32.mxu0 0.0
      %3250 = vmatmul.mubr.f32.gmra.mrb[0].mxu0 %v3056
      %v3251 = vpop.f32.mrb[0].mxu0
      %v3252 = vadd.f32 %v3001, %v3251
      %v3253 = vpop.f32.mrb[0].mxu0
      %3254 = vmatprep.mubr.f32.mxu0 0.0
      %3255 = vmatmul.mubr.f32.gmra.mrb[0].mxu0 %v3059
      %v3256 = vpop.f32.mrb[0].mxu0
      %v3257 = vadd.f32 %v3001, %v3256
      %v3258 = vpop.f32.mrb[0].mxu0
      %3259 = vmatprep.mubr.f32.mxu0 0.0
      %3260 = vmatmul.mubr.f32.gmra.mrb[0].mxu0 %v3062
      %v3261 = vpop.f32.mrb[0].mxu0
      %v3262 = vadd.f32 %v3001, %v3261
      %v3263 = vpop.f32.mrb[0].mxu0
      %3264 = vmatprep.mubr.f32.mxu0 0.0
      %3265 = vmatmul.mubr.f32.gmra.mrb[0].mxu0 %v3065
      %v3266 = vpop.f32.mrb[0].mxu0
      %v3267 = vadd.f32 %v3001, %v3266
      %v3268 = vpop.f32.mrb[0].mxu0
      %3269 = vmatprep.mubr.f32.mxu0 0.0
      %3270 = vmatmul.mubr.f32.gmra.mrb[0].mxu0 %v3068
      %v3271 = vpop.f32.mrb[0].mxu0
      %v3272 = vadd.f32 %v3001, %v3271
      %v3273 = vpop.f32.mrb[0].mxu0
      %3274 = vmatprep.mubr.f32.mxu0 0.0
      %3275 = vmatmul.mubr.f32.gmra.mrb[0].mxu0 %v3071
      %v3276 = vpop.f32.mrb[0].mxu0
      %v3277 = vadd.f32 %v3001, %v3276
      %v3278 = vpop.f32.mrb[0].mxu0
      %3279 = vmatprep.mubr.f32.mxu0 0.0
      %3280 = vmatmul.mubr.f32.gmra.mrb[0].mxu0 %v3074
      %v3281 = vpop.f32.mrb[0].mxu0
      %v3282 = vadd.f32 %v3001, %v3281
      %v3283 = vpop.f32.mrb[0].mxu0
      %3284 = vmatprep.mubr.f32.mxu0 0.0
      %3285 = vmatmul.mubr.f32.gmra.mrb[0].mxu0 %v3077
      %v3286 = vpop.f32.mrb[0].mxu0
      %v3287 = vadd.f32 %v3001, %v3286
      %v3288 = vpop.f32.mrb[0].mxu0
      %3289 = vmatprep.mubr.f32.mxu0 0.0
      %3290 = vmatmul.mubr.f32.gmra.mrb[0].mxu0 %v3080
      %v3291 = vpop.f32.mrb[0].mxu0
      %v3292 = vadd.f32 %v3001, %v3291
      %v3293 = vpop.f32.mrb[0].mxu0
      %3294 = vmatprep.mubr.f32.mxu0 0.0
      %3295 = vmatmul.mubr.f32.gmra.mrb[0].mxu0 %v3083
      %v3296 = vpop.f32.mrb[0].mxu0
      %v3297 = vadd.f32 %v3001, %v3296
      %v3298 = vpop.f32.mrb[0].mxu0
      %3299 = vmatprep.mubr.f32.mxu0 0.0
      %3300 = vmatmul.mubr.f32.gmra.mrb[0].mxu0 %v3086
      %v3301 = vpop.f32.mrb[0].mxu0
      %v3302 = vadd.f32 %v3001, %v3301
      %v3303 = vpop.f32.mrb[0].mxu0
      %3304 = vmatprep.mubr.f32.mxu0 0.0
      %3305 = vmatmul.mubr.f32.gmra.mrb[0].mxu0 %v3089
      %v3306 = vpop.f32.mrb[0].mxu0
      %v3307 = vadd.f32 %v3001, %v3306
      %v3308 = vpop.f32.mrb[0].mxu0
      %3309 = vmatprep.mubr.f32.mxu0 0.0
      %3310 = vmatmul.mubr.f32.gmra.mrb[0].mxu0 %v3092
      %v3311 = vpop.f32.mrb[0].mxu0
      %v3312 = vadd.f32 %v3001, %v3311
      %v3313 = vpop.f32.mrb[0].mxu0
      %3314 = vmatprep.mubr.f32.mxu0 0.0
      %3315 = vmatmul.mubr.f32.gmra.mrb[0].mxu0 %v3095
      %v3316 = vpop.f32.mrb[0].mxu0
      %v3317 = vadd.f32 %v3001, %v3316
      %v3318 = vpop.f32.mrb[0].mxu0
      %3319 = vmatprep.mubr.f32.mxu0 0.0
      %3320 = vmatmul.mubr.f32.gmra.mrb[0].mxu0 %v3098
      %v3321 = vpop.f32.mrb[0].mxu0
      %v3322 = vadd.f32 %v3001, %v3321
      %v3323 = vpop.f32.mrb[0].mxu0
      %3324 = vdwg.mxu0
      %v3325 = vmax.f32 %v3167, 0.0
      %v3326 = vmax.f32 %v3172, 0.0
      %v3327 = vmax.f32 %v3177, 0.0
      %v3328 = vmax.f32 %v3182, 0.0
      %v3329 = vmax.f32 %v3187, 0.0
      %v3330 = vmax.f32 %v3192, 0.0
      %v3331 = vmax.f32 %v3197, 0.0
      %v3332 = vmax.f32 %v3202, 0.0
      %v3333 = vmax.f32 %v3207, 0.0
      %v3334 = vmax.f32 %v3212, 0.0
      %v3335 = vmax.f32 %v3217, 0.0
      %v3336 = vmax.f32 %v3222, 0.0
      %v3337 = vmax.f32 %v3227, 0.0
      %v3338 = vmax.f32 %v3232, 0.0
      %v3339 = vmax.f32 %v3237, 0.0
      %v3340 = vmax.f32 %v3242, 0.0
      %v3341 = vmax.f32 %v3247, 0.0
      %v3342 = vmax.f32 %v3252, 0.0
      %v3343 = vmax.f32 %v3257, 0.0
      %v3344 = vmax.f32 %v3262, 0.0
      %v3345 = vmax.f32 %v3267, 0.0
      %v3346 = vmax.f32 %v3272, 0.0
      %v3347 = vmax.f32 %v3277, 0.0
      %v3348 = vmax.f32 %v3282, 0.0
      %v3349 = vmax.f32 %v3287, 0.0
      %v3350 = vmax.f32 %v3292, 0.0
      %v3351 = vmax.f32 %v3297, 0.0
      %v3352 = vmax.f32 %v3302, 0.0
      %v3353 = vmax.f32 %v3307, 0.0
      %v3354 = vmax.f32 %v3312, 0.0
      %v3355 = vmax.f32 %v3317, 0.0
      %v3356 = vmax.f32 %v3322, 0.0
      %vm3357 = vcmask 23552
      %3358 = vst.msk [vmem:[%s226] sm:$0xff] %vm3357, %v3325
      %3359 = vst.msk [vmem:[%s226 + $0x8] sm:$0xff] %vm3357, %v3326
      %3360 = vst.msk [vmem:[%s226 + $0x10] sm:$0xff] %vm3357, %v3327
      %3361 = vst.msk [vmem:[%s226 + $0x18] sm:$0xff] %vm3357, %v3328
      %3362 = vst.msk [vmem:[%s226 + $0x20] sm:$0xff] %vm3357, %v3329
      %3363 = vst.msk [vmem:[%s226 + $0x28] sm:$0xff] %vm3357, %v3330
      %3364 = vst.msk [vmem:[%s226 + $0x30] sm:$0xff] %vm3357, %v3331
      %3365 = vst.msk [vmem:[%s226 + $0x38] sm:$0xff] %vm3357, %v3332
      %3366 = vst.msk [vmem:[%s226 + $0x40] sm:$0xff] %vm3357, %v3333
      %3367 = vst.msk [vmem:[%s226 + $0x48] sm:$0xff] %vm3357, %v3334
      %3368 = vst.msk [vmem:[%s226 + $0x50] sm:$0xff] %vm3357, %v3335
      %3369 = vst.msk [vmem:[%s226 + $0x58] sm:$0xff] %vm3357, %v3336
      %3370 = vst.msk [vmem:[%s226 + $0x60] sm:$0xff] %vm3357, %v3337
      %3371 = vst.msk [vmem:[%s226 + $0x68] sm:$0xff] %vm3357, %v3338
      %3372 = vst.msk [vmem:[%s226 + $0x70] sm:$0xff] %vm3357, %v3339
      %3373 = vst.msk [vmem:[%s226 + $0x78] sm:$0xff] %vm3357, %v3340
      %3374 = vst.msk [vmem:[%s226 + $0x80] sm:$0xff] %vm3357, %v3341
      %3375 = vst.msk [vmem:[%s226 + $0x88] sm:$0xff] %vm3357, %v3342
      %3376 = vst.msk [vmem:[%s226 + $0x90] sm:$0xff] %vm3357, %v3343
      %3377 = vst.msk [vmem:[%s226 + $0x98] sm:$0xff] %vm3357, %v3344
      %3378 = vst.msk [vmem:[%s226 + $0xa0] sm:$0xff] %vm3357, %v3345
      %3379 = vst.msk [vmem:[%s226 + $0xa8] sm:$0xff] %vm3357, %v3346
      %3380 = vst.msk [vmem:[%s226 + $0xb0] sm:$0xff] %vm3357, %v3347
      %3381 = vst.msk [vmem:[%s226 + $0xb8] sm:$0xff] %vm3357, %v3348
      %3382 = vst.msk [vmem:[%s226 + $0xc0] sm:$0xff] %vm3357, %v3349
      %3383 = vst.msk [vmem:[%s226 + $0xc8] sm:$0xff] %vm3357, %v3350
      %3384 = vst.msk [vmem:[%s226 + $0xd0] sm:$0xff] %vm3357, %v3351
      %3385 = vst.msk [vmem:[%s226 + $0xd8] sm:$0xff] %vm3357, %v3352
      %3386 = vst.msk [vmem:[%s226 + $0xe0] sm:$0xff] %vm3357, %v3353
      %3387 = vst.msk [vmem:[%s226 + $0xe8] sm:$0xff] %vm3357, %v3354
      %3388 = vst.msk [vmem:[%s226 + $0xf0] sm:$0xff] %vm3357, %v3355
      %3389 = vst.msk [vmem:[%s226 + $0xf8] sm:$0xff] %vm3357, %v3356
      %s3390 = smul.u32 32, %s16
      %p3391 = scmp.lt.s32.totalorder %s3390, 63
      %s3392 = scalar_select %p3391, %s3390, 63
      %s3393 = smul.addr %s3392, 8
      %s3394 = scalar_lea.vmem %s5, %s3393
      // Predicated region
      $region41: #{cnn_forward.3} parent=39 // pred_check
        %p3395 = pneg %p144
      $region42: #{cnn_forward.3} parent=39 // pred_check_branch
        %3397 = sbr.rel (%p3395) target = $region44
      $region43: #{cnn_forward.3} parent=39 // pred_region
        %s3398 = smul.u32 32, %s16
      $region44: #{cnn_forward.3} parent=39 // pred_fallthru
        _
    $region40: #{cnn_forward.3} parent=5 // pred_fallthru
      _
    %p3399 = scmp.le.s32.totalorder 2, %s11
    // Predicated region
    $region45: #{cnn_forward.3} parent=5 // pred_check
      %p3400 = pneg %p3399
    $region46: #{cnn_forward.3} parent=5 // pred_check_branch
      %3402 = sbr.rel (%p3400) target = $region48
    $region47: #{cnn_forward.3} parent=5 // pred_region
      %s3403 = ssub.s32 %s11, 2
      // Predicated region
      $region49: #{cnn_forward.3} parent=47 // pred_check
        %p3404 = pneg %p150
      $region50: #{cnn_forward.3} parent=47 // pred_check_branch
        %3406 = sbr.rel (%p3404) target = $region52
      $region51: #{cnn_forward.3} parent=47 // pred_region
        %s3407 = smul.u32 32, %s17
        %p3408 = scmp.lt.s32.totalorder %s3407, 63
        %s3409 = scalar_select %p3408, %s3407, 63
        %s3410 = smul.addr %s3409, 8
        %s3411 = scalar_lea.vmem %s5, %s3410
      $region52: #{cnn_forward.3} parent=47 // pred_fallthru
        _
    $region48: #{cnn_forward.3} parent=5 // pred_fallthru
      _
  $region6: #{cnn_forward.3} parent=0 // loop_footer
    %s15 = sadd.s32 1, %s11
  $region7: #{cnn_forward.3} parent=0 // loop_footer_branch
    %10 = sbr.rel target = $region3
  $region8: #{cnn_forward.3} parent=0 // loop_exit
    _

</llo_original>
